<compile_context>
chip_gen: v5e
topology: v5e:2x2
jax: 0.10.0
libtpu: 0.0.40
codegen_flags: <defaults>
</compile_context>

<pallas_src>
import jax
import jax.numpy as jnp
from jax.experimental import pallas as pl
from jax.experimental.pallas import tpu as pltpu

NEG_SLOPE = 0.01   # torch.nn.LeakyReLU default
LANE = 128         # TPU lane width


def _leaky_relu(v):
    # one vmul + vmax instead of cmp + select
    return jnp.maximum(v, NEG_SLOPE * v)


def veprecond_kernel(scal_ref, xg_ref, w0_ref, b0_ref, w1_ref, b1_ref,
                     w2_ref, b2_ref, og_ref):
    """One batch tile.  xg/og are (rows_tile, 128): G samples per lane row."""
    sigma = scal_ref[0]                       # SMEM scalar

    xg = xg_ref[...]                          # (rows, 128) f32, lane dense

    # Layer 0 (concat with the noise column already folded into b0): LeakyReLU(x @ W0e + b0e)
    y = jnp.dot(xg.astype(w0_ref.dtype), w0_ref[...],
                preferred_element_type=jnp.float32)
    y = _leaky_relu(y + b0_ref[...])

    # Layer 1
    y = jnp.dot(y.astype(w1_ref.dtype), w1_ref[...],
                preferred_element_type=jnp.float32)
    y = _leaky_relu(y + b1_ref[...])

    # Layer 2 (torch applies the activation after the last layer too)
    y = jnp.dot(y.astype(w2_ref.dtype), w2_ref[...],
                preferred_element_type=jnp.float32)
    y = _leaky_relu(y + b2_ref[...])

    # VE preconditioning residual, f32 epilogue; cast only at the store.
    og_ref[...] = (xg + sigma * y).astype(og_ref.dtype)


def init_params(key, layers):
    """Torch nn.Linear-style init: W (out, in), b (out,), U(-1/sqrt(fan_in), +)."""
    params = []
    for fan_in, fan_out in zip(layers, layers[1:]):
        kw, kb, key = jax.random.split(key, 3)
        bound = 1.0 / (fan_in ** 0.5)
        w = jax.random.uniform(kw, (fan_out, fan_in), jnp.float32, -bound, bound)
        b = jax.random.uniform(kb, (fan_out,), jnp.float32, -bound, bound)
        params.append((w, b))
    return params


def _max_rows_tile(widths, matmul_dtype, vmem_budget_bytes=24 * 2**20):
    """Largest rows-per-step that keeps VMEM use under budget (v7x-safe)."""
    w_item = jnp.dtype(matmul_dtype).itemsize
    # pessimistic: expanded weights double-buffered by the pipeline
    weight_bytes = 2 * sum(a * b for a, b in zip(widths, widths[1:])) * w_item
    # per row: double-buffered f32 in/out rows + ~2 live f32 intermediates
    per_row = 4 * (2 * widths[0] + 2 * widths[-1] + 2 * max(widths[1], widths[2]))
    avail = max(vmem_budget_bytes - weight_bytes, 0)
    return max(8, min(2048, (avail // per_row) // 8 * 8))


def _choose_tiling(n_rows, max_rows_tile):
    """rows-per-step (multiple of 8) and grid length.

    Prefers the largest tile that still leaves >= 2 grid steps so the batch
    axis can be split across the two TensorCores on v7x; tiny batches fall
    back to a single (padded) block.
    """
    for rt in (2048, 1024, 512, 256, 128, 64, 32, 16, 8):
        if rt <= max_rows_tile and n_rows >= 2 * rt:
            return rt, -(-n_rows // rt)
    return max(8, -(-n_rows // 8) * 8), 1


def veprecond_forward(x, sigma, params, *, matmul_dtype=jnp.float32,
                      out_dtype=jnp.float32, rows_tile=None):
    """D_x = x + sigma * MLP(concat([x, log(0.5*sigma)], -1)).

    `params` use the torch layout: W_i (out, in), b_i (out,).
    Only scalar sigma is supported (the torch `t.shape == Size([])` branch).
    """
    x = jnp.asarray(x, jnp.float32)
    B, D = x.shape

    (w0, b0), (w1, b1), (w2, b2) = params
    H0, H1, Dout = w0.shape[0], w1.shape[0], w2.shape[0]
    assert w0.shape[1] == D + 1, "first layer must take D+1 inputs (x ++ noise)"
    assert w1.shape[1] == H0 and w2.shape[1] == H1
    assert Dout == D, "residual x + sigma*F(x) requires last-layer out == D"

    if LANE % D != 0:
        # TODO(synk): feature dims that do not divide 128 need a padded-lane or
        # batch-on-lanes fallback; not needed for this module's configs.
        raise NotImplementedError(f"feature dim {D} must divide {LANE}")
    G = LANE // D                                  # samples packed per lane row

    widths = (G * D, G * H0, G * H1, G * Dout)     # expanded layer widths
    w_item = jnp.dtype(matmul_dtype).itemsize
    expanded_weight_bytes = sum(a * b for a, b in zip(widths, widths[1:])) * w_item
    if expanded_weight_bytes > 12 * 2**20:
        # TODO(synk): for large hidden widths the kron expansion stops paying
        # for itself; switch to a batch-on-lanes kernel with K-tiled weights.
        raise NotImplementedError("hidden widths too large for block-diagonal expansion")

    sigma = jnp.asarray(sigma, jnp.float32)
    if sigma.ndim != 0:
        # TODO(synk): per-sample sigma (shape (B,)) path not implemented.
        raise NotImplementedError("only scalar sigma is supported")
    c_noise = jnp.log(0.5 * sigma)

    # --- expand torch weights into block-diagonal kron(I_G, W^T) form -------
    # (sigma-independent; under jit with constant params this is folded/hoisted)
    eye = jnp.eye(G, dtype=jnp.float32)
    w0e = jnp.kron(eye, w0[:, :D].T).astype(matmul_dtype)          # (G*D,  G*H0)
    w1e = jnp.kron(eye, w1.T).astype(matmul_dtype)                 # (G*H0, G*H1)
    w2e = jnp.kron(eye, w2.T).astype(matmul_dtype)                 # (G*H1, G*D)
    # concat-with-noise folded into the layer-0 bias (review item):
    b0e = jnp.tile(c_noise * w0[:, D] + b0, G).reshape(1, G * H0).astype(jnp.float32)
    b1e = jnp.tile(b1, G).reshape(1, G * H1).astype(jnp.float32)
    b2e = jnp.tile(b2, G).reshape(1, G * Dout).astype(jnp.float32)

    # --- tiling --------------------------------------------------------------
    n_rows = -(-B // G)                            # rows of the (B/G, 128) view
    if rows_tile is None:
        rows_tile, grid_n = _choose_tiling(n_rows, _max_rows_tile(widths, matmul_dtype))
    else:
        rows_tile = max(8, (rows_tile // 8) * 8)
        grid_n = -(-n_rows // rows_tile)

    padded_b = grid_n * rows_tile * G
    xp = jnp.pad(x, ((0, padded_b - B), (0, 0))) if padded_b != B else x
    xg = xp.reshape(grid_n * rows_tile, G * D)     # free, layout-preserving

    scalars = sigma.reshape(1)                     # -> SMEM

    const = lambda i: (0, 0)                       # weights/biases stay resident
    flops = 2 * grid_n * rows_tile * sum(a * b for a, b in zip(widths, widths[1:]))
    bytes_accessed = (xg.size * 4
                      + padded_b * Dout * jnp.dtype(out_dtype).itemsize
                      + expanded_weight_bytes)

    og = pl.pallas_call(
        veprecond_kernel,
        out_shape=jax.ShapeDtypeStruct((grid_n * rows_tile, G * Dout), out_dtype),
        grid=(grid_n,),
        in_specs=[
            pl.BlockSpec(memory_space=pltpu.MemorySpace.SMEM),        # [sigma]
            pl.BlockSpec((rows_tile, G * D), lambda i: (i, 0)),       # x rows
            pl.BlockSpec((G * D, G * H0), const),                     # W0e
            pl.BlockSpec((1, G * H0), const),                         # b0e (+noise)
            pl.BlockSpec((G * H0, G * H1), const),                    # W1e
            pl.BlockSpec((1, G * H1), const),                         # b1e
            pl.BlockSpec((G * H1, G * Dout), const),                  # W2e
            pl.BlockSpec((1, G * Dout), const),                       # b2e
        ],
        out_specs=pl.BlockSpec((rows_tile, G * Dout), lambda i: (i, 0)),
        compiler_params=pltpu.CompilerParams(
            dimension_semantics=("parallel",),         # 2 TCs on v7x
            vmem_limit_bytes=40 * 2**20),              # headroom over the budget
        cost_estimate=pl.CostEstimate(flops=flops, transcendentals=0,
                                      bytes_accessed=bytes_accessed),
    )(scalars, xg, w0e, b0e, w1e, b1e, w2e, b2e)

    out = og.reshape(padded_b, Dout)
    return out[:B] if padded_b != B else out


def veprecond_reference(x, sigma, params):
    """Pure-JAX f32 reference matching the PyTorch forward (torch weight layout)."""
    x = x.astype(jnp.float32)
    sigma = jnp.asarray(sigma, jnp.float32)
    c_noise = jnp.log(0.5 * sigma)
    t = jnp.full((x.shape[0], 1), c_noise, jnp.float32)
    y = jnp.concatenate([x, t], axis=-1)
    for w, b in params:
        y = y @ w.T + b
        y = jnp.where(y >= 0, y, NEG_SLOPE * y)
    return x + sigma * y


if __name__ == "__main__":
    D, H = 4, 32
    layers = [D + 1, H, H, D]                 # config.model.layers

    key = jax.random.PRNGKey(0)
    kx, kx2, kx3, kp = jax.random.split(key, 4)
    params = init_params(kp, layers)
    sigma = jnp.float32(1.7)                  # scalar sigma (torch t.shape == Size([]))

    # --- main path: lane-dense blocks, 2-step grid, f32 matmuls (tight check) ---
    B = 1024
    x = jax.random.normal(kx, (B, D), jnp.float32)
    ref = veprecond_reference(x, sigma, params)

    out = jax.block_until_ready(veprecond_forward(x, sigma, params))
    assert out.shape == (B, D) and out.dtype == jnp.float32
    assert jnp.allclose(out, ref, atol=1e-5, rtol=1e-5)

    # --- bf16 matmul fast path (opt-in), f32 accumulation + f32 epilogue ---
    out_bf = jax.block_until_ready(
        veprecond_forward(x, sigma, params, matmul_dtype=jnp.bfloat16))
    assert jnp.allclose(out_bf, ref, atol=5e-2, rtol=5e-2)

    # --- bf16 output to halve write traffic (residual still computed in f32) ---
    out_bfo = jax.block_until_ready(
        veprecond_forward(x, sigma, params, out_dtype=jnp.bfloat16))
    assert out_bfo.dtype == jnp.bfloat16
    assert jnp.allclose(out_bfo.astype(jnp.float32), ref, atol=1e-1, rtol=5e-2)

    # --- ragged batch (pads to whole blocks, slices back) ---
    B2 = 1000
    x2 = jax.random.normal(kx2, (B2, D), jnp.float32)
    out2 = jax.block_until_ready(veprecond_forward(x2, sigma, params))
    assert jnp.allclose(out2, veprecond_reference(x2, sigma, params),
                        atol=1e-5, rtol=1e-5)

    # --- tiny batch (single padded block) ---
    B3 = 8
    x3 = jax.random.normal(kx3, (B3, D), jnp.float32)
    out3 = jax.block_until_ready(veprecond_forward(x3, sigma, params))
    assert jnp.allclose(out3, veprecond_reference(x3, sigma, params),
                        atol=1e-5, rtol=1e-5)

    print("KERNEL_OK")
</pallas_src>

<mosaic_0001>
module attributes {stable_mosaic.version = 11 : i64} {
  func.func @veprecond_kernel(%arg0: i32, %arg1: memref<1xf32, #tpu.memory_space<smem>>, %arg2: memref<16x128xf32, #tpu.memory_space<vmem>>, %arg3: memref<128x1024xf32, #tpu.memory_space<vmem>>, %arg4: memref<1x1024xf32, #tpu.memory_space<vmem>>, %arg5: memref<1024x1024xf32, #tpu.memory_space<vmem>>, %arg6: memref<1x1024xf32, #tpu.memory_space<vmem>>, %arg7: memref<1024x128xf32, #tpu.memory_space<vmem>>, %arg8: memref<1x128xf32, #tpu.memory_space<vmem>>, %arg9: memref<16x128xf32, #tpu.memory_space<vmem>>) attributes {dimension_semantics = [#tpu.dimension_semantics<parallel>], iteration_bounds = array<i64: 2>, scalar_prefetch = 0 : i64, scratch_operands = 0 : i64, tpu.core_type = #tpu.core_type<tc>, window_params = [{transform_indices = @transform_0, window_bounds = array<i64: 1>}, {transform_indices = @transform_1, window_bounds = array<i64: 16, 128>}, {pipeline_mode = #tpu.pipeline_mode<synchronous>, transform_indices = @transform_2, window_bounds = array<i64: 128, 1024>}, {pipeline_mode = #tpu.pipeline_mode<synchronous>, transform_indices = @transform_3, window_bounds = array<i64: 1, 1024>}, {pipeline_mode = #tpu.pipeline_mode<synchronous>, transform_indices = @transform_4, window_bounds = array<i64: 1024, 1024>}, {pipeline_mode = #tpu.pipeline_mode<synchronous>, transform_indices = @transform_5, window_bounds = array<i64: 1, 1024>}, {pipeline_mode = #tpu.pipeline_mode<synchronous>, transform_indices = @transform_6, window_bounds = array<i64: 1024, 128>}, {pipeline_mode = #tpu.pipeline_mode<synchronous>, transform_indices = @transform_7, window_bounds = array<i64: 1, 128>}, {transform_indices = @transform_8, window_bounds = array<i64: 16, 128>}]} {
    %c0 = arith.constant 0 : index
    %0 = memref.load %arg1[%c0] : memref<1xf32, #tpu.memory_space<smem>>
    %c0_0 = arith.constant 0 : index
    %c0_1 = arith.constant 0 : index
    %1 = vector.load %arg2[%c0_0, %c0_1] : memref<16x128xf32, #tpu.memory_space<vmem>>, vector<16x128xf32>
    %c0_2 = arith.constant 0 : index
    %c0_3 = arith.constant 0 : index
    %2 = vector.load %arg3[%c0_2, %c0_3] : memref<128x1024xf32, #tpu.memory_space<vmem>>, vector<128x1024xf32>
    %cst = arith.constant dense<0.000000e+00> : vector<16x1024xf32>
    %3 = tpu.matmul %1, %2, %cst {dimension_numbers = #tpu.dot_dimension_numbers<[1], [0], [0], [1], [0, 0, 1, 1], [], []>} : vector<16x128xf32>, vector<128x1024xf32>, vector<16x1024xf32> -> vector<16x1024xf32>
    %c0_4 = arith.constant 0 : index
    %c0_5 = arith.constant 0 : index
    %4 = vector.load %arg4[%c0_4, %c0_5] : memref<1x1024xf32, #tpu.memory_space<vmem>>, vector<1x1024xf32>
    %5 = vector.broadcast %4 : vector<1x1024xf32> to vector<16x1024xf32>
    %6 = arith.addf %3, %5 : vector<16x1024xf32>
    %cst_6 = arith.constant 0.00999999977 : f32
    %7 = vector.broadcast %cst_6 : f32 to vector<16x1024xf32>
    %8 = arith.mulf %7, %6 : vector<16x1024xf32>
    %9 = arith.maximumf %6, %8 : vector<16x1024xf32>
    %c0_7 = arith.constant 0 : index
    %c0_8 = arith.constant 0 : index
    %10 = vector.load %arg5[%c0_7, %c0_8] : memref<1024x1024xf32, #tpu.memory_space<vmem>>, vector<1024x1024xf32>
    %cst_9 = arith.constant dense<0.000000e+00> : vector<16x1024xf32>
    %11 = tpu.matmul %9, %10, %cst_9 {dimension_numbers = #tpu.dot_dimension_numbers<[1], [0], [0], [1], [0, 0, 1, 1], [], []>} : vector<16x1024xf32>, vector<1024x1024xf32>, vector<16x1024xf32> -> vector<16x1024xf32>
    %c0_10 = arith.constant 0 : index
    %c0_11 = arith.constant 0 : index
    %12 = vector.load %arg6[%c0_10, %c0_11] : memref<1x1024xf32, #tpu.memory_space<vmem>>, vector<1x1024xf32>
    %13 = vector.broadcast %12 : vector<1x1024xf32> to vector<16x1024xf32>
    %14 = arith.addf %11, %13 : vector<16x1024xf32>
    %cst_12 = arith.constant 0.00999999977 : f32
    %15 = vector.broadcast %cst_12 : f32 to vector<16x1024xf32>
    %16 = arith.mulf %15, %14 : vector<16x1024xf32>
    %17 = arith.maximumf %14, %16 : vector<16x1024xf32>
    %c0_13 = arith.constant 0 : index
    %c0_14 = arith.constant 0 : index
    %18 = vector.load %arg7[%c0_13, %c0_14] : memref<1024x128xf32, #tpu.memory_space<vmem>>, vector<1024x128xf32>
    %cst_15 = arith.constant dense<0.000000e+00> : vector<16x128xf32>
    %19 = tpu.matmul %17, %18, %cst_15 {dimension_numbers = #tpu.dot_dimension_numbers<[1], [0], [0], [1], [0, 0, 1, 1], [], []>} : vector<16x1024xf32>, vector<1024x128xf32>, vector<16x128xf32> -> vector<16x128xf32>
    %c0_16 = arith.constant 0 : index
    %c0_17 = arith.constant 0 : index
    %20 = vector.load %arg8[%c0_16, %c0_17] : memref<1x128xf32, #tpu.memory_space<vmem>>, vector<1x128xf32>
    %21 = vector.broadcast %20 : vector<1x128xf32> to vector<16x128xf32>
    %22 = arith.addf %19, %21 : vector<16x128xf32>
    %cst_18 = arith.constant 0.00999999977 : f32
    %23 = vector.broadcast %cst_18 : f32 to vector<16x128xf32>
    %24 = arith.mulf %23, %22 : vector<16x128xf32>
    %25 = arith.maximumf %22, %24 : vector<16x128xf32>
    %26 = vector.broadcast %0 : f32 to vector<16x128xf32>
    %27 = arith.mulf %26, %25 : vector<16x128xf32>
    %28 = arith.addf %1, %27 : vector<16x128xf32>
    %c0_19 = arith.constant 0 : index
    %c0_20 = arith.constant 0 : index
    %29 = vector.load %arg9[%c0_19, %c0_20] : memref<16x128xf32, #tpu.memory_space<vmem>>, vector<16x128xf32>
    tpu.vector_store %arg9[%c0_19, %c0_20], %28 {strides = array<i32>} : memref<16x128xf32, #tpu.memory_space<vmem>>, vector<16x128xf32>,
    return
  }
  func.func @transform_0(%arg0: i32) -> i32 {
    %c0_i32 = arith.constant 0 : i32
    %c0_i32_0 = arith.constant 0 : i32
    return %c0_i32 : i32
  }
  func.func @transform_1(%arg0: i32) -> (i32, i32) {
    %c0_i32 = arith.constant 0 : i32
    %c0_i32_0 = arith.constant 0 : i32
    return %arg0, %c0_i32 : i32, i32
  }
  func.func @transform_2(%arg0: i32) -> (i32, i32) {
    %c0_i32 = arith.constant 0 : i32
    %c0_i32_0 = arith.constant 0 : i32
    %c0_i32_1 = arith.constant 0 : i32
    return %c0_i32, %c0_i32_0 : i32, i32
  }
  func.func @transform_3(%arg0: i32) -> (i32, i32) {
    %c0_i32 = arith.constant 0 : i32
    %c0_i32_0 = arith.constant 0 : i32
    %c0_i32_1 = arith.constant 0 : i32
    return %c0_i32, %c0_i32_0 : i32, i32
  }
  func.func @transform_4(%arg0: i32) -> (i32, i32) {
    %c0_i32 = arith.constant 0 : i32
    %c0_i32_0 = arith.constant 0 : i32
    %c0_i32_1 = arith.constant 0 : i32
    return %c0_i32, %c0_i32_0 : i32, i32
  }
  func.func @transform_5(%arg0: i32) -> (i32, i32) {
    %c0_i32 = arith.constant 0 : i32
    %c0_i32_0 = arith.constant 0 : i32
    %c0_i32_1 = arith.constant 0 : i32
    return %c0_i32, %c0_i32_0 : i32, i32
  }
  func.func @transform_6(%arg0: i32) -> (i32, i32) {
    %c0_i32 = arith.constant 0 : i32
    %c0_i32_0 = arith.constant 0 : i32
    %c0_i32_1 = arith.constant 0 : i32
    return %c0_i32, %c0_i32_0 : i32, i32
  }
  func.func @transform_7(%arg0: i32) -> (i32, i32) {
    %c0_i32 = arith.constant 0 : i32
    %c0_i32_0 = arith.constant 0 : i32
    %c0_i32_1 = arith.constant 0 : i32
    return %c0_i32, %c0_i32_0 : i32, i32
  }
  func.func @transform_8(%arg0: i32) -> (i32, i32) {
    %c0_i32 = arith.constant 0 : i32
    %c0_i32_0 = arith.constant 0 : i32
    return %arg0, %c0_i32 : i32, i32
  }
}

</mosaic_0001>

<llo_original>
// kernel: tpu_custom_call.1
$region0: #{tpu_custom_call.1}
  #allocation0 [shape = 'u32[]', space=smem, size = 0x4, offset = 0x4, fixed_abs, tag = 'smem constant byte address 0x4 - core index']
  #allocation1 [shape = 'u32[72,128]{1,0:T(1,128)}', space=vmem, size = 0x9000, scoped, tag = 'internal scratch']
  #allocation2 [shape = 'f32[1]{0:T(128)S(6)}', space=smem, size = 0x200, scoped, tag = 'scoped memory for tpu_custom_call.1']
  %s0 = inlined_call_operand.<no memory space> [shape: f32[1], index: 0, kind: input, shape index: {}]
  %s1 = inlined_call_operand.hbm [shape: f32[32,128], index: 1, kind: input, shape index: {}]
  %s2 = inlined_call_operand.hbm [shape: f32[128,1024], index: 2, kind: input, shape index: {}]
  %s3 = inlined_call_operand.hbm [shape: f32[1,1024], index: 3, kind: input, shape index: {}]
  %s4 = inlined_call_operand.hbm [shape: f32[1024,1024], index: 4, kind: input, shape index: {}]
  %s5 = inlined_call_operand.hbm [shape: f32[1,1024], index: 5, kind: input, shape index: {}]
  %s6 = inlined_call_operand.hbm [shape: f32[1024,128], index: 6, kind: input, shape index: {}]
  %s7 = inlined_call_operand.hbm [shape: f32[1,128], index: 7, kind: input, shape index: {}]
  %s8 = inlined_call_operand.hbm [shape: f32[32,128], index: 8, kind: output, shape index: {}]
  %s9 = sld [smem:[#allocation0]]
  $region93: #{tpu_custom_call.1} parent=0
    _
  %s11 = ssub.s32 1, %s9
  %s12 = scalar_select 0, %s11, %s9
  %13 = sst [smem:[#allocation2]] %s0
  $region1: #{tpu_custom_call.1} parent=0
    #allocation3 [shape = 'u8[16384]{0}', space=vmem, size = 0x4000, scoped, tag = 'input window, operand 1']
    #allocation4 [shape = 's32[2]{0}', space=sflag, size = 0x8, scoped, tag = 'scoped memory for tpu_custom_call.1']
    #allocation5 [shape = 's32[2]{0}', space=sflag, size = 0x8, scoped, tag = 'scoped memory for tpu_custom_call.1']
    #allocation6 [shape = 'u8[524288]{0}', space=vmem, size = 0x80000, scoped, tag = 'input window, operand 2, single buffered']
    #allocation7 [shape = 's32[1]{0}', space=sflag, size = 0x4, scoped, tag = 'scoped memory for tpu_custom_call.1']
    #allocation8 [shape = 'u8[4096]{0}', space=vmem, size = 0x1000, scoped, tag = 'input window, operand 3, single buffered']
    #allocation9 [shape = 'u8[4194304]{0}', space=vmem, size = 0x400000, scoped, tag = 'input window, operand 4, single buffered']
    #allocation10 [shape = 's32[1]{0}', space=sflag, size = 0x4, scoped, tag = 'scoped memory for tpu_custom_call.1']
    #allocation11 [shape = 'u8[4096]{0}', space=vmem, size = 0x1000, scoped, tag = 'input window, operand 5, single buffered']
    #allocation12 [shape = 'u8[524288]{0}', space=vmem, size = 0x80000, scoped, tag = 'input window, operand 6, single buffered']
    #allocation13 [shape = 's32[1]{0}', space=sflag, size = 0x4, scoped, tag = 'scoped memory for tpu_custom_call.1']
    #allocation14 [shape = 'u8[512]{0}', space=vmem, size = 0x400, scoped, tag = 'input window, operand 7, single buffered']
    #allocation15 [shape = 'u8[16384]{0}', space=vmem, size = 0x4000, scoped, tag = 'output window, operand 0']
    %14 = vsyncpa [#allocation4], 0
    %s15 = scalar_lea.sflag [#allocation4], 1
    %16 = vsyncpa %s15, 0
    %17 = vsyncpa [#allocation7], 0
    %18 = vsyncpa [#allocation10], 0
    %19 = vsyncpa [#allocation13], 0
    %20 = vsyncpa [#allocation5], 0
    %s21 = scalar_lea.sflag [#allocation5], 1
    %22 = vsyncpa %s21, 0
    loop: start=0, step=1, limit=4
    $region2: #{tpu_custom_call.1} parent=1 // loop_pre_header
      _
    $region3: #{tpu_custom_call.1} parent=1 // loop_header
      %s24 = sphi 0, %s28
      %p25 = scmp.ge.s32.totalorder %s24, 4
      %s32 = sphi 0, %s32
      %s34 = sphi 0, %s32
      %s35 = sphi 0, %s34
      %s49 = sphi 0, %s35
      %s55 = sphi 0, %s57
      %s58 = sphi 0, %s55
      %s59 = sphi 0, %s58
      %s75 = sphi 0, %s59
      %s79 = sphi 0, %s79
      %s81 = sphi 0, %s79
      %s82 = sphi 0, %s81
      %s96 = sphi 0, %s82
      %s100 = sphi 0, %s100
      %s102 = sphi 0, %s100
      %s103 = sphi 0, %s102
      %s117 = sphi 0, %s103
      %s121 = sphi 0, %s121
      %s123 = sphi 0, %s121
      %s124 = sphi 0, %s123
      %s138 = sphi 0, %s124
      %s142 = sphi 0, %s142
      %s144 = sphi 0, %s142
      %s145 = sphi 0, %s144
      %s159 = sphi 0, %s145
      %s163 = sphi 0, %s163
      %s165 = sphi 0, %s163
      %s166 = sphi 0, %s165
      %s180 = sphi 0, %s166
      %s184 = sphi 0, %s184
      %s186 = sphi 0, %s184
      %s187 = sphi 0, %s186
      %s201 = sphi 0, %s187
      %s207 = sphi 0, %s209
      %s210 = sphi 0, %s207
      %s211 = sphi 0, %s210
      %s227 = sphi 0, %s211
    $region4: #{tpu_custom_call.1} parent=1 // loop_header_branch
      %27 = sbr.rel (%p25) target = $region8
    $region5: #{tpu_custom_call.1} parent=1 // loop_body
      %s29 = ssub.s32 %s24, 1
      %s30 = ssub.s32 %s24, 2
      %s31 = sadd.s32 %s24, 1
      %s33 = sadd.s32 %s32, 1
      %p36 = scmp.eq.s32.totalorder %s24, 1
      %p37 = scmp.ne.s32.totalorder %s32, %s34
      %p38 = scmp.eq.s32.totalorder %s24, 0
      %p39 = por %p37, %p38
      %p40 = scmp.ne.s32.totalorder %s32, %s34
      %p41 = scmp.eq.s32.totalorder %s29, 1
      %p42 = por %p40, %p41
      %p43 = scmp.ne.s32.totalorder %s34, %s35
      %p44 = scmp.eq.s32.totalorder %s29, 0
      %p45 = por %p43, %p44
      %p46 = scmp.ne.s32.totalorder %s34, %s35
      %p47 = scmp.eq.s32.totalorder %s30, 1
      %p48 = por %p46, %p47
      %p50 = scmp.ne.s32.totalorder %s35, %s49
      %p51 = scmp.eq.s32.totalorder %s30, 0
      %p52 = por %p50, %p51
      %s53 = ssub.s32 %s24, %s31
      %p54 = scmp.eq.s32.totalorder %s53, 0
      %s56 = sadd.s32 %s55, 1
      %s57 = scalar_select %p54, %s55, %s56
      %p60 = pneg %p54
      %p61 = scmp.eq.s32.totalorder %s24, 1
      %p62 = por %p60, %p61
      %p63 = scmp.ne.s32.totalorder %s55, %s58
      %p64 = scmp.eq.s32.totalorder %s24, 0
      %p65 = por %p63, %p64
      %p66 = scmp.ne.s32.totalorder %s55, %s58
      %p67 = scmp.eq.s32.totalorder %s29, 1
      %p68 = por %p66, %p67
      %p69 = scmp.ne.s32.totalorder %s58, %s59
      %p70 = scmp.eq.s32.totalorder %s29, 0
      %p71 = por %p69, %p70
      %p72 = scmp.ne.s32.totalorder %s58, %s59
      %p73 = scmp.eq.s32.totalorder %s30, 1
      %p74 = por %p72, %p73
      %p76 = scmp.ne.s32.totalorder %s59, %s75
      %p77 = scmp.eq.s32.totalorder %s30, 0
      %p78 = por %p76, %p77
      %s80 = sadd.s32 %s79, 1
      %p83 = scmp.eq.s32.totalorder %s24, 1
      %p84 = scmp.ne.s32.totalorder %s79, %s81
      %p85 = scmp.eq.s32.totalorder %s24, 0
      %p86 = por %p84, %p85
      %p87 = scmp.ne.s32.totalorder %s79, %s81
      %p88 = scmp.eq.s32.totalorder %s29, 1
      %p89 = por %p87, %p88
      %p90 = scmp.ne.s32.totalorder %s81, %s82
      %p91 = scmp.eq.s32.totalorder %s29, 0
      %p92 = por %p90, %p91
      %p93 = scmp.ne.s32.totalorder %s81, %s82
      %p94 = scmp.eq.s32.totalorder %s30, 1
      %p95 = por %p93, %p94
      %p97 = scmp.ne.s32.totalorder %s82, %s96
      %p98 = scmp.eq.s32.totalorder %s30, 0
      %p99 = por %p97, %p98
      %s101 = sadd.s32 %s100, 1
      %p104 = scmp.eq.s32.totalorder %s24, 1
      %p105 = scmp.ne.s32.totalorder %s100, %s102
      %p106 = scmp.eq.s32.totalorder %s24, 0
      %p107 = por %p105, %p106
      %p108 = scmp.ne.s32.totalorder %s100, %s102
      %p109 = scmp.eq.s32.totalorder %s29, 1
      %p110 = por %p108, %p109
      %p111 = scmp.ne.s32.totalorder %s102, %s103
      %p112 = scmp.eq.s32.totalorder %s29, 0
      %p113 = por %p111, %p112
      %p114 = scmp.ne.s32.totalorder %s102, %s103
      %p115 = scmp.eq.s32.totalorder %s30, 1
      %p116 = por %p114, %p115
      %p118 = scmp.ne.s32.totalorder %s103, %s117
      %p119 = scmp.eq.s32.totalorder %s30, 0
      %p120 = por %p118, %p119
      %s122 = sadd.s32 %s121, 1
      %p125 = scmp.eq.s32.totalorder %s24, 1
      %p126 = scmp.ne.s32.totalorder %s121, %s123
      %p127 = scmp.eq.s32.totalorder %s24, 0
      %p128 = por %p126, %p127
      %p129 = scmp.ne.s32.totalorder %s121, %s123
      %p130 = scmp.eq.s32.totalorder %s29, 1
      %p131 = por %p129, %p130
      %p132 = scmp.ne.s32.totalorder %s123, %s124
      %p133 = scmp.eq.s32.totalorder %s29, 0
      %p134 = por %p132, %p133
      %p135 = scmp.ne.s32.totalorder %s123, %s124
      %p136 = scmp.eq.s32.totalorder %s30, 1
      %p137 = por %p135, %p136
      %p139 = scmp.ne.s32.totalorder %s124, %s138
      %p140 = scmp.eq.s32.totalorder %s30, 0
      %p141 = por %p139, %p140
      %s143 = sadd.s32 %s142, 1
      %p146 = scmp.eq.s32.totalorder %s24, 1
      %p147 = scmp.ne.s32.totalorder %s142, %s144
      %p148 = scmp.eq.s32.totalorder %s24, 0
      %p149 = por %p147, %p148
      %p150 = scmp.ne.s32.totalorder %s142, %s144
      %p151 = scmp.eq.s32.totalorder %s29, 1
      %p152 = por %p150, %p151
      %p153 = scmp.ne.s32.totalorder %s144, %s145
      %p154 = scmp.eq.s32.totalorder %s29, 0
      %p155 = por %p153, %p154
      %p156 = scmp.ne.s32.totalorder %s144, %s145
      %p157 = scmp.eq.s32.totalorder %s30, 1
      %p158 = por %p156, %p157
      %p160 = scmp.ne.s32.totalorder %s145, %s159
      %p161 = scmp.eq.s32.totalorder %s30, 0
      %p162 = por %p160, %p161
      %s164 = sadd.s32 %s163, 1
      %p167 = scmp.eq.s32.totalorder %s24, 1
      %p168 = scmp.ne.s32.totalorder %s163, %s165
      %p169 = scmp.eq.s32.totalorder %s24, 0
      %p170 = por %p168, %p169
      %p171 = scmp.ne.s32.totalorder %s163, %s165
      %p172 = scmp.eq.s32.totalorder %s29, 1
      %p173 = por %p171, %p172
      %p174 = scmp.ne.s32.totalorder %s165, %s166
      %p175 = scmp.eq.s32.totalorder %s29, 0
      %p176 = por %p174, %p175
      %p177 = scmp.ne.s32.totalorder %s165, %s166
      %p178 = scmp.eq.s32.totalorder %s30, 1
      %p179 = por %p177, %p178
      %p181 = scmp.ne.s32.totalorder %s166, %s180
      %p182 = scmp.eq.s32.totalorder %s30, 0
      %p183 = por %p181, %p182
      %s185 = sadd.s32 %s184, 1
      %p188 = scmp.eq.s32.totalorder %s24, 1
      %p189 = scmp.ne.s32.totalorder %s184, %s186
      %p190 = scmp.eq.s32.totalorder %s24, 0
      %p191 = por %p189, %p190
      %p192 = scmp.ne.s32.totalorder %s184, %s186
      %p193 = scmp.eq.s32.totalorder %s29, 1
      %p194 = por %p192, %p193
      %p195 = scmp.ne.s32.totalorder %s186, %s187
      %p196 = scmp.eq.s32.totalorder %s29, 0
      %p197 = por %p195, %p196
      %p198 = scmp.ne.s32.totalorder %s186, %s187
      %p199 = scmp.eq.s32.totalorder %s30, 1
      %p200 = por %p198, %p199
      %p202 = scmp.ne.s32.totalorder %s187, %s201
      %p203 = scmp.eq.s32.totalorder %s30, 0
      %p204 = por %p202, %p203
      %s205 = ssub.s32 %s24, %s31
      %p206 = scmp.eq.s32.totalorder %s205, 0
      %s208 = sadd.s32 %s207, 1
      %s209 = scalar_select %p206, %s207, %s208
      %p212 = pneg %p206
      %p213 = scmp.eq.s32.totalorder %s24, 1
      %p214 = por %p212, %p213
      %p215 = scmp.ne.s32.totalorder %s207, %s210
      %p216 = scmp.eq.s32.totalorder %s24, 0
      %p217 = por %p215, %p216
      %p218 = scmp.ne.s32.totalorder %s207, %s210
      %p219 = scmp.eq.s32.totalorder %s29, 1
      %p220 = por %p218, %p219
      %p221 = scmp.ne.s32.totalorder %s210, %s211
      %p222 = scmp.eq.s32.totalorder %s29, 0
      %p223 = por %p221, %p222
      %p224 = scmp.ne.s32.totalorder %s210, %s211
      %p225 = scmp.eq.s32.totalorder %s30, 1
      %p226 = por %p224, %p225
      %p228 = scmp.ne.s32.totalorder %s211, %s227
      %p229 = scmp.eq.s32.totalorder %s30, 0
      %p230 = por %p228, %p229
      %p231 = scmp.le.s32.totalorder 1, %s24
      %p232 = scmp.lt.s32.totalorder %s24, 3
      %p233 = pnand %p231, %p232
      %p234 = pneg %p233
      // Predicated region
      $region9: #{tpu_custom_call.1} parent=5 // pred_check
        _
      $region10: #{tpu_custom_call.1} parent=5 // pred_check_branch
        %236 = sbr.rel (%p233) target = $region12
      $region11: #{tpu_custom_call.1} parent=5 // pred_region
        %s237 = ssub.s32 %s24, 1
        // Predicated region
        $region13: #{tpu_custom_call.1} parent=11 // pred_check
          %p238 = pneg %p45
        $region14: #{tpu_custom_call.1} parent=11 // pred_check_branch
          %240 = sbr.rel (%p238) target = $region16
        $region15: #{tpu_custom_call.1} parent=11 // pred_region
          _
        $region16: #{tpu_custom_call.1} parent=11 // pred_fallthru
          _
        // Predicated region
        $region17: #{tpu_custom_call.1} parent=11 // pred_check
          %p241 = pneg %p92
        $region18: #{tpu_custom_call.1} parent=11 // pred_check_branch
          %243 = sbr.rel (%p241) target = $region20
        $region19: #{tpu_custom_call.1} parent=11 // pred_region
          %245 = vsyncadd [#allocation7], 0
          %s246 = sshll.u32 %s2, 4
          %s247 = int_to_ptr.hbm [resolvable:$true] %s246
          %s248 = sshll.u32 [#allocation6], 4
          %s249 = int_to_ptr.vmem [resolvable:$true] %s248
          %254 = dma.hbm_to_vmem [thread:$0]  %s247, 16384, %s249, [#allocation7], 1024, 1024, 64
        $region20: #{tpu_custom_call.1} parent=11 // pred_fallthru
          _
        // Predicated region
        $region21: #{tpu_custom_call.1} parent=11 // pred_check
          %p255 = pneg %p113
        $region22: #{tpu_custom_call.1} parent=11 // pred_check_branch
          %257 = sbr.rel (%p255) target = $region24
        $region23: #{tpu_custom_call.1} parent=11 // pred_region
          %259 = vsyncadd [#allocation7], 0
          %s261 = sshll.u32 %s3, 4
          %s262 = int_to_ptr.hbm [resolvable:$true] %s261
          %s263 = sshll.u32 [#allocation8], 4
          %s264 = int_to_ptr.vmem [resolvable:$true] %s263
          %266 = dma.hbm_to_vmem [thread:$0]  %s262, 128, %s264, [#allocation7]
        $region24: #{tpu_custom_call.1} parent=11 // pred_fallthru
          _
        // Predicated region
        $region25: #{tpu_custom_call.1} parent=11 // pred_check
          %p267 = pneg %p134
        $region26: #{tpu_custom_call.1} parent=11 // pred_check_branch
          %269 = sbr.rel (%p267) target = $region28
        $region27: #{tpu_custom_call.1} parent=11 // pred_region
          %271 = vsyncadd [#allocation10], 0
          %s272 = sshll.u32 %s4, 4
          %s273 = int_to_ptr.hbm [resolvable:$true] %s272
          %s274 = sshll.u32 [#allocation9], 4
          %s275 = int_to_ptr.vmem [resolvable:$true] %s274
          %280 = dma.hbm_to_vmem [thread:$0]  %s273, 131072, %s275, [#allocation10], 1024, 1024, 64
        $region28: #{tpu_custom_call.1} parent=11 // pred_fallthru
          _
        // Predicated region
        $region29: #{tpu_custom_call.1} parent=11 // pred_check
          %p281 = pneg %p155
        $region30: #{tpu_custom_call.1} parent=11 // pred_check_branch
          %283 = sbr.rel (%p281) target = $region32
        $region31: #{tpu_custom_call.1} parent=11 // pred_region
          %285 = vsyncadd [#allocation10], 0
          %s287 = sshll.u32 %s5, 4
          %s288 = int_to_ptr.hbm [resolvable:$true] %s287
          %s289 = sshll.u32 [#allocation11], 4
          %s290 = int_to_ptr.vmem [resolvable:$true] %s289
          %292 = dma.hbm_to_vmem [thread:$0]  %s288, 128, %s290, [#allocation10]
        $region32: #{tpu_custom_call.1} parent=11 // pred_fallthru
          _
        // Predicated region
        $region33: #{tpu_custom_call.1} parent=11 // pred_check
          %p293 = pneg %p176
        $region34: #{tpu_custom_call.1} parent=11 // pred_check_branch
          %295 = sbr.rel (%p293) target = $region36
        $region35: #{tpu_custom_call.1} parent=11 // pred_region
          %297 = vsyncadd [#allocation13], 0
          %s298 = sshll.u32 %s6, 4
          %s299 = int_to_ptr.hbm [resolvable:$true] %s298
          %s300 = sshll.u32 [#allocation12], 4
          %s301 = int_to_ptr.vmem [resolvable:$true] %s300
          %306 = dma.hbm_to_vmem [thread:$0]  %s299, 16384, %s301, [#allocation13], 128, 128, 8
        $region36: #{tpu_custom_call.1} parent=11 // pred_fallthru
          _
        // Predicated region
        $region37: #{tpu_custom_call.1} parent=11 // pred_check
          %p307 = pneg %p197
        $region38: #{tpu_custom_call.1} parent=11 // pred_check_branch
          %309 = sbr.rel (%p307) target = $region40
        $region39: #{tpu_custom_call.1} parent=11 // pred_region
          %311 = vsyncadd [#allocation13], 0
          %s313 = sshll.u32 %s7, 4
          %s314 = int_to_ptr.hbm [resolvable:$true] %s313
          %s315 = sshll.u32 [#allocation14], 4
          %s316 = int_to_ptr.vmem [resolvable:$true] %s315
          %318 = dma.hbm_to_vmem [thread:$0]  %s314, 16, %s316, [#allocation13]
        $region40: #{tpu_custom_call.1} parent=11 // pred_fallthru
          _
      $region12: #{tpu_custom_call.1} parent=5 // pred_fallthru
        _
      %p319 = scmp.lt.s32.totalorder %s24, 2
      // Predicated region
      $region41: #{tpu_custom_call.1} parent=5 // pred_check
        %p320 = pneg %p319
      $region42: #{tpu_custom_call.1} parent=5 // pred_check_branch
        %322 = sbr.rel (%p320) target = $region44
      $region43: #{tpu_custom_call.1} parent=5 // pred_region
        // Predicated region
        $region45: #{tpu_custom_call.1} parent=43 // pred_check
          %p323 = pneg %p65
        $region46: #{tpu_custom_call.1} parent=43 // pred_check_branch
          %325 = sbr.rel (%p323) target = $region48
        $region47: #{tpu_custom_call.1} parent=43 // pred_region
          %s326 = sand.u32 %s55, 1
          %s327 = scalar_lea.sflag [#allocation4], %s326
          %s328 = sand.u32 %s55, 1
          %s329 = smul.addr %s328, 16
          %s330 = scalar_lea.vmem [#allocation3], %s329
          %s331 = smul.u32 2, %s24
          %333 = vsyncadd %s327, 0
          %s334 = smul.addr %s331, 8
          %s335 = scalar_lea.hbm %s1, %s334
          %s336 = sshll.u32 %s335, 4
          %s337 = int_to_ptr.hbm [resolvable:$true] %s336
          %s338 = sshll.u32 %s330, 4
          %s339 = int_to_ptr.vmem [resolvable:$true] %s338
          %344 = dma.hbm_to_vmem [thread:$0]  %s337, 256, %s339, %s327, 128, 128, 8
        $region48: #{tpu_custom_call.1} parent=43 // pred_fallthru
          _
      $region44: #{tpu_custom_call.1} parent=5 // pred_fallthru
        _
      %p345 = scmp.le.s32.totalorder 1, %s24
      %p346 = scmp.lt.s32.totalorder %s24, 3
      %p347 = pnand %p345, %p346
      %p348 = pneg %p347
      // Predicated region
      $region49: #{tpu_custom_call.1} parent=5 // pred_check
        _
      $region50: #{tpu_custom_call.1} parent=5 // pred_check_branch
        %350 = sbr.rel (%p347) target = $region52
      $region51: #{tpu_custom_call.1} parent=5 // pred_region
        %s351 = ssub.s32 %s24, 1
        %s352 = sand.u32 %s58, 1
        %s353 = scalar_lea.sflag [#allocation4], %s352
        %s354 = sand.u32 %s58, 1
        %s355 = smul.addr %s354, 16
        %s356 = scalar_lea.vmem [#allocation3], %s355
        // Predicated region
        $region53: #{tpu_custom_call.1} parent=51 // pred_check
          %p357 = pneg %p71
        $region54: #{tpu_custom_call.1} parent=51 // pred_check_branch
          %359 = sbr.rel (%p357) target = $region56
        $region55: #{tpu_custom_call.1} parent=51 // pred_region
          %361 = dma.done %s353, 256
        $region56: #{tpu_custom_call.1} parent=51 // pred_fallthru
          _
        // Predicated region
        $region57: #{tpu_custom_call.1} parent=51 // pred_check
          %p362 = pneg %p92
        $region58: #{tpu_custom_call.1} parent=51 // pred_check_branch
          %364 = sbr.rel (%p362) target = $region60
        $region59: #{tpu_custom_call.1} parent=51 // pred_region
          %366 = dma.done [#allocation7], 16384
        $region60: #{tpu_custom_call.1} parent=51 // pred_fallthru
          _
        // Predicated region
        $region61: #{tpu_custom_call.1} parent=51 // pred_check
          %p367 = pneg %p113
        $region62: #{tpu_custom_call.1} parent=51 // pred_check_branch
          %369 = sbr.rel (%p367) target = $region64
        $region63: #{tpu_custom_call.1} parent=51 // pred_region
          %371 = dma.done [#allocation7], 128
        $region64: #{tpu_custom_call.1} parent=51 // pred_fallthru
          _
        // Predicated region
        $region65: #{tpu_custom_call.1} parent=51 // pred_check
          %p372 = pneg %p134
        $region66: #{tpu_custom_call.1} parent=51 // pred_check_branch
          %374 = sbr.rel (%p372) target = $region68
        $region67: #{tpu_custom_call.1} parent=51 // pred_region
          %376 = dma.done [#allocation10], 131072
        $region68: #{tpu_custom_call.1} parent=51 // pred_fallthru
          _
        // Predicated region
        $region69: #{tpu_custom_call.1} parent=51 // pred_check
          %p377 = pneg %p155
        $region70: #{tpu_custom_call.1} parent=51 // pred_check_branch
          %379 = sbr.rel (%p377) target = $region72
        $region71: #{tpu_custom_call.1} parent=51 // pred_region
          %381 = dma.done [#allocation10], 128
        $region72: #{tpu_custom_call.1} parent=51 // pred_fallthru
          _
        // Predicated region
        $region73: #{tpu_custom_call.1} parent=51 // pred_check
          %p382 = pneg %p176
        $region74: #{tpu_custom_call.1} parent=51 // pred_check_branch
          %384 = sbr.rel (%p382) target = $region76
        $region75: #{tpu_custom_call.1} parent=51 // pred_region
          %386 = dma.done [#allocation13], 16384
        $region76: #{tpu_custom_call.1} parent=51 // pred_fallthru
          _
        // Predicated region
        $region77: #{tpu_custom_call.1} parent=51 // pred_check
          %p387 = pneg %p197
        $region78: #{tpu_custom_call.1} parent=51 // pred_check_branch
          %389 = sbr.rel (%p387) target = $region80
        $region79: #{tpu_custom_call.1} parent=51 // pred_region
          %391 = dma.done [#allocation13], 16
        $region80: #{tpu_custom_call.1} parent=51 // pred_fallthru
          _
        %p392 = pneg %p45
        %p393 = pneg %p42
        %s394 = sand.u32 %s58, 1
        %s395 = scalar_lea.sflag [#allocation4], %s394
        %s396 = sand.u32 %s58, 1
        %s397 = smul.addr %s396, 16
        %s398 = scalar_lea.vmem [#allocation3], %s397
        %p399 = pneg %p71
        %p400 = pneg %p68
        %p401 = pneg %p92
        %p402 = pneg %p89
        %p403 = pneg %p113
        %p404 = pneg %p110
        %p405 = pneg %p134
        %p406 = pneg %p131
        %p407 = pneg %p155
        %p408 = pneg %p152
        %p409 = pneg %p176
        %p410 = pneg %p173
        %p411 = pneg %p197
        %p412 = pneg %p194
        %p413 = pneg %p223
        %p414 = pneg %p220
        %s415 = sand.u32 %s210, 1
        %s416 = scalar_lea.sflag [#allocation5], %s415
        %s417 = sand.u32 %s210, 1
        %s418 = smul.addr %s417, 16
        %s419 = scalar_lea.vmem [#allocation15], %s418
        %s420 = smul.u32 2, %s29
        %s421 = smul.u32 2, %s29
        %s422 = sld [smem:[#allocation2]]
        %v423 = vld [vmem:[%s356] sm:$0xff]
        %v424 = vld [vmem:[%s356 + $0x8] sm:$0xff]
        %v425 = vld [vmem:[#allocation6] sm:$0xff]
        %v426 = vld [vmem:[#allocation6 + $0x8] sm:$0xff]
        %v427 = vld [vmem:[#allocation6 + $0x10] sm:$0xff]
        %v428 = vld [vmem:[#allocation6 + $0x18] sm:$0xff]
        %v429 = vld [vmem:[#allocation6 + $0x20] sm:$0xff]
        %v430 = vld [vmem:[#allocation6 + $0x28] sm:$0xff]
        %v431 = vld [vmem:[#allocation6 + $0x30] sm:$0xff]
        %v432 = vld [vmem:[#allocation6 + $0x38] sm:$0xff]
        %v433 = vld [vmem:[#allocation6 + $0x40] sm:$0xff]
        %v434 = vld [vmem:[#allocation6 + $0x48] sm:$0xff]
        %v435 = vld [vmem:[#allocation6 + $0x50] sm:$0xff]
        %v436 = vld [vmem:[#allocation6 + $0x58] sm:$0xff]
        %v437 = vld [vmem:[#allocation6 + $0x60] sm:$0xff]
        %v438 = vld [vmem:[#allocation6 + $0x68] sm:$0xff]
        %v439 = vld [vmem:[#allocation6 + $0x70] sm:$0xff]
        %v440 = vld [vmem:[#allocation6 + $0x78] sm:$0xff]
        %v441 = vld [vmem:[#allocation6 + $0x80] sm:$0xff]
        %v442 = vld [vmem:[#allocation6 + $0x88] sm:$0xff]
        %v443 = vld [vmem:[#allocation6 + $0x90] sm:$0xff]
        %v444 = vld [vmem:[#allocation6 + $0x98] sm:$0xff]
        %v445 = vld [vmem:[#allocation6 + $0xa0] sm:$0xff]
        %v446 = vld [vmem:[#allocation6 + $0xa8] sm:$0xff]
        %v447 = vld [vmem:[#allocation6 + $0xb0] sm:$0xff]
        %v448 = vld [vmem:[#allocation6 + $0xb8] sm:$0xff]
        %v449 = vld [vmem:[#allocation6 + $0xc0] sm:$0xff]
        %v450 = vld [vmem:[#allocation6 + $0xc8] sm:$0xff]
        %v451 = vld [vmem:[#allocation6 + $0xd0] sm:$0xff]
        %v452 = vld [vmem:[#allocation6 + $0xd8] sm:$0xff]
        %v453 = vld [vmem:[#allocation6 + $0xe0] sm:$0xff]
        %v454 = vld [vmem:[#allocation6 + $0xe8] sm:$0xff]
        %v455 = vld [vmem:[#allocation6 + $0xf0] sm:$0xff]
        %v456 = vld [vmem:[#allocation6 + $0xf8] sm:$0xff]
        %v457 = vld [vmem:[#allocation6 + $0x100] sm:$0xff]
        %v458 = vld [vmem:[#allocation6 + $0x108] sm:$0xff]
        %v459 = vld [vmem:[#allocation6 + $0x110] sm:$0xff]
        %v460 = vld [vmem:[#allocation6 + $0x118] sm:$0xff]
        %v461 = vld [vmem:[#allocation6 + $0x120] sm:$0xff]
        %v462 = vld [vmem:[#allocation6 + $0x128] sm:$0xff]
        %v463 = vld [vmem:[#allocation6 + $0x130] sm:$0xff]
        %v464 = vld [vmem:[#allocation6 + $0x138] sm:$0xff]
        %v465 = vld [vmem:[#allocation6 + $0x140] sm:$0xff]
        %v466 = vld [vmem:[#allocation6 + $0x148] sm:$0xff]
        %v467 = vld [vmem:[#allocation6 + $0x150] sm:$0xff]
        %v468 = vld [vmem:[#allocation6 + $0x158] sm:$0xff]
        %v469 = vld [vmem:[#allocation6 + $0x160] sm:$0xff]
        %v470 = vld [vmem:[#allocation6 + $0x168] sm:$0xff]
        %v471 = vld [vmem:[#allocation6 + $0x170] sm:$0xff]
        %v472 = vld [vmem:[#allocation6 + $0x178] sm:$0xff]
        %v473 = vld [vmem:[#allocation6 + $0x180] sm:$0xff]
        %v474 = vld [vmem:[#allocation6 + $0x188] sm:$0xff]
        %v475 = vld [vmem:[#allocation6 + $0x190] sm:$0xff]
        %v476 = vld [vmem:[#allocation6 + $0x198] sm:$0xff]
        %v477 = vld [vmem:[#allocation6 + $0x1a0] sm:$0xff]
        %v478 = vld [vmem:[#allocation6 + $0x1a8] sm:$0xff]
        %v479 = vld [vmem:[#allocation6 + $0x1b0] sm:$0xff]
        %v480 = vld [vmem:[#allocation6 + $0x1b8] sm:$0xff]
        %v481 = vld [vmem:[#allocation6 + $0x1c0] sm:$0xff]
        %v482 = vld [vmem:[#allocation6 + $0x1c8] sm:$0xff]
        %v483 = vld [vmem:[#allocation6 + $0x1d0] sm:$0xff]
        %v484 = vld [vmem:[#allocation6 + $0x1d8] sm:$0xff]
        %v485 = vld [vmem:[#allocation6 + $0x1e0] sm:$0xff]
        %v486 = vld [vmem:[#allocation6 + $0x1e8] sm:$0xff]
        %v487 = vld [vmem:[#allocation6 + $0x1f0] sm:$0xff]
        %v488 = vld [vmem:[#allocation6 + $0x1f8] sm:$0xff]
        %v489 = vld [vmem:[#allocation6 + $0x200] sm:$0xff]
        %v490 = vld [vmem:[#allocation6 + $0x208] sm:$0xff]
        %v491 = vld [vmem:[#allocation6 + $0x210] sm:$0xff]
        %v492 = vld [vmem:[#allocation6 + $0x218] sm:$0xff]
        %v493 = vld [vmem:[#allocation6 + $0x220] sm:$0xff]
        %v494 = vld [vmem:[#allocation6 + $0x228] sm:$0xff]
        %v495 = vld [vmem:[#allocation6 + $0x230] sm:$0xff]
        %v496 = vld [vmem:[#allocation6 + $0x238] sm:$0xff]
        %v497 = vld [vmem:[#allocation6 + $0x240] sm:$0xff]
        %v498 = vld [vmem:[#allocation6 + $0x248] sm:$0xff]
        %v499 = vld [vmem:[#allocation6 + $0x250] sm:$0xff]
        %v500 = vld [vmem:[#allocation6 + $0x258] sm:$0xff]
        %v501 = vld [vmem:[#allocation6 + $0x260] sm:$0xff]
        %v502 = vld [vmem:[#allocation6 + $0x268] sm:$0xff]
        %v503 = vld [vmem:[#allocation6 + $0x270] sm:$0xff]
        %v504 = vld [vmem:[#allocation6 + $0x278] sm:$0xff]
        %v505 = vld [vmem:[#allocation6 + $0x280] sm:$0xff]
        %v506 = vld [vmem:[#allocation6 + $0x288] sm:$0xff]
        %v507 = vld [vmem:[#allocation6 + $0x290] sm:$0xff]
        %v508 = vld [vmem:[#allocation6 + $0x298] sm:$0xff]
        %v509 = vld [vmem:[#allocation6 + $0x2a0] sm:$0xff]
        %v510 = vld [vmem:[#allocation6 + $0x2a8] sm:$0xff]
        %v511 = vld [vmem:[#allocation6 + $0x2b0] sm:$0xff]
        %v512 = vld [vmem:[#allocation6 + $0x2b8] sm:$0xff]
        %v513 = vld [vmem:[#allocation6 + $0x2c0] sm:$0xff]
        %v514 = vld [vmem:[#allocation6 + $0x2c8] sm:$0xff]
        %v515 = vld [vmem:[#allocation6 + $0x2d0] sm:$0xff]
        %v516 = vld [vmem:[#allocation6 + $0x2d8] sm:$0xff]
        %v517 = vld [vmem:[#allocation6 + $0x2e0] sm:$0xff]
        %v518 = vld [vmem:[#allocation6 + $0x2e8] sm:$0xff]
        %v519 = vld [vmem:[#allocation6 + $0x2f0] sm:$0xff]
        %v520 = vld [vmem:[#allocation6 + $0x2f8] sm:$0xff]
        %v521 = vld [vmem:[#allocation6 + $0x300] sm:$0xff]
        %v522 = vld [vmem:[#allocation6 + $0x308] sm:$0xff]
        %v523 = vld [vmem:[#allocation6 + $0x310] sm:$0xff]
        %v524 = vld [vmem:[#allocation6 + $0x318] sm:$0xff]
        %v525 = vld [vmem:[#allocation6 + $0x320] sm:$0xff]
        %v526 = vld [vmem:[#allocation6 + $0x328] sm:$0xff]
        %v527 = vld [vmem:[#allocation6 + $0x330] sm:$0xff]
        %v528 = vld [vmem:[#allocation6 + $0x338] sm:$0xff]
        %v529 = vld [vmem:[#allocation6 + $0x340] sm:$0xff]
        %v530 = vld [vmem:[#allocation6 + $0x348] sm:$0xff]
        %v531 = vld [vmem:[#allocation6 + $0x350] sm:$0xff]
        %v532 = vld [vmem:[#allocation6 + $0x358] sm:$0xff]
        %v533 = vld [vmem:[#allocation6 + $0x360] sm:$0xff]
        %v534 = vld [vmem:[#allocation6 + $0x368] sm:$0xff]
        %v535 = vld [vmem:[#allocation6 + $0x370] sm:$0xff]
        %v536 = vld [vmem:[#allocation6 + $0x378] sm:$0xff]
        %v537 = vld [vmem:[#allocation6 + $0x380] sm:$0xff]
        %v538 = vld [vmem:[#allocation6 + $0x388] sm:$0xff]
        %v539 = vld [vmem:[#allocation6 + $0x390] sm:$0xff]
        %v540 = vld [vmem:[#allocation6 + $0x398] sm:$0xff]
        %v541 = vld [vmem:[#allocation6 + $0x3a0] sm:$0xff]
        %v542 = vld [vmem:[#allocation6 + $0x3a8] sm:$0xff]
        %v543 = vld [vmem:[#allocation6 + $0x3b0] sm:$0xff]
        %v544 = vld [vmem:[#allocation6 + $0x3b8] sm:$0xff]
        %v545 = vld [vmem:[#allocation6 + $0x3c0] sm:$0xff]
        %v546 = vld [vmem:[#allocation6 + $0x3c8] sm:$0xff]
        %v547 = vld [vmem:[#allocation6 + $0x3d0] sm:$0xff]
        %v548 = vld [vmem:[#allocation6 + $0x3d8] sm:$0xff]
        %v549 = vld [vmem:[#allocation6 + $0x3e0] sm:$0xff]
        %v550 = vld [vmem:[#allocation6 + $0x3e8] sm:$0xff]
        %v551 = vld [vmem:[#allocation6 + $0x3f0] sm:$0xff]
        %v552 = vld [vmem:[#allocation6 + $0x3f8] sm:$0xff]
        %v553 = vld [vmem:[#allocation8] sm:$0xff]
        %v555 = vperm.slane %v553, 0
        %v556 = vperm.slane %v553, 1
        %v557 = vperm.slane %v553, 2
        %v558 = vperm.slane %v553, 3
        %v559 = vperm.slane %v553, 4
        %v560 = vperm.slane %v553, 5
        %v561 = vperm.slane %v553, 6
        %v562 = vperm.slane %v553, 7
        %571 = vmatpush.msra.mxu0 %v545
        %572 = vmatpush.msra.mxu0 %v537
        %573 = vmatpush.msra.mxu0 %v529
        %574 = vmatpush.msra.mxu0 %v521
        %575 = vmatpush.msra.mxu0 %v513
        %576 = vmatpush.msra.mxu0 %v505
        %577 = vmatpush.msra.mxu0 %v497
        %578 = vmatpush.msra.mxu0 %v489
        %579 = vmatpush.msra.mxu0 %v481
        %580 = vmatpush.msra.mxu0 %v473
        %581 = vmatpush.msra.mxu0 %v465
        %582 = vmatpush.msra.mxu0 %v457
        %583 = vmatpush.msra.mxu0 %v449
        %584 = vmatpush.msra.mxu0 %v441
        %585 = vmatpush.msra.mxu0 %v433
        %586 = vmatpush.msra.mxu0 %v425
        %587 = vmatmul.f32.gmra.mxu0 %v423
        %v588 = vpop.f32.mrf.mxu0
        %v589 = vadd.f32 %v555, %v588
        %590 = vmatmul.f32.gmra.mxu0 %v424
        %v591 = vpop.f32.mrf.mxu0
        %v592 = vadd.f32 %v555, %v591
        %593 = vdwg.mxu0
        %594 = vmatpush.msra.mxu0 %v546
        %595 = vmatpush.msra.mxu0 %v538
        %596 = vmatpush.msra.mxu0 %v530
        %597 = vmatpush.msra.mxu0 %v522
        %598 = vmatpush.msra.mxu0 %v514
        %599 = vmatpush.msra.mxu0 %v506
        %600 = vmatpush.msra.mxu0 %v498
        %601 = vmatpush.msra.mxu0 %v490
        %602 = vmatpush.msra.mxu0 %v482
        %603 = vmatpush.msra.mxu0 %v474
        %604 = vmatpush.msra.mxu0 %v466
        %605 = vmatpush.msra.mxu0 %v458
        %606 = vmatpush.msra.mxu0 %v450
        %607 = vmatpush.msra.mxu0 %v442
        %608 = vmatpush.msra.mxu0 %v434
        %609 = vmatpush.msra.mxu0 %v426
        %610 = vmatmul.f32.gmra.mxu0 %v423
        %v611 = vpop.f32.mrf.mxu0
        %v612 = vadd.f32 %v556, %v611
        %613 = vmatmul.f32.gmra.mxu0 %v424
        %v614 = vpop.f32.mrf.mxu0
        %v615 = vadd.f32 %v556, %v614
        %616 = vdwg.mxu0
        %617 = vmatpush.msra.mxu0 %v547
        %618 = vmatpush.msra.mxu0 %v539
        %619 = vmatpush.msra.mxu0 %v531
        %620 = vmatpush.msra.mxu0 %v523
        %621 = vmatpush.msra.mxu0 %v515
        %622 = vmatpush.msra.mxu0 %v507
        %623 = vmatpush.msra.mxu0 %v499
        %624 = vmatpush.msra.mxu0 %v491
        %625 = vmatpush.msra.mxu0 %v483
        %626 = vmatpush.msra.mxu0 %v475
        %627 = vmatpush.msra.mxu0 %v467
        %628 = vmatpush.msra.mxu0 %v459
        %629 = vmatpush.msra.mxu0 %v451
        %630 = vmatpush.msra.mxu0 %v443
        %631 = vmatpush.msra.mxu0 %v435
        %632 = vmatpush.msra.mxu0 %v427
        %633 = vmatmul.f32.gmra.mxu0 %v423
        %v634 = vpop.f32.mrf.mxu0
        %v635 = vadd.f32 %v557, %v634
        %636 = vmatmul.f32.gmra.mxu0 %v424
        %v637 = vpop.f32.mrf.mxu0
        %v638 = vadd.f32 %v557, %v637
        %639 = vdwg.mxu0
        %640 = vmatpush.msra.mxu0 %v548
        %641 = vmatpush.msra.mxu0 %v540
        %642 = vmatpush.msra.mxu0 %v532
        %643 = vmatpush.msra.mxu0 %v524
        %644 = vmatpush.msra.mxu0 %v516
        %645 = vmatpush.msra.mxu0 %v508
        %646 = vmatpush.msra.mxu0 %v500
        %647 = vmatpush.msra.mxu0 %v492
        %648 = vmatpush.msra.mxu0 %v484
        %649 = vmatpush.msra.mxu0 %v476
        %650 = vmatpush.msra.mxu0 %v468
        %651 = vmatpush.msra.mxu0 %v460
        %652 = vmatpush.msra.mxu0 %v452
        %653 = vmatpush.msra.mxu0 %v444
        %654 = vmatpush.msra.mxu0 %v436
        %655 = vmatpush.msra.mxu0 %v428
        %656 = vmatmul.f32.gmra.mxu0 %v423
        %v657 = vpop.f32.mrf.mxu0
        %v658 = vadd.f32 %v558, %v657
        %659 = vmatmul.f32.gmra.mxu0 %v424
        %v660 = vpop.f32.mrf.mxu0
        %v661 = vadd.f32 %v558, %v660
        %662 = vdwg.mxu0
        %663 = vmatpush.msra.mxu0 %v549
        %664 = vmatpush.msra.mxu0 %v541
        %665 = vmatpush.msra.mxu0 %v533
        %666 = vmatpush.msra.mxu0 %v525
        %667 = vmatpush.msra.mxu0 %v517
        %668 = vmatpush.msra.mxu0 %v509
        %669 = vmatpush.msra.mxu0 %v501
        %670 = vmatpush.msra.mxu0 %v493
        %671 = vmatpush.msra.mxu0 %v485
        %672 = vmatpush.msra.mxu0 %v477
        %673 = vmatpush.msra.mxu0 %v469
        %674 = vmatpush.msra.mxu0 %v461
        %675 = vmatpush.msra.mxu0 %v453
        %676 = vmatpush.msra.mxu0 %v445
        %677 = vmatpush.msra.mxu0 %v437
        %678 = vmatpush.msra.mxu0 %v429
        %679 = vmatmul.f32.gmra.mxu0 %v423
        %v680 = vpop.f32.mrf.mxu0
        %v681 = vadd.f32 %v559, %v680
        %682 = vmatmul.f32.gmra.mxu0 %v424
        %v683 = vpop.f32.mrf.mxu0
        %v684 = vadd.f32 %v559, %v683
        %685 = vdwg.mxu0
        %686 = vmatpush.msra.mxu0 %v550
        %687 = vmatpush.msra.mxu0 %v542
        %688 = vmatpush.msra.mxu0 %v534
        %689 = vmatpush.msra.mxu0 %v526
        %690 = vmatpush.msra.mxu0 %v518
        %691 = vmatpush.msra.mxu0 %v510
        %692 = vmatpush.msra.mxu0 %v502
        %693 = vmatpush.msra.mxu0 %v494
        %694 = vmatpush.msra.mxu0 %v486
        %695 = vmatpush.msra.mxu0 %v478
        %696 = vmatpush.msra.mxu0 %v470
        %697 = vmatpush.msra.mxu0 %v462
        %698 = vmatpush.msra.mxu0 %v454
        %699 = vmatpush.msra.mxu0 %v446
        %700 = vmatpush.msra.mxu0 %v438
        %701 = vmatpush.msra.mxu0 %v430
        %702 = vmatmul.f32.gmra.mxu0 %v423
        %v703 = vpop.f32.mrf.mxu0
        %v704 = vadd.f32 %v560, %v703
        %705 = vmatmul.f32.gmra.mxu0 %v424
        %v706 = vpop.f32.mrf.mxu0
        %v707 = vadd.f32 %v560, %v706
        %708 = vdwg.mxu0
        %709 = vmatpush.msra.mxu0 %v551
        %710 = vmatpush.msra.mxu0 %v543
        %711 = vmatpush.msra.mxu0 %v535
        %712 = vmatpush.msra.mxu0 %v527
        %713 = vmatpush.msra.mxu0 %v519
        %714 = vmatpush.msra.mxu0 %v511
        %715 = vmatpush.msra.mxu0 %v503
        %716 = vmatpush.msra.mxu0 %v495
        %717 = vmatpush.msra.mxu0 %v487
        %718 = vmatpush.msra.mxu0 %v479
        %719 = vmatpush.msra.mxu0 %v471
        %720 = vmatpush.msra.mxu0 %v463
        %721 = vmatpush.msra.mxu0 %v455
        %722 = vmatpush.msra.mxu0 %v447
        %723 = vmatpush.msra.mxu0 %v439
        %724 = vmatpush.msra.mxu0 %v431
        %725 = vmatmul.f32.gmra.mxu0 %v423
        %v726 = vpop.f32.mrf.mxu0
        %v727 = vadd.f32 %v561, %v726
        %728 = vmatmul.f32.gmra.mxu0 %v424
        %v729 = vpop.f32.mrf.mxu0
        %v730 = vadd.f32 %v561, %v729
        %731 = vdwg.mxu0
        %732 = vmatpush.msra.mxu0 %v552
        %733 = vmatpush.msra.mxu0 %v544
        %734 = vmatpush.msra.mxu0 %v536
        %735 = vmatpush.msra.mxu0 %v528
        %736 = vmatpush.msra.mxu0 %v520
        %737 = vmatpush.msra.mxu0 %v512
        %738 = vmatpush.msra.mxu0 %v504
        %739 = vmatpush.msra.mxu0 %v496
        %740 = vmatpush.msra.mxu0 %v488
        %741 = vmatpush.msra.mxu0 %v480
        %742 = vmatpush.msra.mxu0 %v472
        %743 = vmatpush.msra.mxu0 %v464
        %744 = vmatpush.msra.mxu0 %v456
        %745 = vmatpush.msra.mxu0 %v448
        %746 = vmatpush.msra.mxu0 %v440
        %747 = vmatpush.msra.mxu0 %v432
        %748 = vmatmul.f32.gmra.mxu0 %v423
        %v749 = vpop.f32.mrf.mxu0
        %v750 = vadd.f32 %v562, %v749
        %751 = vmatmul.f32.gmra.mxu0 %v424
        %v752 = vpop.f32.mrf.mxu0
        %v753 = vadd.f32 %v562, %v752
        %754 = vdwg.mxu0
        %v755 = vmul.f32 %v589, 0.01
        %v756 = vmul.f32 %v612, 0.01
        %v757 = vmul.f32 %v635, 0.01
        %v758 = vmul.f32 %v658, 0.01
        %v759 = vmul.f32 %v681, 0.01
        %v760 = vmul.f32 %v704, 0.01
        %v761 = vmul.f32 %v727, 0.01
        %v762 = vmul.f32 %v750, 0.01
        %v763 = vmul.f32 %v592, 0.01
        %v764 = vmul.f32 %v615, 0.01
        %v765 = vmul.f32 %v638, 0.01
        %v766 = vmul.f32 %v661, 0.01
        %v767 = vmul.f32 %v684, 0.01
        %v768 = vmul.f32 %v707, 0.01
        %v769 = vmul.f32 %v730, 0.01
        %v770 = vmul.f32 %v753, 0.01
        %v771 = vmax.f32 %v589, %v755
        %v772 = vmax.f32 %v612, %v756
        %v773 = vmax.f32 %v635, %v757
        %v774 = vmax.f32 %v658, %v758
        %v775 = vmax.f32 %v681, %v759
        %v776 = vmax.f32 %v704, %v760
        %v777 = vmax.f32 %v727, %v761
        %v778 = vmax.f32 %v750, %v762
        %v779 = vmax.f32 %v592, %v763
        %v780 = vmax.f32 %v615, %v764
        %v781 = vmax.f32 %v638, %v765
        %v782 = vmax.f32 %v661, %v766
        %v783 = vmax.f32 %v684, %v767
        %v784 = vmax.f32 %v707, %v768
        %v785 = vmax.f32 %v730, %v769
        %v786 = vmax.f32 %v753, %v770
        %v787 = vld [vmem:[#allocation9] sm:$0xff]
        %v788 = vld [vmem:[#allocation9 + $0x8] sm:$0xff]
        %v789 = vld [vmem:[#allocation9 + $0x10] sm:$0xff]
        %v790 = vld [vmem:[#allocation9 + $0x18] sm:$0xff]
        %v791 = vld [vmem:[#allocation9 + $0x20] sm:$0xff]
        %v792 = vld [vmem:[#allocation9 + $0x28] sm:$0xff]
        %v793 = vld [vmem:[#allocation9 + $0x30] sm:$0xff]
        %v794 = vld [vmem:[#allocation9 + $0x38] sm:$0xff]
        %v795 = vld [vmem:[#allocation9 + $0x40] sm:$0xff]
        %v796 = vld [vmem:[#allocation9 + $0x48] sm:$0xff]
        %v797 = vld [vmem:[#allocation9 + $0x50] sm:$0xff]
        %v798 = vld [vmem:[#allocation9 + $0x58] sm:$0xff]
        %v799 = vld [vmem:[#allocation9 + $0x60] sm:$0xff]
        %v800 = vld [vmem:[#allocation9 + $0x68] sm:$0xff]
        %v801 = vld [vmem:[#allocation9 + $0x70] sm:$0xff]
        %v802 = vld [vmem:[#allocation9 + $0x78] sm:$0xff]
        %v803 = vld [vmem:[#allocation9 + $0x80] sm:$0xff]
        %v804 = vld [vmem:[#allocation9 + $0x88] sm:$0xff]
        %v805 = vld [vmem:[#allocation9 + $0x90] sm:$0xff]
        %v806 = vld [vmem:[#allocation9 + $0x98] sm:$0xff]
        %v807 = vld [vmem:[#allocation9 + $0xa0] sm:$0xff]
        %v808 = vld [vmem:[#allocation9 + $0xa8] sm:$0xff]
        %v809 = vld [vmem:[#allocation9 + $0xb0] sm:$0xff]
        %v810 = vld [vmem:[#allocation9 + $0xb8] sm:$0xff]
        %v811 = vld [vmem:[#allocation9 + $0xc0] sm:$0xff]
        %v812 = vld [vmem:[#allocation9 + $0xc8] sm:$0xff]
        %v813 = vld [vmem:[#allocation9 + $0xd0] sm:$0xff]
        %v814 = vld [vmem:[#allocation9 + $0xd8] sm:$0xff]
        %v815 = vld [vmem:[#allocation9 + $0xe0] sm:$0xff]
        %v816 = vld [vmem:[#allocation9 + $0xe8] sm:$0xff]
        %v817 = vld [vmem:[#allocation9 + $0xf0] sm:$0xff]
        %v818 = vld [vmem:[#allocation9 + $0xf8] sm:$0xff]
        %v819 = vld [vmem:[#allocation9 + $0x100] sm:$0xff]
        %v820 = vld [vmem:[#allocation9 + $0x108] sm:$0xff]
        %v821 = vld [vmem:[#allocation9 + $0x110] sm:$0xff]
        %v822 = vld [vmem:[#allocation9 + $0x118] sm:$0xff]
        %v823 = vld [vmem:[#allocation9 + $0x120] sm:$0xff]
        %v824 = vld [vmem:[#allocation9 + $0x128] sm:$0xff]
        %v825 = vld [vmem:[#allocation9 + $0x130] sm:$0xff]
        %v826 = vld [vmem:[#allocation9 + $0x138] sm:$0xff]
        %v827 = vld [vmem:[#allocation9 + $0x140] sm:$0xff]
        %v828 = vld [vmem:[#allocation9 + $0x148] sm:$0xff]
        %v829 = vld [vmem:[#allocation9 + $0x150] sm:$0xff]
        %v830 = vld [vmem:[#allocation9 + $0x158] sm:$0xff]
        %v831 = vld [vmem:[#allocation9 + $0x160] sm:$0xff]
        %v832 = vld [vmem:[#allocation9 + $0x168] sm:$0xff]
        %v833 = vld [vmem:[#allocation9 + $0x170] sm:$0xff]
        %v834 = vld [vmem:[#allocation9 + $0x178] sm:$0xff]
        %v835 = vld [vmem:[#allocation9 + $0x180] sm:$0xff]
        %v836 = vld [vmem:[#allocation9 + $0x188] sm:$0xff]
        %v837 = vld [vmem:[#allocation9 + $0x190] sm:$0xff]
        %v838 = vld [vmem:[#allocation9 + $0x198] sm:$0xff]
        %v839 = vld [vmem:[#allocation9 + $0x1a0] sm:$0xff]
        %v840 = vld [vmem:[#allocation9 + $0x1a8] sm:$0xff]
        %v841 = vld [vmem:[#allocation9 + $0x1b0] sm:$0xff]
        %v842 = vld [vmem:[#allocation9 + $0x1b8] sm:$0xff]
        %v843 = vld [vmem:[#allocation9 + $0x1c0] sm:$0xff]
        %v844 = vld [vmem:[#allocation9 + $0x1c8] sm:$0xff]
        %v845 = vld [vmem:[#allocation9 + $0x1d0] sm:$0xff]
        %v846 = vld [vmem:[#allocation9 + $0x1d8] sm:$0xff]
        %v847 = vld [vmem:[#allocation9 + $0x1e0] sm:$0xff]
        %v848 = vld [vmem:[#allocation9 + $0x1e8] sm:$0xff]
        %v849 = vld [vmem:[#allocation9 + $0x1f0] sm:$0xff]
        %v850 = vld [vmem:[#allocation9 + $0x1f8] sm:$0xff]
        %v851 = vld [vmem:[#allocation9 + $0x200] sm:$0xff]
        %v852 = vld [vmem:[#allocation9 + $0x208] sm:$0xff]
        %v853 = vld [vmem:[#allocation9 + $0x210] sm:$0xff]
        %v854 = vld [vmem:[#allocation9 + $0x218] sm:$0xff]
        %v855 = vld [vmem:[#allocation9 + $0x220] sm:$0xff]
        %v856 = vld [vmem:[#allocation9 + $0x228] sm:$0xff]
        %v857 = vld [vmem:[#allocation9 + $0x230] sm:$0xff]
        %v858 = vld [vmem:[#allocation9 + $0x238] sm:$0xff]
        %v859 = vld [vmem:[#allocation9 + $0x240] sm:$0xff]
        %v860 = vld [vmem:[#allocation9 + $0x248] sm:$0xff]
        %v861 = vld [vmem:[#allocation9 + $0x250] sm:$0xff]
        %v862 = vld [vmem:[#allocation9 + $0x258] sm:$0xff]
        %v863 = vld [vmem:[#allocation9 + $0x260] sm:$0xff]
        %v864 = vld [vmem:[#allocation9 + $0x268] sm:$0xff]
        %v865 = vld [vmem:[#allocation9 + $0x270] sm:$0xff]
        %v866 = vld [vmem:[#allocation9 + $0x278] sm:$0xff]
        %v867 = vld [vmem:[#allocation9 + $0x280] sm:$0xff]
        %v868 = vld [vmem:[#allocation9 + $0x288] sm:$0xff]
        %v869 = vld [vmem:[#allocation9 + $0x290] sm:$0xff]
        %v870 = vld [vmem:[#allocation9 + $0x298] sm:$0xff]
        %v871 = vld [vmem:[#allocation9 + $0x2a0] sm:$0xff]
        %v872 = vld [vmem:[#allocation9 + $0x2a8] sm:$0xff]
        %v873 = vld [vmem:[#allocation9 + $0x2b0] sm:$0xff]
        %v874 = vld [vmem:[#allocation9 + $0x2b8] sm:$0xff]
        %v875 = vld [vmem:[#allocation9 + $0x2c0] sm:$0xff]
        %v876 = vld [vmem:[#allocation9 + $0x2c8] sm:$0xff]
        %v877 = vld [vmem:[#allocation9 + $0x2d0] sm:$0xff]
        %v878 = vld [vmem:[#allocation9 + $0x2d8] sm:$0xff]
        %v879 = vld [vmem:[#allocation9 + $0x2e0] sm:$0xff]
        %v880 = vld [vmem:[#allocation9 + $0x2e8] sm:$0xff]
        %v881 = vld [vmem:[#allocation9 + $0x2f0] sm:$0xff]
        %v882 = vld [vmem:[#allocation9 + $0x2f8] sm:$0xff]
        %v883 = vld [vmem:[#allocation9 + $0x300] sm:$0xff]
        %v884 = vld [vmem:[#allocation9 + $0x308] sm:$0xff]
        %v885 = vld [vmem:[#allocation9 + $0x310] sm:$0xff]
        %v886 = vld [vmem:[#allocation9 + $0x318] sm:$0xff]
        %v887 = vld [vmem:[#allocation9 + $0x320] sm:$0xff]
        %v888 = vld [vmem:[#allocation9 + $0x328] sm:$0xff]
        %v889 = vld [vmem:[#allocation9 + $0x330] sm:$0xff]
        %v890 = vld [vmem:[#allocation9 + $0x338] sm:$0xff]
        %v891 = vld [vmem:[#allocation9 + $0x340] sm:$0xff]
        %v892 = vld [vmem:[#allocation9 + $0x348] sm:$0xff]
        %v893 = vld [vmem:[#allocation9 + $0x350] sm:$0xff]
        %v894 = vld [vmem:[#allocation9 + $0x358] sm:$0xff]
        %v895 = vld [vmem:[#allocation9 + $0x360] sm:$0xff]
        %v896 = vld [vmem:[#allocation9 + $0x368] sm:$0xff]
        %v897 = vld [vmem:[#allocation9 + $0x370] sm:$0xff]
        %v898 = vld [vmem:[#allocation9 + $0x378] sm:$0xff]
        %v899 = vld [vmem:[#allocation9 + $0x380] sm:$0xff]
        %v900 = vld [vmem:[#allocation9 + $0x388] sm:$0xff]
        %v901 = vld [vmem:[#allocation9 + $0x390] sm:$0xff]
        %v902 = vld [vmem:[#allocation9 + $0x398] sm:$0xff]
        %v903 = vld [vmem:[#allocation9 + $0x3a0] sm:$0xff]
        %v904 = vld [vmem:[#allocation9 + $0x3a8] sm:$0xff]
        %v905 = vld [vmem:[#allocation9 + $0x3b0] sm:$0xff]
        %v906 = vld [vmem:[#allocation9 + $0x3b8] sm:$0xff]
        %v907 = vld [vmem:[#allocation9 + $0x3c0] sm:$0xff]
        %v908 = vld [vmem:[#allocation9 + $0x3c8] sm:$0xff]
        %v909 = vld [vmem:[#allocation9 + $0x3d0] sm:$0xff]
        %v910 = vld [vmem:[#allocation9 + $0x3d8] sm:$0xff]
        %v911 = vld [vmem:[#allocation9 + $0x3e0] sm:$0xff]
        %v912 = vld [vmem:[#allocation9 + $0x3e8] sm:$0xff]
        %v913 = vld [vmem:[#allocation9 + $0x3f0] sm:$0xff]
        %v914 = vld [vmem:[#allocation9 + $0x3f8] sm:$0xff]
        %v915 = vld [vmem:[#allocation9 + $0x400] sm:$0xff]
        %v916 = vld [vmem:[#allocation9 + $0x408] sm:$0xff]
        %v917 = vld [vmem:[#allocation9 + $0x410] sm:$0xff]
        %v918 = vld [vmem:[#allocation9 + $0x418] sm:$0xff]
        %v919 = vld [vmem:[#allocation9 + $0x420] sm:$0xff]
        %v920 = vld [vmem:[#allocation9 + $0x428] sm:$0xff]
        %v921 = vld [vmem:[#allocation9 + $0x430] sm:$0xff]
        %v922 = vld [vmem:[#allocation9 + $0x438] sm:$0xff]
        %v923 = vld [vmem:[#allocation9 + $0x440] sm:$0xff]
        %v924 = vld [vmem:[#allocation9 + $0x448] sm:$0xff]
        %v925 = vld [vmem:[#allocation9 + $0x450] sm:$0xff]
        %v926 = vld [vmem:[#allocation9 + $0x458] sm:$0xff]
        %v927 = vld [vmem:[#allocation9 + $0x460] sm:$0xff]
        %v928 = vld [vmem:[#allocation9 + $0x468] sm:$0xff]
        %v929 = vld [vmem:[#allocation9 + $0x470] sm:$0xff]
        %v930 = vld [vmem:[#allocation9 + $0x478] sm:$0xff]
        %v931 = vld [vmem:[#allocation9 + $0x480] sm:$0xff]
        %v932 = vld [vmem:[#allocation9 + $0x488] sm:$0xff]
        %v933 = vld [vmem:[#allocation9 + $0x490] sm:$0xff]
        %v934 = vld [vmem:[#allocation9 + $0x498] sm:$0xff]
        %v935 = vld [vmem:[#allocation9 + $0x4a0] sm:$0xff]
        %v936 = vld [vmem:[#allocation9 + $0x4a8] sm:$0xff]
        %v937 = vld [vmem:[#allocation9 + $0x4b0] sm:$0xff]
        %v938 = vld [vmem:[#allocation9 + $0x4b8] sm:$0xff]
        %v939 = vld [vmem:[#allocation9 + $0x4c0] sm:$0xff]
        %v940 = vld [vmem:[#allocation9 + $0x4c8] sm:$0xff]
        %v941 = vld [vmem:[#allocation9 + $0x4d0] sm:$0xff]
        %v942 = vld [vmem:[#allocation9 + $0x4d8] sm:$0xff]
        %v943 = vld [vmem:[#allocation9 + $0x4e0] sm:$0xff]
        %v944 = vld [vmem:[#allocation9 + $0x4e8] sm:$0xff]
        %v945 = vld [vmem:[#allocation9 + $0x4f0] sm:$0xff]
        %v946 = vld [vmem:[#allocation9 + $0x4f8] sm:$0xff]
        %v947 = vld [vmem:[#allocation9 + $0x500] sm:$0xff]
        %v948 = vld [vmem:[#allocation9 + $0x508] sm:$0xff]
        %v949 = vld [vmem:[#allocation9 + $0x510] sm:$0xff]
        %v950 = vld [vmem:[#allocation9 + $0x518] sm:$0xff]
        %v951 = vld [vmem:[#allocation9 + $0x520] sm:$0xff]
        %v952 = vld [vmem:[#allocation9 + $0x528] sm:$0xff]
        %v953 = vld [vmem:[#allocation9 + $0x530] sm:$0xff]
        %v954 = vld [vmem:[#allocation9 + $0x538] sm:$0xff]
        %v955 = vld [vmem:[#allocation9 + $0x540] sm:$0xff]
        %v956 = vld [vmem:[#allocation9 + $0x548] sm:$0xff]
        %v957 = vld [vmem:[#allocation9 + $0x550] sm:$0xff]
        %v958 = vld [vmem:[#allocation9 + $0x558] sm:$0xff]
        %v959 = vld [vmem:[#allocation9 + $0x560] sm:$0xff]
        %v960 = vld [vmem:[#allocation9 + $0x568] sm:$0xff]
        %v961 = vld [vmem:[#allocation9 + $0x570] sm:$0xff]
        %v962 = vld [vmem:[#allocation9 + $0x578] sm:$0xff]
        %v963 = vld [vmem:[#allocation9 + $0x580] sm:$0xff]
        %v964 = vld [vmem:[#allocation9 + $0x588] sm:$0xff]
        %v965 = vld [vmem:[#allocation9 + $0x590] sm:$0xff]
        %v966 = vld [vmem:[#allocation9 + $0x598] sm:$0xff]
        %v967 = vld [vmem:[#allocation9 + $0x5a0] sm:$0xff]
        %v968 = vld [vmem:[#allocation9 + $0x5a8] sm:$0xff]
        %v969 = vld [vmem:[#allocation9 + $0x5b0] sm:$0xff]
        %v970 = vld [vmem:[#allocation9 + $0x5b8] sm:$0xff]
        %v971 = vld [vmem:[#allocation9 + $0x5c0] sm:$0xff]
        %v972 = vld [vmem:[#allocation9 + $0x5c8] sm:$0xff]
        %v973 = vld [vmem:[#allocation9 + $0x5d0] sm:$0xff]
        %v974 = vld [vmem:[#allocation9 + $0x5d8] sm:$0xff]
        %v975 = vld [vmem:[#allocation9 + $0x5e0] sm:$0xff]
        %v976 = vld [vmem:[#allocation9 + $0x5e8] sm:$0xff]
        %v977 = vld [vmem:[#allocation9 + $0x5f0] sm:$0xff]
        %v978 = vld [vmem:[#allocation9 + $0x5f8] sm:$0xff]
        %v979 = vld [vmem:[#allocation9 + $0x600] sm:$0xff]
        %v980 = vld [vmem:[#allocation9 + $0x608] sm:$0xff]
        %v981 = vld [vmem:[#allocation9 + $0x610] sm:$0xff]
        %v982 = vld [vmem:[#allocation9 + $0x618] sm:$0xff]
        %v983 = vld [vmem:[#allocation9 + $0x620] sm:$0xff]
        %v984 = vld [vmem:[#allocation9 + $0x628] sm:$0xff]
        %v985 = vld [vmem:[#allocation9 + $0x630] sm:$0xff]
        %v986 = vld [vmem:[#allocation9 + $0x638] sm:$0xff]
        %v987 = vld [vmem:[#allocation9 + $0x640] sm:$0xff]
        %v988 = vld [vmem:[#allocation9 + $0x648] sm:$0xff]
        %v989 = vld [vmem:[#allocation9 + $0x650] sm:$0xff]
        %v990 = vld [vmem:[#allocation9 + $0x658] sm:$0xff]
        %v991 = vld [vmem:[#allocation9 + $0x660] sm:$0xff]
        %v992 = vld [vmem:[#allocation9 + $0x668] sm:$0xff]
        %v993 = vld [vmem:[#allocation9 + $0x670] sm:$0xff]
        %v994 = vld [vmem:[#allocation9 + $0x678] sm:$0xff]
        %v995 = vld [vmem:[#allocation9 + $0x680] sm:$0xff]
        %v996 = vld [vmem:[#allocation9 + $0x688] sm:$0xff]
        %v997 = vld [vmem:[#allocation9 + $0x690] sm:$0xff]
        %v998 = vld [vmem:[#allocation9 + $0x698] sm:$0xff]
        %v999 = vld [vmem:[#allocation9 + $0x6a0] sm:$0xff]
        %v1000 = vld [vmem:[#allocation9 + $0x6a8] sm:$0xff]
        %v1001 = vld [vmem:[#allocation9 + $0x6b0] sm:$0xff]
        %v1002 = vld [vmem:[#allocation9 + $0x6b8] sm:$0xff]
        %v1003 = vld [vmem:[#allocation9 + $0x6c0] sm:$0xff]
        %v1004 = vld [vmem:[#allocation9 + $0x6c8] sm:$0xff]
        %v1005 = vld [vmem:[#allocation9 + $0x6d0] sm:$0xff]
        %v1006 = vld [vmem:[#allocation9 + $0x6d8] sm:$0xff]
        %v1007 = vld [vmem:[#allocation9 + $0x6e0] sm:$0xff]
        %v1008 = vld [vmem:[#allocation9 + $0x6e8] sm:$0xff]
        %v1009 = vld [vmem:[#allocation9 + $0x6f0] sm:$0xff]
        %v1010 = vld [vmem:[#allocation9 + $0x6f8] sm:$0xff]
        %v1011 = vld [vmem:[#allocation9 + $0x700] sm:$0xff]
        %v1012 = vld [vmem:[#allocation9 + $0x708] sm:$0xff]
        %v1013 = vld [vmem:[#allocation9 + $0x710] sm:$0xff]
        %v1014 = vld [vmem:[#allocation9 + $0x718] sm:$0xff]
        %v1015 = vld [vmem:[#allocation9 + $0x720] sm:$0xff]
        %v1016 = vld [vmem:[#allocation9 + $0x728] sm:$0xff]
        %v1017 = vld [vmem:[#allocation9 + $0x730] sm:$0xff]
        %v1018 = vld [vmem:[#allocation9 + $0x738] sm:$0xff]
        %v1019 = vld [vmem:[#allocation9 + $0x740] sm:$0xff]
        %v1020 = vld [vmem:[#allocation9 + $0x748] sm:$0xff]
        %v1021 = vld [vmem:[#allocation9 + $0x750] sm:$0xff]
        %v1022 = vld [vmem:[#allocation9 + $0x758] sm:$0xff]
        %v1023 = vld [vmem:[#allocation9 + $0x760] sm:$0xff]
        %v1024 = vld [vmem:[#allocation9 + $0x768] sm:$0xff]
        %v1025 = vld [vmem:[#allocation9 + $0x770] sm:$0xff]
        %v1026 = vld [vmem:[#allocation9 + $0x778] sm:$0xff]
        %v1027 = vld [vmem:[#allocation9 + $0x780] sm:$0xff]
        %v1028 = vld [vmem:[#allocation9 + $0x788] sm:$0xff]
        %v1029 = vld [vmem:[#allocation9 + $0x790] sm:$0xff]
        %v1030 = vld [vmem:[#allocation9 + $0x798] sm:$0xff]
        %v1031 = vld [vmem:[#allocation9 + $0x7a0] sm:$0xff]
        %v1032 = vld [vmem:[#allocation9 + $0x7a8] sm:$0xff]
        %v1033 = vld [vmem:[#allocation9 + $0x7b0] sm:$0xff]
        %v1034 = vld [vmem:[#allocation9 + $0x7b8] sm:$0xff]
        %v1035 = vld [vmem:[#allocation9 + $0x7c0] sm:$0xff]
        %v1036 = vld [vmem:[#allocation9 + $0x7c8] sm:$0xff]
        %v1037 = vld [vmem:[#allocation9 + $0x7d0] sm:$0xff]
        %v1038 = vld [vmem:[#allocation9 + $0x7d8] sm:$0xff]
        %v1039 = vld [vmem:[#allocation9 + $0x7e0] sm:$0xff]
        %v1040 = vld [vmem:[#allocation9 + $0x7e8] sm:$0xff]
        %v1041 = vld [vmem:[#allocation9 + $0x7f0] sm:$0xff]
        %v1042 = vld [vmem:[#allocation9 + $0x7f8] sm:$0xff]
        %v1043 = vld [vmem:[#allocation9 + $0x800] sm:$0xff]
        %v1044 = vld [vmem:[#allocation9 + $0x808] sm:$0xff]
        %v1045 = vld [vmem:[#allocation9 + $0x810] sm:$0xff]
        %v1046 = vld [vmem:[#allocation9 + $0x818] sm:$0xff]
        %v1047 = vld [vmem:[#allocation9 + $0x820] sm:$0xff]
        %v1048 = vld [vmem:[#allocation9 + $0x828] sm:$0xff]
        %v1049 = vld [vmem:[#allocation9 + $0x830] sm:$0xff]
        %v1050 = vld [vmem:[#allocation9 + $0x838] sm:$0xff]
        %v1051 = vld [vmem:[#allocation9 + $0x840] sm:$0xff]
        %v1052 = vld [vmem:[#allocation9 + $0x848] sm:$0xff]
        %v1053 = vld [vmem:[#allocation9 + $0x850] sm:$0xff]
        %v1054 = vld [vmem:[#allocation9 + $0x858] sm:$0xff]
        %v1055 = vld [vmem:[#allocation9 + $0x860] sm:$0xff]
        %v1056 = vld [vmem:[#allocation9 + $0x868] sm:$0xff]
        %v1057 = vld [vmem:[#allocation9 + $0x870] sm:$0xff]
        %v1058 = vld [vmem:[#allocation9 + $0x878] sm:$0xff]
        %v1059 = vld [vmem:[#allocation9 + $0x880] sm:$0xff]
        %v1060 = vld [vmem:[#allocation9 + $0x888] sm:$0xff]
        %v1061 = vld [vmem:[#allocation9 + $0x890] sm:$0xff]
        %v1062 = vld [vmem:[#allocation9 + $0x898] sm:$0xff]
        %v1063 = vld [vmem:[#allocation9 + $0x8a0] sm:$0xff]
        %v1064 = vld [vmem:[#allocation9 + $0x8a8] sm:$0xff]
        %v1065 = vld [vmem:[#allocation9 + $0x8b0] sm:$0xff]
        %v1066 = vld [vmem:[#allocation9 + $0x8b8] sm:$0xff]
        %v1067 = vld [vmem:[#allocation9 + $0x8c0] sm:$0xff]
        %v1068 = vld [vmem:[#allocation9 + $0x8c8] sm:$0xff]
        %v1069 = vld [vmem:[#allocation9 + $0x8d0] sm:$0xff]
        %v1070 = vld [vmem:[#allocation9 + $0x8d8] sm:$0xff]
        %v1071 = vld [vmem:[#allocation9 + $0x8e0] sm:$0xff]
        %v1072 = vld [vmem:[#allocation9 + $0x8e8] sm:$0xff]
        %v1073 = vld [vmem:[#allocation9 + $0x8f0] sm:$0xff]
        %v1074 = vld [vmem:[#allocation9 + $0x8f8] sm:$0xff]
        %v1075 = vld [vmem:[#allocation9 + $0x900] sm:$0xff]
        %v1076 = vld [vmem:[#allocation9 + $0x908] sm:$0xff]
        %v1077 = vld [vmem:[#allocation9 + $0x910] sm:$0xff]
        %v1078 = vld [vmem:[#allocation9 + $0x918] sm:$0xff]
        %v1079 = vld [vmem:[#allocation9 + $0x920] sm:$0xff]
        %v1080 = vld [vmem:[#allocation9 + $0x928] sm:$0xff]
        %v1081 = vld [vmem:[#allocation9 + $0x930] sm:$0xff]
        %v1082 = vld [vmem:[#allocation9 + $0x938] sm:$0xff]
        %v1083 = vld [vmem:[#allocation9 + $0x940] sm:$0xff]
        %v1084 = vld [vmem:[#allocation9 + $0x948] sm:$0xff]
        %v1085 = vld [vmem:[#allocation9 + $0x950] sm:$0xff]
        %v1086 = vld [vmem:[#allocation9 + $0x958] sm:$0xff]
        %v1087 = vld [vmem:[#allocation9 + $0x960] sm:$0xff]
        %v1088 = vld [vmem:[#allocation9 + $0x968] sm:$0xff]
        %v1089 = vld [vmem:[#allocation9 + $0x970] sm:$0xff]
        %v1090 = vld [vmem:[#allocation9 + $0x978] sm:$0xff]
        %v1091 = vld [vmem:[#allocation9 + $0x980] sm:$0xff]
        %v1092 = vld [vmem:[#allocation9 + $0x988] sm:$0xff]
        %v1093 = vld [vmem:[#allocation9 + $0x990] sm:$0xff]
        %v1094 = vld [vmem:[#allocation9 + $0x998] sm:$0xff]
        %v1095 = vld [vmem:[#allocation9 + $0x9a0] sm:$0xff]
        %v1096 = vld [vmem:[#allocation9 + $0x9a8] sm:$0xff]
        %v1097 = vld [vmem:[#allocation9 + $0x9b0] sm:$0xff]
        %v1098 = vld [vmem:[#allocation9 + $0x9b8] sm:$0xff]
        %v1099 = vld [vmem:[#allocation9 + $0x9c0] sm:$0xff]
        %v1100 = vld [vmem:[#allocation9 + $0x9c8] sm:$0xff]
        %v1101 = vld [vmem:[#allocation9 + $0x9d0] sm:$0xff]
        %v1102 = vld [vmem:[#allocation9 + $0x9d8] sm:$0xff]
        %v1103 = vld [vmem:[#allocation9 + $0x9e0] sm:$0xff]
        %v1104 = vld [vmem:[#allocation9 + $0x9e8] sm:$0xff]
        %v1105 = vld [vmem:[#allocation9 + $0x9f0] sm:$0xff]
        %v1106 = vld [vmem:[#allocation9 + $0x9f8] sm:$0xff]
        %v1107 = vld [vmem:[#allocation9 + $0xa00] sm:$0xff]
        %v1108 = vld [vmem:[#allocation9 + $0xa08] sm:$0xff]
        %v1109 = vld [vmem:[#allocation9 + $0xa10] sm:$0xff]
        %v1110 = vld [vmem:[#allocation9 + $0xa18] sm:$0xff]
        %v1111 = vld [vmem:[#allocation9 + $0xa20] sm:$0xff]
        %v1112 = vld [vmem:[#allocation9 + $0xa28] sm:$0xff]
        %v1113 = vld [vmem:[#allocation9 + $0xa30] sm:$0xff]
        %v1114 = vld [vmem:[#allocation9 + $0xa38] sm:$0xff]
        %v1115 = vld [vmem:[#allocation9 + $0xa40] sm:$0xff]
        %v1116 = vld [vmem:[#allocation9 + $0xa48] sm:$0xff]
        %v1117 = vld [vmem:[#allocation9 + $0xa50] sm:$0xff]
        %v1118 = vld [vmem:[#allocation9 + $0xa58] sm:$0xff]
        %v1119 = vld [vmem:[#allocation9 + $0xa60] sm:$0xff]
        %v1120 = vld [vmem:[#allocation9 + $0xa68] sm:$0xff]
        %v1121 = vld [vmem:[#allocation9 + $0xa70] sm:$0xff]
        %v1122 = vld [vmem:[#allocation9 + $0xa78] sm:$0xff]
        %v1123 = vld [vmem:[#allocation9 + $0xa80] sm:$0xff]
        %v1124 = vld [vmem:[#allocation9 + $0xa88] sm:$0xff]
        %v1125 = vld [vmem:[#allocation9 + $0xa90] sm:$0xff]
        %v1126 = vld [vmem:[#allocation9 + $0xa98] sm:$0xff]
        %v1127 = vld [vmem:[#allocation9 + $0xaa0] sm:$0xff]
        %v1128 = vld [vmem:[#allocation9 + $0xaa8] sm:$0xff]
        %v1129 = vld [vmem:[#allocation9 + $0xab0] sm:$0xff]
        %v1130 = vld [vmem:[#allocation9 + $0xab8] sm:$0xff]
        %v1131 = vld [vmem:[#allocation9 + $0xac0] sm:$0xff]
        %v1132 = vld [vmem:[#allocation9 + $0xac8] sm:$0xff]
        %v1133 = vld [vmem:[#allocation9 + $0xad0] sm:$0xff]
        %v1134 = vld [vmem:[#allocation9 + $0xad8] sm:$0xff]
        %v1135 = vld [vmem:[#allocation9 + $0xae0] sm:$0xff]
        %v1136 = vld [vmem:[#allocation9 + $0xae8] sm:$0xff]
        %v1137 = vld [vmem:[#allocation9 + $0xaf0] sm:$0xff]
        %v1138 = vld [vmem:[#allocation9 + $0xaf8] sm:$0xff]
        %v1139 = vld [vmem:[#allocation9 + $0xb00] sm:$0xff]
        %v1140 = vld [vmem:[#allocation9 + $0xb08] sm:$0xff]
        %v1141 = vld [vmem:[#allocation9 + $0xb10] sm:$0xff]
        %v1142 = vld [vmem:[#allocation9 + $0xb18] sm:$0xff]
        %v1143 = vld [vmem:[#allocation9 + $0xb20] sm:$0xff]
        %v1144 = vld [vmem:[#allocation9 + $0xb28] sm:$0xff]
        %v1145 = vld [vmem:[#allocation9 + $0xb30] sm:$0xff]
        %v1146 = vld [vmem:[#allocation9 + $0xb38] sm:$0xff]
        %v1147 = vld [vmem:[#allocation9 + $0xb40] sm:$0xff]
        %v1148 = vld [vmem:[#allocation9 + $0xb48] sm:$0xff]
        %v1149 = vld [vmem:[#allocation9 + $0xb50] sm:$0xff]
        %v1150 = vld [vmem:[#allocation9 + $0xb58] sm:$0xff]
        %v1151 = vld [vmem:[#allocation9 + $0xb60] sm:$0xff]
        %v1152 = vld [vmem:[#allocation9 + $0xb68] sm:$0xff]
        %v1153 = vld [vmem:[#allocation9 + $0xb70] sm:$0xff]
        %v1154 = vld [vmem:[#allocation9 + $0xb78] sm:$0xff]
        %v1155 = vld [vmem:[#allocation9 + $0xb80] sm:$0xff]
        %v1156 = vld [vmem:[#allocation9 + $0xb88] sm:$0xff]
        %v1157 = vld [vmem:[#allocation9 + $0xb90] sm:$0xff]
        %v1158 = vld [vmem:[#allocation9 + $0xb98] sm:$0xff]
        %v1159 = vld [vmem:[#allocation9 + $0xba0] sm:$0xff]
        %v1160 = vld [vmem:[#allocation9 + $0xba8] sm:$0xff]
        %v1161 = vld [vmem:[#allocation9 + $0xbb0] sm:$0xff]
        %v1162 = vld [vmem:[#allocation9 + $0xbb8] sm:$0xff]
        %v1163 = vld [vmem:[#allocation9 + $0xbc0] sm:$0xff]
        %v1164 = vld [vmem:[#allocation9 + $0xbc8] sm:$0xff]
        %v1165 = vld [vmem:[#allocation9 + $0xbd0] sm:$0xff]
        %v1166 = vld [vmem:[#allocation9 + $0xbd8] sm:$0xff]
        %v1167 = vld [vmem:[#allocation9 + $0xbe0] sm:$0xff]
        %v1168 = vld [vmem:[#allocation9 + $0xbe8] sm:$0xff]
        %v1169 = vld [vmem:[#allocation9 + $0xbf0] sm:$0xff]
        %v1170 = vld [vmem:[#allocation9 + $0xbf8] sm:$0xff]
        %v1171 = vld [vmem:[#allocation9 + $0xc00] sm:$0xff]
        %v1172 = vld [vmem:[#allocation9 + $0xc08] sm:$0xff]
        %v1173 = vld [vmem:[#allocation9 + $0xc10] sm:$0xff]
        %v1174 = vld [vmem:[#allocation9 + $0xc18] sm:$0xff]
        %v1175 = vld [vmem:[#allocation9 + $0xc20] sm:$0xff]
        %v1176 = vld [vmem:[#allocation9 + $0xc28] sm:$0xff]
        %v1177 = vld [vmem:[#allocation9 + $0xc30] sm:$0xff]
        %v1178 = vld [vmem:[#allocation9 + $0xc38] sm:$0xff]
        %v1179 = vld [vmem:[#allocation9 + $0xc40] sm:$0xff]
        %v1180 = vld [vmem:[#allocation9 + $0xc48] sm:$0xff]
        %v1181 = vld [vmem:[#allocation9 + $0xc50] sm:$0xff]
        %v1182 = vld [vmem:[#allocation9 + $0xc58] sm:$0xff]
        %v1183 = vld [vmem:[#allocation9 + $0xc60] sm:$0xff]
        %v1184 = vld [vmem:[#allocation9 + $0xc68] sm:$0xff]
        %v1185 = vld [vmem:[#allocation9 + $0xc70] sm:$0xff]
        %v1186 = vld [vmem:[#allocation9 + $0xc78] sm:$0xff]
        %v1187 = vld [vmem:[#allocation9 + $0xc80] sm:$0xff]
        %v1188 = vld [vmem:[#allocation9 + $0xc88] sm:$0xff]
        %v1189 = vld [vmem:[#allocation9 + $0xc90] sm:$0xff]
        %v1190 = vld [vmem:[#allocation9 + $0xc98] sm:$0xff]
        %v1191 = vld [vmem:[#allocation9 + $0xca0] sm:$0xff]
        %v1192 = vld [vmem:[#allocation9 + $0xca8] sm:$0xff]
        %v1193 = vld [vmem:[#allocation9 + $0xcb0] sm:$0xff]
        %v1194 = vld [vmem:[#allocation9 + $0xcb8] sm:$0xff]
        %v1195 = vld [vmem:[#allocation9 + $0xcc0] sm:$0xff]
        %v1196 = vld [vmem:[#allocation9 + $0xcc8] sm:$0xff]
        %v1197 = vld [vmem:[#allocation9 + $0xcd0] sm:$0xff]
        %v1198 = vld [vmem:[#allocation9 + $0xcd8] sm:$0xff]
        %v1199 = vld [vmem:[#allocation9 + $0xce0] sm:$0xff]
        %v1200 = vld [vmem:[#allocation9 + $0xce8] sm:$0xff]
        %v1201 = vld [vmem:[#allocation9 + $0xcf0] sm:$0xff]
        %v1202 = vld [vmem:[#allocation9 + $0xcf8] sm:$0xff]
        %v1203 = vld [vmem:[#allocation9 + $0xd00] sm:$0xff]
        %v1204 = vld [vmem:[#allocation9 + $0xd08] sm:$0xff]
        %v1205 = vld [vmem:[#allocation9 + $0xd10] sm:$0xff]
        %v1206 = vld [vmem:[#allocation9 + $0xd18] sm:$0xff]
        %v1207 = vld [vmem:[#allocation9 + $0xd20] sm:$0xff]
        %v1208 = vld [vmem:[#allocation9 + $0xd28] sm:$0xff]
        %v1209 = vld [vmem:[#allocation9 + $0xd30] sm:$0xff]
        %v1210 = vld [vmem:[#allocation9 + $0xd38] sm:$0xff]
        %v1211 = vld [vmem:[#allocation9 + $0xd40] sm:$0xff]
        %v1212 = vld [vmem:[#allocation9 + $0xd48] sm:$0xff]
        %v1213 = vld [vmem:[#allocation9 + $0xd50] sm:$0xff]
        %v1214 = vld [vmem:[#allocation9 + $0xd58] sm:$0xff]
        %v1215 = vld [vmem:[#allocation9 + $0xd60] sm:$0xff]
        %v1216 = vld [vmem:[#allocation9 + $0xd68] sm:$0xff]
        %v1217 = vld [vmem:[#allocation9 + $0xd70] sm:$0xff]
        %v1218 = vld [vmem:[#allocation9 + $0xd78] sm:$0xff]
        %v1219 = vld [vmem:[#allocation9 + $0xd80] sm:$0xff]
        %v1220 = vld [vmem:[#allocation9 + $0xd88] sm:$0xff]
        %v1221 = vld [vmem:[#allocation9 + $0xd90] sm:$0xff]
        %v1222 = vld [vmem:[#allocation9 + $0xd98] sm:$0xff]
        %v1223 = vld [vmem:[#allocation9 + $0xda0] sm:$0xff]
        %v1224 = vld [vmem:[#allocation9 + $0xda8] sm:$0xff]
        %v1225 = vld [vmem:[#allocation9 + $0xdb0] sm:$0xff]
        %v1226 = vld [vmem:[#allocation9 + $0xdb8] sm:$0xff]
        %v1227 = vld [vmem:[#allocation9 + $0xdc0] sm:$0xff]
        %v1228 = vld [vmem:[#allocation9 + $0xdc8] sm:$0xff]
        %v1229 = vld [vmem:[#allocation9 + $0xdd0] sm:$0xff]
        %v1230 = vld [vmem:[#allocation9 + $0xdd8] sm:$0xff]
        %v1231 = vld [vmem:[#allocation9 + $0xde0] sm:$0xff]
        %v1232 = vld [vmem:[#allocation9 + $0xde8] sm:$0xff]
        %v1233 = vld [vmem:[#allocation9 + $0xdf0] sm:$0xff]
        %v1234 = vld [vmem:[#allocation9 + $0xdf8] sm:$0xff]
        %v1235 = vld [vmem:[#allocation9 + $0xe00] sm:$0xff]
        %v1236 = vld [vmem:[#allocation9 + $0xe08] sm:$0xff]
        %v1237 = vld [vmem:[#allocation9 + $0xe10] sm:$0xff]
        %v1238 = vld [vmem:[#allocation9 + $0xe18] sm:$0xff]
        %v1239 = vld [vmem:[#allocation9 + $0xe20] sm:$0xff]
        %v1240 = vld [vmem:[#allocation9 + $0xe28] sm:$0xff]
        %v1241 = vld [vmem:[#allocation9 + $0xe30] sm:$0xff]
        %v1242 = vld [vmem:[#allocation9 + $0xe38] sm:$0xff]
        %v1243 = vld [vmem:[#allocation9 + $0xe40] sm:$0xff]
        %v1244 = vld [vmem:[#allocation9 + $0xe48] sm:$0xff]
        %v1245 = vld [vmem:[#allocation9 + $0xe50] sm:$0xff]
        %v1246 = vld [vmem:[#allocation9 + $0xe58] sm:$0xff]
        %v1247 = vld [vmem:[#allocation9 + $0xe60] sm:$0xff]
        %v1248 = vld [vmem:[#allocation9 + $0xe68] sm:$0xff]
        %v1249 = vld [vmem:[#allocation9 + $0xe70] sm:$0xff]
        %v1250 = vld [vmem:[#allocation9 + $0xe78] sm:$0xff]
        %v1251 = vld [vmem:[#allocation9 + $0xe80] sm:$0xff]
        %v1252 = vld [vmem:[#allocation9 + $0xe88] sm:$0xff]
        %v1253 = vld [vmem:[#allocation9 + $0xe90] sm:$0xff]
        %v1254 = vld [vmem:[#allocation9 + $0xe98] sm:$0xff]
        %v1255 = vld [vmem:[#allocation9 + $0xea0] sm:$0xff]
        %v1256 = vld [vmem:[#allocation9 + $0xea8] sm:$0xff]
        %v1257 = vld [vmem:[#allocation9 + $0xeb0] sm:$0xff]
        %v1258 = vld [vmem:[#allocation9 + $0xeb8] sm:$0xff]
        %v1259 = vld [vmem:[#allocation9 + $0xec0] sm:$0xff]
        %v1260 = vld [vmem:[#allocation9 + $0xec8] sm:$0xff]
        %v1261 = vld [vmem:[#allocation9 + $0xed0] sm:$0xff]
        %v1262 = vld [vmem:[#allocation9 + $0xed8] sm:$0xff]
        %v1263 = vld [vmem:[#allocation9 + $0xee0] sm:$0xff]
        %v1264 = vld [vmem:[#allocation9 + $0xee8] sm:$0xff]
        %v1265 = vld [vmem:[#allocation9 + $0xef0] sm:$0xff]
        %v1266 = vld [vmem:[#allocation9 + $0xef8] sm:$0xff]
        %v1267 = vld [vmem:[#allocation9 + $0xf00] sm:$0xff]
        %v1268 = vld [vmem:[#allocation9 + $0xf08] sm:$0xff]
        %v1269 = vld [vmem:[#allocation9 + $0xf10] sm:$0xff]
        %v1270 = vld [vmem:[#allocation9 + $0xf18] sm:$0xff]
        %v1271 = vld [vmem:[#allocation9 + $0xf20] sm:$0xff]
        %v1272 = vld [vmem:[#allocation9 + $0xf28] sm:$0xff]
        %v1273 = vld [vmem:[#allocation9 + $0xf30] sm:$0xff]
        %v1274 = vld [vmem:[#allocation9 + $0xf38] sm:$0xff]
        %v1275 = vld [vmem:[#allocation9 + $0xf40] sm:$0xff]
        %v1276 = vld [vmem:[#allocation9 + $0xf48] sm:$0xff]
        %v1277 = vld [vmem:[#allocation9 + $0xf50] sm:$0xff]
        %v1278 = vld [vmem:[#allocation9 + $0xf58] sm:$0xff]
        %v1279 = vld [vmem:[#allocation9 + $0xf60] sm:$0xff]
        %v1280 = vld [vmem:[#allocation9 + $0xf68] sm:$0xff]
        %v1281 = vld [vmem:[#allocation9 + $0xf70] sm:$0xff]
        %v1282 = vld [vmem:[#allocation9 + $0xf78] sm:$0xff]
        %v1283 = vld [vmem:[#allocation9 + $0xf80] sm:$0xff]
        %v1284 = vld [vmem:[#allocation9 + $0xf88] sm:$0xff]
        %v1285 = vld [vmem:[#allocation9 + $0xf90] sm:$0xff]
        %v1286 = vld [vmem:[#allocation9 + $0xf98] sm:$0xff]
        %v1287 = vld [vmem:[#allocation9 + $0xfa0] sm:$0xff]
        %v1288 = vld [vmem:[#allocation9 + $0xfa8] sm:$0xff]
        %v1289 = vld [vmem:[#allocation9 + $0xfb0] sm:$0xff]
        %v1290 = vld [vmem:[#allocation9 + $0xfb8] sm:$0xff]
        %v1291 = vld [vmem:[#allocation9 + $0xfc0] sm:$0xff]
        %v1292 = vld [vmem:[#allocation9 + $0xfc8] sm:$0xff]
        %v1293 = vld [vmem:[#allocation9 + $0xfd0] sm:$0xff]
        %v1294 = vld [vmem:[#allocation9 + $0xfd8] sm:$0xff]
        %v1295 = vld [vmem:[#allocation9 + $0xfe0] sm:$0xff]
        %v1296 = vld [vmem:[#allocation9 + $0xfe8] sm:$0xff]
        %v1297 = vld [vmem:[#allocation9 + $0xff0] sm:$0xff]
        %v1298 = vld [vmem:[#allocation9 + $0xff8] sm:$0xff]
        %v1299 = vld [vmem:[#allocation9 + $0x1000] sm:$0xff]
        %v1300 = vld [vmem:[#allocation9 + $0x1008] sm:$0xff]
        %v1301 = vld [vmem:[#allocation9 + $0x1010] sm:$0xff]
        %v1302 = vld [vmem:[#allocation9 + $0x1018] sm:$0xff]
        %v1303 = vld [vmem:[#allocation9 + $0x1020] sm:$0xff]
        %v1304 = vld [vmem:[#allocation9 + $0x1028] sm:$0xff]
        %v1305 = vld [vmem:[#allocation9 + $0x1030] sm:$0xff]
        %v1306 = vld [vmem:[#allocation9 + $0x1038] sm:$0xff]
        %v1307 = vld [vmem:[#allocation9 + $0x1040] sm:$0xff]
        %v1308 = vld [vmem:[#allocation9 + $0x1048] sm:$0xff]
        %v1309 = vld [vmem:[#allocation9 + $0x1050] sm:$0xff]
        %v1310 = vld [vmem:[#allocation9 + $0x1058] sm:$0xff]
        %v1311 = vld [vmem:[#allocation9 + $0x1060] sm:$0xff]
        %v1312 = vld [vmem:[#allocation9 + $0x1068] sm:$0xff]
        %v1313 = vld [vmem:[#allocation9 + $0x1070] sm:$0xff]
        %v1314 = vld [vmem:[#allocation9 + $0x1078] sm:$0xff]
        %v1315 = vld [vmem:[#allocation9 + $0x1080] sm:$0xff]
        %v1316 = vld [vmem:[#allocation9 + $0x1088] sm:$0xff]
        %v1317 = vld [vmem:[#allocation9 + $0x1090] sm:$0xff]
        %v1318 = vld [vmem:[#allocation9 + $0x1098] sm:$0xff]
        %v1319 = vld [vmem:[#allocation9 + $0x10a0] sm:$0xff]
        %v1320 = vld [vmem:[#allocation9 + $0x10a8] sm:$0xff]
        %v1321 = vld [vmem:[#allocation9 + $0x10b0] sm:$0xff]
        %v1322 = vld [vmem:[#allocation9 + $0x10b8] sm:$0xff]
        %v1323 = vld [vmem:[#allocation9 + $0x10c0] sm:$0xff]
        %v1324 = vld [vmem:[#allocation9 + $0x10c8] sm:$0xff]
        %v1325 = vld [vmem:[#allocation9 + $0x10d0] sm:$0xff]
        %v1326 = vld [vmem:[#allocation9 + $0x10d8] sm:$0xff]
        %v1327 = vld [vmem:[#allocation9 + $0x10e0] sm:$0xff]
        %v1328 = vld [vmem:[#allocation9 + $0x10e8] sm:$0xff]
        %v1329 = vld [vmem:[#allocation9 + $0x10f0] sm:$0xff]
        %v1330 = vld [vmem:[#allocation9 + $0x10f8] sm:$0xff]
        %v1331 = vld [vmem:[#allocation9 + $0x1100] sm:$0xff]
        %v1332 = vld [vmem:[#allocation9 + $0x1108] sm:$0xff]
        %v1333 = vld [vmem:[#allocation9 + $0x1110] sm:$0xff]
        %v1334 = vld [vmem:[#allocation9 + $0x1118] sm:$0xff]
        %v1335 = vld [vmem:[#allocation9 + $0x1120] sm:$0xff]
        %v1336 = vld [vmem:[#allocation9 + $0x1128] sm:$0xff]
        %v1337 = vld [vmem:[#allocation9 + $0x1130] sm:$0xff]
        %v1338 = vld [vmem:[#allocation9 + $0x1138] sm:$0xff]
        %v1339 = vld [vmem:[#allocation9 + $0x1140] sm:$0xff]
        %v1340 = vld [vmem:[#allocation9 + $0x1148] sm:$0xff]
        %v1341 = vld [vmem:[#allocation9 + $0x1150] sm:$0xff]
        %v1342 = vld [vmem:[#allocation9 + $0x1158] sm:$0xff]
        %v1343 = vld [vmem:[#allocation9 + $0x1160] sm:$0xff]
        %v1344 = vld [vmem:[#allocation9 + $0x1168] sm:$0xff]
        %v1345 = vld [vmem:[#allocation9 + $0x1170] sm:$0xff]
        %v1346 = vld [vmem:[#allocation9 + $0x1178] sm:$0xff]
        %v1347 = vld [vmem:[#allocation9 + $0x1180] sm:$0xff]
        %v1348 = vld [vmem:[#allocation9 + $0x1188] sm:$0xff]
        %v1349 = vld [vmem:[#allocation9 + $0x1190] sm:$0xff]
        %v1350 = vld [vmem:[#allocation9 + $0x1198] sm:$0xff]
        %v1351 = vld [vmem:[#allocation9 + $0x11a0] sm:$0xff]
        %v1352 = vld [vmem:[#allocation9 + $0x11a8] sm:$0xff]
        %v1353 = vld [vmem:[#allocation9 + $0x11b0] sm:$0xff]
        %v1354 = vld [vmem:[#allocation9 + $0x11b8] sm:$0xff]
        %v1355 = vld [vmem:[#allocation9 + $0x11c0] sm:$0xff]
        %v1356 = vld [vmem:[#allocation9 + $0x11c8] sm:$0xff]
        %v1357 = vld [vmem:[#allocation9 + $0x11d0] sm:$0xff]
        %v1358 = vld [vmem:[#allocation9 + $0x11d8] sm:$0xff]
        %v1359 = vld [vmem:[#allocation9 + $0x11e0] sm:$0xff]
        %v1360 = vld [vmem:[#allocation9 + $0x11e8] sm:$0xff]
        %v1361 = vld [vmem:[#allocation9 + $0x11f0] sm:$0xff]
        %v1362 = vld [vmem:[#allocation9 + $0x11f8] sm:$0xff]
        %v1363 = vld [vmem:[#allocation9 + $0x1200] sm:$0xff]
        %v1364 = vld [vmem:[#allocation9 + $0x1208] sm:$0xff]
        %v1365 = vld [vmem:[#allocation9 + $0x1210] sm:$0xff]
        %v1366 = vld [vmem:[#allocation9 + $0x1218] sm:$0xff]
        %v1367 = vld [vmem:[#allocation9 + $0x1220] sm:$0xff]
        %v1368 = vld [vmem:[#allocation9 + $0x1228] sm:$0xff]
        %v1369 = vld [vmem:[#allocation9 + $0x1230] sm:$0xff]
        %v1370 = vld [vmem:[#allocation9 + $0x1238] sm:$0xff]
        %v1371 = vld [vmem:[#allocation9 + $0x1240] sm:$0xff]
        %v1372 = vld [vmem:[#allocation9 + $0x1248] sm:$0xff]
        %v1373 = vld [vmem:[#allocation9 + $0x1250] sm:$0xff]
        %v1374 = vld [vmem:[#allocation9 + $0x1258] sm:$0xff]
        %v1375 = vld [vmem:[#allocation9 + $0x1260] sm:$0xff]
        %v1376 = vld [vmem:[#allocation9 + $0x1268] sm:$0xff]
        %v1377 = vld [vmem:[#allocation9 + $0x1270] sm:$0xff]
        %v1378 = vld [vmem:[#allocation9 + $0x1278] sm:$0xff]
        %v1379 = vld [vmem:[#allocation9 + $0x1280] sm:$0xff]
        %v1380 = vld [vmem:[#allocation9 + $0x1288] sm:$0xff]
        %v1381 = vld [vmem:[#allocation9 + $0x1290] sm:$0xff]
        %v1382 = vld [vmem:[#allocation9 + $0x1298] sm:$0xff]
        %v1383 = vld [vmem:[#allocation9 + $0x12a0] sm:$0xff]
        %v1384 = vld [vmem:[#allocation9 + $0x12a8] sm:$0xff]
        %v1385 = vld [vmem:[#allocation9 + $0x12b0] sm:$0xff]
        %v1386 = vld [vmem:[#allocation9 + $0x12b8] sm:$0xff]
        %v1387 = vld [vmem:[#allocation9 + $0x12c0] sm:$0xff]
        %v1388 = vld [vmem:[#allocation9 + $0x12c8] sm:$0xff]
        %v1389 = vld [vmem:[#allocation9 + $0x12d0] sm:$0xff]
        %v1390 = vld [vmem:[#allocation9 + $0x12d8] sm:$0xff]
        %v1391 = vld [vmem:[#allocation9 + $0x12e0] sm:$0xff]
        %v1392 = vld [vmem:[#allocation9 + $0x12e8] sm:$0xff]
        %v1393 = vld [vmem:[#allocation9 + $0x12f0] sm:$0xff]
        %v1394 = vld [vmem:[#allocation9 + $0x12f8] sm:$0xff]
        %v1395 = vld [vmem:[#allocation9 + $0x1300] sm:$0xff]
        %v1396 = vld [vmem:[#allocation9 + $0x1308] sm:$0xff]
        %v1397 = vld [vmem:[#allocation9 + $0x1310] sm:$0xff]
        %v1398 = vld [vmem:[#allocation9 + $0x1318] sm:$0xff]
        %v1399 = vld [vmem:[#allocation9 + $0x1320] sm:$0xff]
        %v1400 = vld [vmem:[#allocation9 + $0x1328] sm:$0xff]
        %v1401 = vld [vmem:[#allocation9 + $0x1330] sm:$0xff]
        %v1402 = vld [vmem:[#allocation9 + $0x1338] sm:$0xff]
        %v1403 = vld [vmem:[#allocation9 + $0x1340] sm:$0xff]
        %v1404 = vld [vmem:[#allocation9 + $0x1348] sm:$0xff]
        %v1405 = vld [vmem:[#allocation9 + $0x1350] sm:$0xff]
        %v1406 = vld [vmem:[#allocation9 + $0x1358] sm:$0xff]
        %v1407 = vld [vmem:[#allocation9 + $0x1360] sm:$0xff]
        %v1408 = vld [vmem:[#allocation9 + $0x1368] sm:$0xff]
        %v1409 = vld [vmem:[#allocation9 + $0x1370] sm:$0xff]
        %v1410 = vld [vmem:[#allocation9 + $0x1378] sm:$0xff]
        %v1411 = vld [vmem:[#allocation9 + $0x1380] sm:$0xff]
        %v1412 = vld [vmem:[#allocation9 + $0x1388] sm:$0xff]
        %v1413 = vld [vmem:[#allocation9 + $0x1390] sm:$0xff]
        %v1414 = vld [vmem:[#allocation9 + $0x1398] sm:$0xff]
        %v1415 = vld [vmem:[#allocation9 + $0x13a0] sm:$0xff]
        %v1416 = vld [vmem:[#allocation9 + $0x13a8] sm:$0xff]
        %v1417 = vld [vmem:[#allocation9 + $0x13b0] sm:$0xff]
        %v1418 = vld [vmem:[#allocation9 + $0x13b8] sm:$0xff]
        %v1419 = vld [vmem:[#allocation9 + $0x13c0] sm:$0xff]
        %v1420 = vld [vmem:[#allocation9 + $0x13c8] sm:$0xff]
        %v1421 = vld [vmem:[#allocation9 + $0x13d0] sm:$0xff]
        %v1422 = vld [vmem:[#allocation9 + $0x13d8] sm:$0xff]
        %v1423 = vld [vmem:[#allocation9 + $0x13e0] sm:$0xff]
        %v1424 = vld [vmem:[#allocation9 + $0x13e8] sm:$0xff]
        %v1425 = vld [vmem:[#allocation9 + $0x13f0] sm:$0xff]
        %v1426 = vld [vmem:[#allocation9 + $0x13f8] sm:$0xff]
        %v1427 = vld [vmem:[#allocation9 + $0x1400] sm:$0xff]
        %v1428 = vld [vmem:[#allocation9 + $0x1408] sm:$0xff]
        %v1429 = vld [vmem:[#allocation9 + $0x1410] sm:$0xff]
        %v1430 = vld [vmem:[#allocation9 + $0x1418] sm:$0xff]
        %v1431 = vld [vmem:[#allocation9 + $0x1420] sm:$0xff]
        %v1432 = vld [vmem:[#allocation9 + $0x1428] sm:$0xff]
        %v1433 = vld [vmem:[#allocation9 + $0x1430] sm:$0xff]
        %v1434 = vld [vmem:[#allocation9 + $0x1438] sm:$0xff]
        %v1435 = vld [vmem:[#allocation9 + $0x1440] sm:$0xff]
        %v1436 = vld [vmem:[#allocation9 + $0x1448] sm:$0xff]
        %v1437 = vld [vmem:[#allocation9 + $0x1450] sm:$0xff]
        %v1438 = vld [vmem:[#allocation9 + $0x1458] sm:$0xff]
        %v1439 = vld [vmem:[#allocation9 + $0x1460] sm:$0xff]
        %v1440 = vld [vmem:[#allocation9 + $0x1468] sm:$0xff]
        %v1441 = vld [vmem:[#allocation9 + $0x1470] sm:$0xff]
        %v1442 = vld [vmem:[#allocation9 + $0x1478] sm:$0xff]
        %v1443 = vld [vmem:[#allocation9 + $0x1480] sm:$0xff]
        %v1444 = vld [vmem:[#allocation9 + $0x1488] sm:$0xff]
        %v1445 = vld [vmem:[#allocation9 + $0x1490] sm:$0xff]
        %v1446 = vld [vmem:[#allocation9 + $0x1498] sm:$0xff]
        %v1447 = vld [vmem:[#allocation9 + $0x14a0] sm:$0xff]
        %v1448 = vld [vmem:[#allocation9 + $0x14a8] sm:$0xff]
        %v1449 = vld [vmem:[#allocation9 + $0x14b0] sm:$0xff]
        %v1450 = vld [vmem:[#allocation9 + $0x14b8] sm:$0xff]
        %v1451 = vld [vmem:[#allocation9 + $0x14c0] sm:$0xff]
        %v1452 = vld [vmem:[#allocation9 + $0x14c8] sm:$0xff]
        %v1453 = vld [vmem:[#allocation9 + $0x14d0] sm:$0xff]
        %v1454 = vld [vmem:[#allocation9 + $0x14d8] sm:$0xff]
        %v1455 = vld [vmem:[#allocation9 + $0x14e0] sm:$0xff]
        %v1456 = vld [vmem:[#allocation9 + $0x14e8] sm:$0xff]
        %v1457 = vld [vmem:[#allocation9 + $0x14f0] sm:$0xff]
        %v1458 = vld [vmem:[#allocation9 + $0x14f8] sm:$0xff]
        %v1459 = vld [vmem:[#allocation9 + $0x1500] sm:$0xff]
        %v1460 = vld [vmem:[#allocation9 + $0x1508] sm:$0xff]
        %v1461 = vld [vmem:[#allocation9 + $0x1510] sm:$0xff]
        %v1462 = vld [vmem:[#allocation9 + $0x1518] sm:$0xff]
        %v1463 = vld [vmem:[#allocation9 + $0x1520] sm:$0xff]
        %v1464 = vld [vmem:[#allocation9 + $0x1528] sm:$0xff]
        %v1465 = vld [vmem:[#allocation9 + $0x1530] sm:$0xff]
        %v1466 = vld [vmem:[#allocation9 + $0x1538] sm:$0xff]
        %v1467 = vld [vmem:[#allocation9 + $0x1540] sm:$0xff]
        %v1468 = vld [vmem:[#allocation9 + $0x1548] sm:$0xff]
        %v1469 = vld [vmem:[#allocation9 + $0x1550] sm:$0xff]
        %v1470 = vld [vmem:[#allocation9 + $0x1558] sm:$0xff]
        %v1471 = vld [vmem:[#allocation9 + $0x1560] sm:$0xff]
        %v1472 = vld [vmem:[#allocation9 + $0x1568] sm:$0xff]
        %v1473 = vld [vmem:[#allocation9 + $0x1570] sm:$0xff]
        %v1474 = vld [vmem:[#allocation9 + $0x1578] sm:$0xff]
        %v1475 = vld [vmem:[#allocation9 + $0x1580] sm:$0xff]
        %v1476 = vld [vmem:[#allocation9 + $0x1588] sm:$0xff]
        %v1477 = vld [vmem:[#allocation9 + $0x1590] sm:$0xff]
        %v1478 = vld [vmem:[#allocation9 + $0x1598] sm:$0xff]
        %v1479 = vld [vmem:[#allocation9 + $0x15a0] sm:$0xff]
        %v1480 = vld [vmem:[#allocation9 + $0x15a8] sm:$0xff]
        %v1481 = vld [vmem:[#allocation9 + $0x15b0] sm:$0xff]
        %v1482 = vld [vmem:[#allocation9 + $0x15b8] sm:$0xff]
        %v1483 = vld [vmem:[#allocation9 + $0x15c0] sm:$0xff]
        %v1484 = vld [vmem:[#allocation9 + $0x15c8] sm:$0xff]
        %v1485 = vld [vmem:[#allocation9 + $0x15d0] sm:$0xff]
        %v1486 = vld [vmem:[#allocation9 + $0x15d8] sm:$0xff]
        %v1487 = vld [vmem:[#allocation9 + $0x15e0] sm:$0xff]
        %v1488 = vld [vmem:[#allocation9 + $0x15e8] sm:$0xff]
        %v1489 = vld [vmem:[#allocation9 + $0x15f0] sm:$0xff]
        %v1490 = vld [vmem:[#allocation9 + $0x15f8] sm:$0xff]
        %v1491 = vld [vmem:[#allocation9 + $0x1600] sm:$0xff]
        %v1492 = vld [vmem:[#allocation9 + $0x1608] sm:$0xff]
        %v1493 = vld [vmem:[#allocation9 + $0x1610] sm:$0xff]
        %v1494 = vld [vmem:[#allocation9 + $0x1618] sm:$0xff]
        %v1495 = vld [vmem:[#allocation9 + $0x1620] sm:$0xff]
        %v1496 = vld [vmem:[#allocation9 + $0x1628] sm:$0xff]
        %v1497 = vld [vmem:[#allocation9 + $0x1630] sm:$0xff]
        %v1498 = vld [vmem:[#allocation9 + $0x1638] sm:$0xff]
        %v1499 = vld [vmem:[#allocation9 + $0x1640] sm:$0xff]
        %v1500 = vld [vmem:[#allocation9 + $0x1648] sm:$0xff]
        %v1501 = vld [vmem:[#allocation9 + $0x1650] sm:$0xff]
        %v1502 = vld [vmem:[#allocation9 + $0x1658] sm:$0xff]
        %v1503 = vld [vmem:[#allocation9 + $0x1660] sm:$0xff]
        %v1504 = vld [vmem:[#allocation9 + $0x1668] sm:$0xff]
        %v1505 = vld [vmem:[#allocation9 + $0x1670] sm:$0xff]
        %v1506 = vld [vmem:[#allocation9 + $0x1678] sm:$0xff]
        %v1507 = vld [vmem:[#allocation9 + $0x1680] sm:$0xff]
        %v1508 = vld [vmem:[#allocation9 + $0x1688] sm:$0xff]
        %v1509 = vld [vmem:[#allocation9 + $0x1690] sm:$0xff]
        %v1510 = vld [vmem:[#allocation9 + $0x1698] sm:$0xff]
        %v1511 = vld [vmem:[#allocation9 + $0x16a0] sm:$0xff]
        %v1512 = vld [vmem:[#allocation9 + $0x16a8] sm:$0xff]
        %v1513 = vld [vmem:[#allocation9 + $0x16b0] sm:$0xff]
        %v1514 = vld [vmem:[#allocation9 + $0x16b8] sm:$0xff]
        %v1515 = vld [vmem:[#allocation9 + $0x16c0] sm:$0xff]
        %v1516 = vld [vmem:[#allocation9 + $0x16c8] sm:$0xff]
        %v1517 = vld [vmem:[#allocation9 + $0x16d0] sm:$0xff]
        %v1518 = vld [vmem:[#allocation9 + $0x16d8] sm:$0xff]
        %v1519 = vld [vmem:[#allocation9 + $0x16e0] sm:$0xff]
        %v1520 = vld [vmem:[#allocation9 + $0x16e8] sm:$0xff]
        %v1521 = vld [vmem:[#allocation9 + $0x16f0] sm:$0xff]
        %v1522 = vld [vmem:[#allocation9 + $0x16f8] sm:$0xff]
        %v1523 = vld [vmem:[#allocation9 + $0x1700] sm:$0xff]
        %v1524 = vld [vmem:[#allocation9 + $0x1708] sm:$0xff]
        %v1525 = vld [vmem:[#allocation9 + $0x1710] sm:$0xff]
        %v1526 = vld [vmem:[#allocation9 + $0x1718] sm:$0xff]
        %v1527 = vld [vmem:[#allocation9 + $0x1720] sm:$0xff]
        %v1528 = vld [vmem:[#allocation9 + $0x1728] sm:$0xff]
        %v1529 = vld [vmem:[#allocation9 + $0x1730] sm:$0xff]
        %v1530 = vld [vmem:[#allocation9 + $0x1738] sm:$0xff]
        %v1531 = vld [vmem:[#allocation9 + $0x1740] sm:$0xff]
        %v1532 = vld [vmem:[#allocation9 + $0x1748] sm:$0xff]
        %v1533 = vld [vmem:[#allocation9 + $0x1750] sm:$0xff]
        %v1534 = vld [vmem:[#allocation9 + $0x1758] sm:$0xff]
        %v1535 = vld [vmem:[#allocation9 + $0x1760] sm:$0xff]
        %v1536 = vld [vmem:[#allocation9 + $0x1768] sm:$0xff]
        %v1537 = vld [vmem:[#allocation9 + $0x1770] sm:$0xff]
        %v1538 = vld [vmem:[#allocation9 + $0x1778] sm:$0xff]
        %v1539 = vld [vmem:[#allocation9 + $0x1780] sm:$0xff]
        %v1540 = vld [vmem:[#allocation9 + $0x1788] sm:$0xff]
        %v1541 = vld [vmem:[#allocation9 + $0x1790] sm:$0xff]
        %v1542 = vld [vmem:[#allocation9 + $0x1798] sm:$0xff]
        %v1543 = vld [vmem:[#allocation9 + $0x17a0] sm:$0xff]
        %v1544 = vld [vmem:[#allocation9 + $0x17a8] sm:$0xff]
        %v1545 = vld [vmem:[#allocation9 + $0x17b0] sm:$0xff]
        %v1546 = vld [vmem:[#allocation9 + $0x17b8] sm:$0xff]
        %v1547 = vld [vmem:[#allocation9 + $0x17c0] sm:$0xff]
        %v1548 = vld [vmem:[#allocation9 + $0x17c8] sm:$0xff]
        %v1549 = vld [vmem:[#allocation9 + $0x17d0] sm:$0xff]
        %v1550 = vld [vmem:[#allocation9 + $0x17d8] sm:$0xff]
        %v1551 = vld [vmem:[#allocation9 + $0x17e0] sm:$0xff]
        %v1552 = vld [vmem:[#allocation9 + $0x17e8] sm:$0xff]
        %v1553 = vld [vmem:[#allocation9 + $0x17f0] sm:$0xff]
        %v1554 = vld [vmem:[#allocation9 + $0x17f8] sm:$0xff]
        %v1555 = vld [vmem:[#allocation9 + $0x1800] sm:$0xff]
        %v1556 = vld [vmem:[#allocation9 + $0x1808] sm:$0xff]
        %v1557 = vld [vmem:[#allocation9 + $0x1810] sm:$0xff]
        %v1558 = vld [vmem:[#allocation9 + $0x1818] sm:$0xff]
        %v1559 = vld [vmem:[#allocation9 + $0x1820] sm:$0xff]
        %v1560 = vld [vmem:[#allocation9 + $0x1828] sm:$0xff]
        %v1561 = vld [vmem:[#allocation9 + $0x1830] sm:$0xff]
        %v1562 = vld [vmem:[#allocation9 + $0x1838] sm:$0xff]
        %v1563 = vld [vmem:[#allocation9 + $0x1840] sm:$0xff]
        %v1564 = vld [vmem:[#allocation9 + $0x1848] sm:$0xff]
        %v1565 = vld [vmem:[#allocation9 + $0x1850] sm:$0xff]
        %v1566 = vld [vmem:[#allocation9 + $0x1858] sm:$0xff]
        %v1567 = vld [vmem:[#allocation9 + $0x1860] sm:$0xff]
        %v1568 = vld [vmem:[#allocation9 + $0x1868] sm:$0xff]
        %v1569 = vld [vmem:[#allocation9 + $0x1870] sm:$0xff]
        %v1570 = vld [vmem:[#allocation9 + $0x1878] sm:$0xff]
        %v1571 = vld [vmem:[#allocation9 + $0x1880] sm:$0xff]
        %v1572 = vld [vmem:[#allocation9 + $0x1888] sm:$0xff]
        %v1573 = vld [vmem:[#allocation9 + $0x1890] sm:$0xff]
        %v1574 = vld [vmem:[#allocation9 + $0x1898] sm:$0xff]
        %v1575 = vld [vmem:[#allocation9 + $0x18a0] sm:$0xff]
        %v1576 = vld [vmem:[#allocation9 + $0x18a8] sm:$0xff]
        %v1577 = vld [vmem:[#allocation9 + $0x18b0] sm:$0xff]
        %v1578 = vld [vmem:[#allocation9 + $0x18b8] sm:$0xff]
        %v1579 = vld [vmem:[#allocation9 + $0x18c0] sm:$0xff]
        %v1580 = vld [vmem:[#allocation9 + $0x18c8] sm:$0xff]
        %v1581 = vld [vmem:[#allocation9 + $0x18d0] sm:$0xff]
        %v1582 = vld [vmem:[#allocation9 + $0x18d8] sm:$0xff]
        %v1583 = vld [vmem:[#allocation9 + $0x18e0] sm:$0xff]
        %v1584 = vld [vmem:[#allocation9 + $0x18e8] sm:$0xff]
        %v1585 = vld [vmem:[#allocation9 + $0x18f0] sm:$0xff]
        %v1586 = vld [vmem:[#allocation9 + $0x18f8] sm:$0xff]
        %v1587 = vld [vmem:[#allocation9 + $0x1900] sm:$0xff]
        %v1588 = vld [vmem:[#allocation9 + $0x1908] sm:$0xff]
        %v1589 = vld [vmem:[#allocation9 + $0x1910] sm:$0xff]
        %v1590 = vld [vmem:[#allocation9 + $0x1918] sm:$0xff]
        %v1591 = vld [vmem:[#allocation9 + $0x1920] sm:$0xff]
        %v1592 = vld [vmem:[#allocation9 + $0x1928] sm:$0xff]
        %v1593 = vld [vmem:[#allocation9 + $0x1930] sm:$0xff]
        %v1594 = vld [vmem:[#allocation9 + $0x1938] sm:$0xff]
        %v1595 = vld [vmem:[#allocation9 + $0x1940] sm:$0xff]
        %v1596 = vld [vmem:[#allocation9 + $0x1948] sm:$0xff]
        %v1597 = vld [vmem:[#allocation9 + $0x1950] sm:$0xff]
        %v1598 = vld [vmem:[#allocation9 + $0x1958] sm:$0xff]
        %v1599 = vld [vmem:[#allocation9 + $0x1960] sm:$0xff]
        %v1600 = vld [vmem:[#allocation9 + $0x1968] sm:$0xff]
        %v1601 = vld [vmem:[#allocation9 + $0x1970] sm:$0xff]
        %v1602 = vld [vmem:[#allocation9 + $0x1978] sm:$0xff]
        %v1603 = vld [vmem:[#allocation9 + $0x1980] sm:$0xff]
        %v1604 = vld [vmem:[#allocation9 + $0x1988] sm:$0xff]
        %v1605 = vld [vmem:[#allocation9 + $0x1990] sm:$0xff]
        %v1606 = vld [vmem:[#allocation9 + $0x1998] sm:$0xff]
        %v1607 = vld [vmem:[#allocation9 + $0x19a0] sm:$0xff]
        %v1608 = vld [vmem:[#allocation9 + $0x19a8] sm:$0xff]
        %v1609 = vld [vmem:[#allocation9 + $0x19b0] sm:$0xff]
        %v1610 = vld [vmem:[#allocation9 + $0x19b8] sm:$0xff]
        %v1611 = vld [vmem:[#allocation9 + $0x19c0] sm:$0xff]
        %v1612 = vld [vmem:[#allocation9 + $0x19c8] sm:$0xff]
        %v1613 = vld [vmem:[#allocation9 + $0x19d0] sm:$0xff]
        %v1614 = vld [vmem:[#allocation9 + $0x19d8] sm:$0xff]
        %v1615 = vld [vmem:[#allocation9 + $0x19e0] sm:$0xff]
        %v1616 = vld [vmem:[#allocation9 + $0x19e8] sm:$0xff]
        %v1617 = vld [vmem:[#allocation9 + $0x19f0] sm:$0xff]
        %v1618 = vld [vmem:[#allocation9 + $0x19f8] sm:$0xff]
        %v1619 = vld [vmem:[#allocation9 + $0x1a00] sm:$0xff]
        %v1620 = vld [vmem:[#allocation9 + $0x1a08] sm:$0xff]
        %v1621 = vld [vmem:[#allocation9 + $0x1a10] sm:$0xff]
        %v1622 = vld [vmem:[#allocation9 + $0x1a18] sm:$0xff]
        %v1623 = vld [vmem:[#allocation9 + $0x1a20] sm:$0xff]
        %v1624 = vld [vmem:[#allocation9 + $0x1a28] sm:$0xff]
        %v1625 = vld [vmem:[#allocation9 + $0x1a30] sm:$0xff]
        %v1626 = vld [vmem:[#allocation9 + $0x1a38] sm:$0xff]
        %v1627 = vld [vmem:[#allocation9 + $0x1a40] sm:$0xff]
        %v1628 = vld [vmem:[#allocation9 + $0x1a48] sm:$0xff]
        %v1629 = vld [vmem:[#allocation9 + $0x1a50] sm:$0xff]
        %v1630 = vld [vmem:[#allocation9 + $0x1a58] sm:$0xff]
        %v1631 = vld [vmem:[#allocation9 + $0x1a60] sm:$0xff]
        %v1632 = vld [vmem:[#allocation9 + $0x1a68] sm:$0xff]
        %v1633 = vld [vmem:[#allocation9 + $0x1a70] sm:$0xff]
        %v1634 = vld [vmem:[#allocation9 + $0x1a78] sm:$0xff]
        %v1635 = vld [vmem:[#allocation9 + $0x1a80] sm:$0xff]
        %v1636 = vld [vmem:[#allocation9 + $0x1a88] sm:$0xff]
        %v1637 = vld [vmem:[#allocation9 + $0x1a90] sm:$0xff]
        %v1638 = vld [vmem:[#allocation9 + $0x1a98] sm:$0xff]
        %v1639 = vld [vmem:[#allocation9 + $0x1aa0] sm:$0xff]
        %v1640 = vld [vmem:[#allocation9 + $0x1aa8] sm:$0xff]
        %v1641 = vld [vmem:[#allocation9 + $0x1ab0] sm:$0xff]
        %v1642 = vld [vmem:[#allocation9 + $0x1ab8] sm:$0xff]
        %v1643 = vld [vmem:[#allocation9 + $0x1ac0] sm:$0xff]
        %v1644 = vld [vmem:[#allocation9 + $0x1ac8] sm:$0xff]
        %v1645 = vld [vmem:[#allocation9 + $0x1ad0] sm:$0xff]
        %v1646 = vld [vmem:[#allocation9 + $0x1ad8] sm:$0xff]
        %v1647 = vld [vmem:[#allocation9 + $0x1ae0] sm:$0xff]
        %v1648 = vld [vmem:[#allocation9 + $0x1ae8] sm:$0xff]
        %v1649 = vld [vmem:[#allocation9 + $0x1af0] sm:$0xff]
        %v1650 = vld [vmem:[#allocation9 + $0x1af8] sm:$0xff]
        %v1651 = vld [vmem:[#allocation9 + $0x1b00] sm:$0xff]
        %v1652 = vld [vmem:[#allocation9 + $0x1b08] sm:$0xff]
        %v1653 = vld [vmem:[#allocation9 + $0x1b10] sm:$0xff]
        %v1654 = vld [vmem:[#allocation9 + $0x1b18] sm:$0xff]
        %v1655 = vld [vmem:[#allocation9 + $0x1b20] sm:$0xff]
        %v1656 = vld [vmem:[#allocation9 + $0x1b28] sm:$0xff]
        %v1657 = vld [vmem:[#allocation9 + $0x1b30] sm:$0xff]
        %v1658 = vld [vmem:[#allocation9 + $0x1b38] sm:$0xff]
        %v1659 = vld [vmem:[#allocation9 + $0x1b40] sm:$0xff]
        %v1660 = vld [vmem:[#allocation9 + $0x1b48] sm:$0xff]
        %v1661 = vld [vmem:[#allocation9 + $0x1b50] sm:$0xff]
        %v1662 = vld [vmem:[#allocation9 + $0x1b58] sm:$0xff]
        %v1663 = vld [vmem:[#allocation9 + $0x1b60] sm:$0xff]
        %v1664 = vld [vmem:[#allocation9 + $0x1b68] sm:$0xff]
        %v1665 = vld [vmem:[#allocation9 + $0x1b70] sm:$0xff]
        %v1666 = vld [vmem:[#allocation9 + $0x1b78] sm:$0xff]
        %v1667 = vld [vmem:[#allocation9 + $0x1b80] sm:$0xff]
        %v1668 = vld [vmem:[#allocation9 + $0x1b88] sm:$0xff]
        %v1669 = vld [vmem:[#allocation9 + $0x1b90] sm:$0xff]
        %v1670 = vld [vmem:[#allocation9 + $0x1b98] sm:$0xff]
        %v1671 = vld [vmem:[#allocation9 + $0x1ba0] sm:$0xff]
        %v1672 = vld [vmem:[#allocation9 + $0x1ba8] sm:$0xff]
        %v1673 = vld [vmem:[#allocation9 + $0x1bb0] sm:$0xff]
        %v1674 = vld [vmem:[#allocation9 + $0x1bb8] sm:$0xff]
        %v1675 = vld [vmem:[#allocation9 + $0x1bc0] sm:$0xff]
        %v1676 = vld [vmem:[#allocation9 + $0x1bc8] sm:$0xff]
        %v1677 = vld [vmem:[#allocation9 + $0x1bd0] sm:$0xff]
        %v1678 = vld [vmem:[#allocation9 + $0x1bd8] sm:$0xff]
        %v1679 = vld [vmem:[#allocation9 + $0x1be0] sm:$0xff]
        %v1680 = vld [vmem:[#allocation9 + $0x1be8] sm:$0xff]
        %v1681 = vld [vmem:[#allocation9 + $0x1bf0] sm:$0xff]
        %v1682 = vld [vmem:[#allocation9 + $0x1bf8] sm:$0xff]
        %v1683 = vld [vmem:[#allocation9 + $0x1c00] sm:$0xff]
        %v1684 = vld [vmem:[#allocation9 + $0x1c08] sm:$0xff]
        %v1685 = vld [vmem:[#allocation9 + $0x1c10] sm:$0xff]
        %v1686 = vld [vmem:[#allocation9 + $0x1c18] sm:$0xff]
        %v1687 = vld [vmem:[#allocation9 + $0x1c20] sm:$0xff]
        %v1688 = vld [vmem:[#allocation9 + $0x1c28] sm:$0xff]
        %v1689 = vld [vmem:[#allocation9 + $0x1c30] sm:$0xff]
        %v1690 = vld [vmem:[#allocation9 + $0x1c38] sm:$0xff]
        %v1691 = vld [vmem:[#allocation9 + $0x1c40] sm:$0xff]
        %v1692 = vld [vmem:[#allocation9 + $0x1c48] sm:$0xff]
        %v1693 = vld [vmem:[#allocation9 + $0x1c50] sm:$0xff]
        %v1694 = vld [vmem:[#allocation9 + $0x1c58] sm:$0xff]
        %v1695 = vld [vmem:[#allocation9 + $0x1c60] sm:$0xff]
        %v1696 = vld [vmem:[#allocation9 + $0x1c68] sm:$0xff]
        %v1697 = vld [vmem:[#allocation9 + $0x1c70] sm:$0xff]
        %v1698 = vld [vmem:[#allocation9 + $0x1c78] sm:$0xff]
        %v1699 = vld [vmem:[#allocation9 + $0x1c80] sm:$0xff]
        %v1700 = vld [vmem:[#allocation9 + $0x1c88] sm:$0xff]
        %v1701 = vld [vmem:[#allocation9 + $0x1c90] sm:$0xff]
        %v1702 = vld [vmem:[#allocation9 + $0x1c98] sm:$0xff]
        %v1703 = vld [vmem:[#allocation9 + $0x1ca0] sm:$0xff]
        %v1704 = vld [vmem:[#allocation9 + $0x1ca8] sm:$0xff]
        %v1705 = vld [vmem:[#allocation9 + $0x1cb0] sm:$0xff]
        %v1706 = vld [vmem:[#allocation9 + $0x1cb8] sm:$0xff]
        %v1707 = vld [vmem:[#allocation9 + $0x1cc0] sm:$0xff]
        %v1708 = vld [vmem:[#allocation9 + $0x1cc8] sm:$0xff]
        %v1709 = vld [vmem:[#allocation9 + $0x1cd0] sm:$0xff]
        %v1710 = vld [vmem:[#allocation9 + $0x1cd8] sm:$0xff]
        %v1711 = vld [vmem:[#allocation9 + $0x1ce0] sm:$0xff]
        %v1712 = vld [vmem:[#allocation9 + $0x1ce8] sm:$0xff]
        %v1713 = vld [vmem:[#allocation9 + $0x1cf0] sm:$0xff]
        %v1714 = vld [vmem:[#allocation9 + $0x1cf8] sm:$0xff]
        %v1715 = vld [vmem:[#allocation9 + $0x1d00] sm:$0xff]
        %v1716 = vld [vmem:[#allocation9 + $0x1d08] sm:$0xff]
        %v1717 = vld [vmem:[#allocation9 + $0x1d10] sm:$0xff]
        %v1718 = vld [vmem:[#allocation9 + $0x1d18] sm:$0xff]
        %v1719 = vld [vmem:[#allocation9 + $0x1d20] sm:$0xff]
        %v1720 = vld [vmem:[#allocation9 + $0x1d28] sm:$0xff]
        %v1721 = vld [vmem:[#allocation9 + $0x1d30] sm:$0xff]
        %v1722 = vld [vmem:[#allocation9 + $0x1d38] sm:$0xff]
        %v1723 = vld [vmem:[#allocation9 + $0x1d40] sm:$0xff]
        %v1724 = vld [vmem:[#allocation9 + $0x1d48] sm:$0xff]
        %v1725 = vld [vmem:[#allocation9 + $0x1d50] sm:$0xff]
        %v1726 = vld [vmem:[#allocation9 + $0x1d58] sm:$0xff]
        %v1727 = vld [vmem:[#allocation9 + $0x1d60] sm:$0xff]
        %v1728 = vld [vmem:[#allocation9 + $0x1d68] sm:$0xff]
        %v1729 = vld [vmem:[#allocation9 + $0x1d70] sm:$0xff]
        %v1730 = vld [vmem:[#allocation9 + $0x1d78] sm:$0xff]
        %v1731 = vld [vmem:[#allocation9 + $0x1d80] sm:$0xff]
        %v1732 = vld [vmem:[#allocation9 + $0x1d88] sm:$0xff]
        %v1733 = vld [vmem:[#allocation9 + $0x1d90] sm:$0xff]
        %v1734 = vld [vmem:[#allocation9 + $0x1d98] sm:$0xff]
        %v1735 = vld [vmem:[#allocation9 + $0x1da0] sm:$0xff]
        %v1736 = vld [vmem:[#allocation9 + $0x1da8] sm:$0xff]
        %v1737 = vld [vmem:[#allocation9 + $0x1db0] sm:$0xff]
        %v1738 = vld [vmem:[#allocation9 + $0x1db8] sm:$0xff]
        %v1739 = vld [vmem:[#allocation9 + $0x1dc0] sm:$0xff]
        %v1740 = vld [vmem:[#allocation9 + $0x1dc8] sm:$0xff]
        %v1741 = vld [vmem:[#allocation9 + $0x1dd0] sm:$0xff]
        %v1742 = vld [vmem:[#allocation9 + $0x1dd8] sm:$0xff]
        %v1743 = vld [vmem:[#allocation9 + $0x1de0] sm:$0xff]
        %v1744 = vld [vmem:[#allocation9 + $0x1de8] sm:$0xff]
        %v1745 = vld [vmem:[#allocation9 + $0x1df0] sm:$0xff]
        %v1746 = vld [vmem:[#allocation9 + $0x1df8] sm:$0xff]
        %v1747 = vld [vmem:[#allocation9 + $0x1e00] sm:$0xff]
        %v1748 = vld [vmem:[#allocation9 + $0x1e08] sm:$0xff]
        %v1749 = vld [vmem:[#allocation9 + $0x1e10] sm:$0xff]
        %v1750 = vld [vmem:[#allocation9 + $0x1e18] sm:$0xff]
        %v1751 = vld [vmem:[#allocation9 + $0x1e20] sm:$0xff]
        %v1752 = vld [vmem:[#allocation9 + $0x1e28] sm:$0xff]
        %v1753 = vld [vmem:[#allocation9 + $0x1e30] sm:$0xff]
        %v1754 = vld [vmem:[#allocation9 + $0x1e38] sm:$0xff]
        %v1755 = vld [vmem:[#allocation9 + $0x1e40] sm:$0xff]
        %v1756 = vld [vmem:[#allocation9 + $0x1e48] sm:$0xff]
        %v1757 = vld [vmem:[#allocation9 + $0x1e50] sm:$0xff]
        %v1758 = vld [vmem:[#allocation9 + $0x1e58] sm:$0xff]
        %v1759 = vld [vmem:[#allocation9 + $0x1e60] sm:$0xff]
        %v1760 = vld [vmem:[#allocation9 + $0x1e68] sm:$0xff]
        %v1761 = vld [vmem:[#allocation9 + $0x1e70] sm:$0xff]
        %v1762 = vld [vmem:[#allocation9 + $0x1e78] sm:$0xff]
        %v1763 = vld [vmem:[#allocation9 + $0x1e80] sm:$0xff]
        %v1764 = vld [vmem:[#allocation9 + $0x1e88] sm:$0xff]
        %v1765 = vld [vmem:[#allocation9 + $0x1e90] sm:$0xff]
        %v1766 = vld [vmem:[#allocation9 + $0x1e98] sm:$0xff]
        %v1767 = vld [vmem:[#allocation9 + $0x1ea0] sm:$0xff]
        %v1768 = vld [vmem:[#allocation9 + $0x1ea8] sm:$0xff]
        %v1769 = vld [vmem:[#allocation9 + $0x1eb0] sm:$0xff]
        %v1770 = vld [vmem:[#allocation9 + $0x1eb8] sm:$0xff]
        %v1771 = vld [vmem:[#allocation9 + $0x1ec0] sm:$0xff]
        %v1772 = vld [vmem:[#allocation9 + $0x1ec8] sm:$0xff]
        %v1773 = vld [vmem:[#allocation9 + $0x1ed0] sm:$0xff]
        %v1774 = vld [vmem:[#allocation9 + $0x1ed8] sm:$0xff]
        %v1775 = vld [vmem:[#allocation9 + $0x1ee0] sm:$0xff]
        %v1776 = vld [vmem:[#allocation9 + $0x1ee8] sm:$0xff]
        %v1777 = vld [vmem:[#allocation9 + $0x1ef0] sm:$0xff]
        %v1778 = vld [vmem:[#allocation9 + $0x1ef8] sm:$0xff]
        %v1779 = vld [vmem:[#allocation9 + $0x1f00] sm:$0xff]
        %v1780 = vld [vmem:[#allocation9 + $0x1f08] sm:$0xff]
        %v1781 = vld [vmem:[#allocation9 + $0x1f10] sm:$0xff]
        %v1782 = vld [vmem:[#allocation9 + $0x1f18] sm:$0xff]
        %v1783 = vld [vmem:[#allocation9 + $0x1f20] sm:$0xff]
        %v1784 = vld [vmem:[#allocation9 + $0x1f28] sm:$0xff]
        %v1785 = vld [vmem:[#allocation9 + $0x1f30] sm:$0xff]
        %v1786 = vld [vmem:[#allocation9 + $0x1f38] sm:$0xff]
        %v1787 = vld [vmem:[#allocation9 + $0x1f40] sm:$0xff]
        %v1788 = vld [vmem:[#allocation9 + $0x1f48] sm:$0xff]
        %v1789 = vld [vmem:[#allocation9 + $0x1f50] sm:$0xff]
        %v1790 = vld [vmem:[#allocation9 + $0x1f58] sm:$0xff]
        %v1791 = vld [vmem:[#allocation9 + $0x1f60] sm:$0xff]
        %v1792 = vld [vmem:[#allocation9 + $0x1f68] sm:$0xff]
        %v1793 = vld [vmem:[#allocation9 + $0x1f70] sm:$0xff]
        %v1794 = vld [vmem:[#allocation9 + $0x1f78] sm:$0xff]
        %v1795 = vld [vmem:[#allocation9 + $0x1f80] sm:$0xff]
        %v1796 = vld [vmem:[#allocation9 + $0x1f88] sm:$0xff]
        %v1797 = vld [vmem:[#allocation9 + $0x1f90] sm:$0xff]
        %v1798 = vld [vmem:[#allocation9 + $0x1f98] sm:$0xff]
        %v1799 = vld [vmem:[#allocation9 + $0x1fa0] sm:$0xff]
        %v1800 = vld [vmem:[#allocation9 + $0x1fa8] sm:$0xff]
        %v1801 = vld [vmem:[#allocation9 + $0x1fb0] sm:$0xff]
        %v1802 = vld [vmem:[#allocation9 + $0x1fb8] sm:$0xff]
        %v1803 = vld [vmem:[#allocation9 + $0x1fc0] sm:$0xff]
        %v1804 = vld [vmem:[#allocation9 + $0x1fc8] sm:$0xff]
        %v1805 = vld [vmem:[#allocation9 + $0x1fd0] sm:$0xff]
        %v1806 = vld [vmem:[#allocation9 + $0x1fd8] sm:$0xff]
        %v1807 = vld [vmem:[#allocation9 + $0x1fe0] sm:$0xff]
        %v1808 = vld [vmem:[#allocation9 + $0x1fe8] sm:$0xff]
        %v1809 = vld [vmem:[#allocation9 + $0x1ff0] sm:$0xff]
        %v1810 = vld [vmem:[#allocation9 + $0x1ff8] sm:$0xff]
        %v1811 = vld [vmem:[#allocation11] sm:$0xff]
        %v1813 = vperm.slane %v1811, 0
        %v1814 = vperm.slane %v1811, 1
        %v1815 = vperm.slane %v1811, 2
        %v1816 = vperm.slane %v1811, 3
        %v1817 = vperm.slane %v1811, 4
        %v1818 = vperm.slane %v1811, 5
        %v1819 = vperm.slane %v1811, 6
        %v1820 = vperm.slane %v1811, 7
        %1829 = vmatpush.msra.mxu0 %v907
        %1830 = vmatpush.msra.mxu0 %v899
        %1831 = vmatpush.msra.mxu0 %v891
        %1832 = vmatpush.msra.mxu0 %v883
        %1833 = vmatpush.msra.mxu0 %v875
        %1834 = vmatpush.msra.mxu0 %v867
        %1835 = vmatpush.msra.mxu0 %v859
        %1836 = vmatpush.msra.mxu0 %v851
        %1837 = vmatpush.msra.mxu0 %v843
        %1838 = vmatpush.msra.mxu0 %v835
        %1839 = vmatpush.msra.mxu0 %v827
        %1840 = vmatpush.msra.mxu0 %v819
        %1841 = vmatpush.msra.mxu0 %v811
        %1842 = vmatpush.msra.mxu0 %v803
        %1843 = vmatpush.msra.mxu0 %v795
        %1844 = vmatpush.msra.mxu0 %v787
        %1845 = vmatmul.f32.gmra.mxu0 %v771
        %v1846 = vpop.f32.mrf.mxu0
        %v1847 = vadd.f32 %v1813, %v1846
        %1848 = vmatmul.f32.gmra.mxu0 %v779
        %v1849 = vpop.f32.mrf.mxu0
        %v1850 = vadd.f32 %v1813, %v1849
        %1851 = vdwg.mxu0
        %1852 = vmatpush.msra.mxu0 %v1035
        %1853 = vmatpush.msra.mxu0 %v1027
        %1854 = vmatpush.msra.mxu0 %v1019
        %1855 = vmatpush.msra.mxu0 %v1011
        %1856 = vmatpush.msra.mxu0 %v1003
        %1857 = vmatpush.msra.mxu0 %v995
        %1858 = vmatpush.msra.mxu0 %v987
        %1859 = vmatpush.msra.mxu0 %v979
        %1860 = vmatpush.msra.mxu0 %v971
        %1861 = vmatpush.msra.mxu0 %v963
        %1862 = vmatpush.msra.mxu0 %v955
        %1863 = vmatpush.msra.mxu0 %v947
        %1864 = vmatpush.msra.mxu0 %v939
        %1865 = vmatpush.msra.mxu0 %v931
        %1866 = vmatpush.msra.mxu0 %v923
        %1867 = vmatpush.msra.mxu0 %v915
        %1868 = vmatmul.f32.gmra.mxu0 %v772
        %v1869 = vpop.f32.mrf.mxu0
        %v1870 = vadd.f32 %v1847, %v1869
        %1871 = vmatmul.f32.gmra.mxu0 %v780
        %v1872 = vpop.f32.mrf.mxu0
        %v1873 = vadd.f32 %v1850, %v1872
        %1874 = vdwg.mxu0
        %1875 = vmatpush.msra.mxu0 %v1163
        %1876 = vmatpush.msra.mxu0 %v1155
        %1877 = vmatpush.msra.mxu0 %v1147
        %1878 = vmatpush.msra.mxu0 %v1139
        %1879 = vmatpush.msra.mxu0 %v1131
        %1880 = vmatpush.msra.mxu0 %v1123
        %1881 = vmatpush.msra.mxu0 %v1115
        %1882 = vmatpush.msra.mxu0 %v1107
        %1883 = vmatpush.msra.mxu0 %v1099
        %1884 = vmatpush.msra.mxu0 %v1091
        %1885 = vmatpush.msra.mxu0 %v1083
        %1886 = vmatpush.msra.mxu0 %v1075
        %1887 = vmatpush.msra.mxu0 %v1067
        %1888 = vmatpush.msra.mxu0 %v1059
        %1889 = vmatpush.msra.mxu0 %v1051
        %1890 = vmatpush.msra.mxu0 %v1043
        %1891 = vmatmul.f32.gmra.mxu0 %v773
        %v1892 = vpop.f32.mrf.mxu0
        %v1893 = vadd.f32 %v1870, %v1892
        %1894 = vmatmul.f32.gmra.mxu0 %v781
        %v1895 = vpop.f32.mrf.mxu0
        %v1896 = vadd.f32 %v1873, %v1895
        %1897 = vdwg.mxu0
        %1898 = vmatpush.msra.mxu0 %v1291
        %1899 = vmatpush.msra.mxu0 %v1283
        %1900 = vmatpush.msra.mxu0 %v1275
        %1901 = vmatpush.msra.mxu0 %v1267
        %1902 = vmatpush.msra.mxu0 %v1259
        %1903 = vmatpush.msra.mxu0 %v1251
        %1904 = vmatpush.msra.mxu0 %v1243
        %1905 = vmatpush.msra.mxu0 %v1235
        %1906 = vmatpush.msra.mxu0 %v1227
        %1907 = vmatpush.msra.mxu0 %v1219
        %1908 = vmatpush.msra.mxu0 %v1211
        %1909 = vmatpush.msra.mxu0 %v1203
        %1910 = vmatpush.msra.mxu0 %v1195
        %1911 = vmatpush.msra.mxu0 %v1187
        %1912 = vmatpush.msra.mxu0 %v1179
        %1913 = vmatpush.msra.mxu0 %v1171
        %1914 = vmatmul.f32.gmra.mxu0 %v774
        %v1915 = vpop.f32.mrf.mxu0
        %v1916 = vadd.f32 %v1893, %v1915
        %1917 = vmatmul.f32.gmra.mxu0 %v782
        %v1918 = vpop.f32.mrf.mxu0
        %v1919 = vadd.f32 %v1896, %v1918
        %1920 = vdwg.mxu0
        %1921 = vmatpush.msra.mxu0 %v1419
        %1922 = vmatpush.msra.mxu0 %v1411
        %1923 = vmatpush.msra.mxu0 %v1403
        %1924 = vmatpush.msra.mxu0 %v1395
        %1925 = vmatpush.msra.mxu0 %v1387
        %1926 = vmatpush.msra.mxu0 %v1379
        %1927 = vmatpush.msra.mxu0 %v1371
        %1928 = vmatpush.msra.mxu0 %v1363
        %1929 = vmatpush.msra.mxu0 %v1355
        %1930 = vmatpush.msra.mxu0 %v1347
        %1931 = vmatpush.msra.mxu0 %v1339
        %1932 = vmatpush.msra.mxu0 %v1331
        %1933 = vmatpush.msra.mxu0 %v1323
        %1934 = vmatpush.msra.mxu0 %v1315
        %1935 = vmatpush.msra.mxu0 %v1307
        %1936 = vmatpush.msra.mxu0 %v1299
        %1937 = vmatmul.f32.gmra.mxu0 %v775
        %v1938 = vpop.f32.mrf.mxu0
        %v1939 = vadd.f32 %v1916, %v1938
        %1940 = vmatmul.f32.gmra.mxu0 %v783
        %v1941 = vpop.f32.mrf.mxu0
        %v1942 = vadd.f32 %v1919, %v1941
        %1943 = vdwg.mxu0
        %1944 = vmatpush.msra.mxu0 %v1547
        %1945 = vmatpush.msra.mxu0 %v1539
        %1946 = vmatpush.msra.mxu0 %v1531
        %1947 = vmatpush.msra.mxu0 %v1523
        %1948 = vmatpush.msra.mxu0 %v1515
        %1949 = vmatpush.msra.mxu0 %v1507
        %1950 = vmatpush.msra.mxu0 %v1499
        %1951 = vmatpush.msra.mxu0 %v1491
        %1952 = vmatpush.msra.mxu0 %v1483
        %1953 = vmatpush.msra.mxu0 %v1475
        %1954 = vmatpush.msra.mxu0 %v1467
        %1955 = vmatpush.msra.mxu0 %v1459
        %1956 = vmatpush.msra.mxu0 %v1451
        %1957 = vmatpush.msra.mxu0 %v1443
        %1958 = vmatpush.msra.mxu0 %v1435
        %1959 = vmatpush.msra.mxu0 %v1427
        %1960 = vmatmul.f32.gmra.mxu0 %v776
        %v1961 = vpop.f32.mrf.mxu0
        %v1962 = vadd.f32 %v1939, %v1961
        %1963 = vmatmul.f32.gmra.mxu0 %v784
        %v1964 = vpop.f32.mrf.mxu0
        %v1965 = vadd.f32 %v1942, %v1964
        %1966 = vdwg.mxu0
        %1967 = vmatpush.msra.mxu0 %v1675
        %1968 = vmatpush.msra.mxu0 %v1667
        %1969 = vmatpush.msra.mxu0 %v1659
        %1970 = vmatpush.msra.mxu0 %v1651
        %1971 = vmatpush.msra.mxu0 %v1643
        %1972 = vmatpush.msra.mxu0 %v1635
        %1973 = vmatpush.msra.mxu0 %v1627
        %1974 = vmatpush.msra.mxu0 %v1619
        %1975 = vmatpush.msra.mxu0 %v1611
        %1976 = vmatpush.msra.mxu0 %v1603
        %1977 = vmatpush.msra.mxu0 %v1595
        %1978 = vmatpush.msra.mxu0 %v1587
        %1979 = vmatpush.msra.mxu0 %v1579
        %1980 = vmatpush.msra.mxu0 %v1571
        %1981 = vmatpush.msra.mxu0 %v1563
        %1982 = vmatpush.msra.mxu0 %v1555
        %1983 = vmatmul.f32.gmra.mxu0 %v777
        %v1984 = vpop.f32.mrf.mxu0
        %v1985 = vadd.f32 %v1962, %v1984
        %1986 = vmatmul.f32.gmra.mxu0 %v785
        %v1987 = vpop.f32.mrf.mxu0
        %v1988 = vadd.f32 %v1965, %v1987
        %1989 = vdwg.mxu0
        %1990 = vmatpush.msra.mxu0 %v1803
        %1991 = vmatpush.msra.mxu0 %v1795
        %1992 = vmatpush.msra.mxu0 %v1787
        %1993 = vmatpush.msra.mxu0 %v1779
        %1994 = vmatpush.msra.mxu0 %v1771
        %1995 = vmatpush.msra.mxu0 %v1763
        %1996 = vmatpush.msra.mxu0 %v1755
        %1997 = vmatpush.msra.mxu0 %v1747
        %1998 = vmatpush.msra.mxu0 %v1739
        %1999 = vmatpush.msra.mxu0 %v1731
        %2000 = vmatpush.msra.mxu0 %v1723
        %2001 = vmatpush.msra.mxu0 %v1715
        %2002 = vmatpush.msra.mxu0 %v1707
        %2003 = vmatpush.msra.mxu0 %v1699
        %2004 = vmatpush.msra.mxu0 %v1691
        %2005 = vmatpush.msra.mxu0 %v1683
        %2006 = vmatmul.f32.gmra.mxu0 %v778
        %v2007 = vpop.f32.mrf.mxu0
        %v2008 = vadd.f32 %v1985, %v2007
        %2009 = vmatmul.f32.gmra.mxu0 %v786
        %v2010 = vpop.f32.mrf.mxu0
        %v2011 = vadd.f32 %v1988, %v2010
        %2012 = vdwg.mxu0
        %2013 = vmatpush.msra.mxu0 %v908
        %2014 = vmatpush.msra.mxu0 %v900
        %2015 = vmatpush.msra.mxu0 %v892
        %2016 = vmatpush.msra.mxu0 %v884
        %2017 = vmatpush.msra.mxu0 %v876
        %2018 = vmatpush.msra.mxu0 %v868
        %2019 = vmatpush.msra.mxu0 %v860
        %2020 = vmatpush.msra.mxu0 %v852
        %2021 = vmatpush.msra.mxu0 %v844
        %2022 = vmatpush.msra.mxu0 %v836
        %2023 = vmatpush.msra.mxu0 %v828
        %2024 = vmatpush.msra.mxu0 %v820
        %2025 = vmatpush.msra.mxu0 %v812
        %2026 = vmatpush.msra.mxu0 %v804
        %2027 = vmatpush.msra.mxu0 %v796
        %2028 = vmatpush.msra.mxu0 %v788
        %2029 = vmatmul.f32.gmra.mxu0 %v771
        %v2030 = vpop.f32.mrf.mxu0
        %v2031 = vadd.f32 %v1814, %v2030
        %2032 = vmatmul.f32.gmra.mxu0 %v779
        %v2033 = vpop.f32.mrf.mxu0
        %v2034 = vadd.f32 %v1814, %v2033
        %2035 = vdwg.mxu0
        %2036 = vmatpush.msra.mxu0 %v1036
        %2037 = vmatpush.msra.mxu0 %v1028
        %2038 = vmatpush.msra.mxu0 %v1020
        %2039 = vmatpush.msra.mxu0 %v1012
        %2040 = vmatpush.msra.mxu0 %v1004
        %2041 = vmatpush.msra.mxu0 %v996
        %2042 = vmatpush.msra.mxu0 %v988
        %2043 = vmatpush.msra.mxu0 %v980
        %2044 = vmatpush.msra.mxu0 %v972
        %2045 = vmatpush.msra.mxu0 %v964
        %2046 = vmatpush.msra.mxu0 %v956
        %2047 = vmatpush.msra.mxu0 %v948
        %2048 = vmatpush.msra.mxu0 %v940
        %2049 = vmatpush.msra.mxu0 %v932
        %2050 = vmatpush.msra.mxu0 %v924
        %2051 = vmatpush.msra.mxu0 %v916
        %2052 = vmatmul.f32.gmra.mxu0 %v772
        %v2053 = vpop.f32.mrf.mxu0
        %v2054 = vadd.f32 %v2031, %v2053
        %2055 = vmatmul.f32.gmra.mxu0 %v780
        %v2056 = vpop.f32.mrf.mxu0
        %v2057 = vadd.f32 %v2034, %v2056
        %2058 = vdwg.mxu0
        %2059 = vmatpush.msra.mxu0 %v1164
        %2060 = vmatpush.msra.mxu0 %v1156
        %2061 = vmatpush.msra.mxu0 %v1148
        %2062 = vmatpush.msra.mxu0 %v1140
        %2063 = vmatpush.msra.mxu0 %v1132
        %2064 = vmatpush.msra.mxu0 %v1124
        %2065 = vmatpush.msra.mxu0 %v1116
        %2066 = vmatpush.msra.mxu0 %v1108
        %2067 = vmatpush.msra.mxu0 %v1100
        %2068 = vmatpush.msra.mxu0 %v1092
        %2069 = vmatpush.msra.mxu0 %v1084
        %2070 = vmatpush.msra.mxu0 %v1076
        %2071 = vmatpush.msra.mxu0 %v1068
        %2072 = vmatpush.msra.mxu0 %v1060
        %2073 = vmatpush.msra.mxu0 %v1052
        %2074 = vmatpush.msra.mxu0 %v1044
        %2075 = vmatmul.f32.gmra.mxu0 %v773
        %v2076 = vpop.f32.mrf.mxu0
        %v2077 = vadd.f32 %v2054, %v2076
        %2078 = vmatmul.f32.gmra.mxu0 %v781
        %v2079 = vpop.f32.mrf.mxu0
        %v2080 = vadd.f32 %v2057, %v2079
        %2081 = vdwg.mxu0
        %2082 = vmatpush.msra.mxu0 %v1292
        %2083 = vmatpush.msra.mxu0 %v1284
        %2084 = vmatpush.msra.mxu0 %v1276
        %2085 = vmatpush.msra.mxu0 %v1268
        %2086 = vmatpush.msra.mxu0 %v1260
        %2087 = vmatpush.msra.mxu0 %v1252
        %2088 = vmatpush.msra.mxu0 %v1244
        %2089 = vmatpush.msra.mxu0 %v1236
        %2090 = vmatpush.msra.mxu0 %v1228
        %2091 = vmatpush.msra.mxu0 %v1220
        %2092 = vmatpush.msra.mxu0 %v1212
        %2093 = vmatpush.msra.mxu0 %v1204
        %2094 = vmatpush.msra.mxu0 %v1196
        %2095 = vmatpush.msra.mxu0 %v1188
        %2096 = vmatpush.msra.mxu0 %v1180
        %2097 = vmatpush.msra.mxu0 %v1172
        %2098 = vmatmul.f32.gmra.mxu0 %v774
        %v2099 = vpop.f32.mrf.mxu0
        %v2100 = vadd.f32 %v2077, %v2099
        %2101 = vmatmul.f32.gmra.mxu0 %v782
        %v2102 = vpop.f32.mrf.mxu0
        %v2103 = vadd.f32 %v2080, %v2102
        %2104 = vdwg.mxu0
        %2105 = vmatpush.msra.mxu0 %v1420
        %2106 = vmatpush.msra.mxu0 %v1412
        %2107 = vmatpush.msra.mxu0 %v1404
        %2108 = vmatpush.msra.mxu0 %v1396
        %2109 = vmatpush.msra.mxu0 %v1388
        %2110 = vmatpush.msra.mxu0 %v1380
        %2111 = vmatpush.msra.mxu0 %v1372
        %2112 = vmatpush.msra.mxu0 %v1364
        %2113 = vmatpush.msra.mxu0 %v1356
        %2114 = vmatpush.msra.mxu0 %v1348
        %2115 = vmatpush.msra.mxu0 %v1340
        %2116 = vmatpush.msra.mxu0 %v1332
        %2117 = vmatpush.msra.mxu0 %v1324
        %2118 = vmatpush.msra.mxu0 %v1316
        %2119 = vmatpush.msra.mxu0 %v1308
        %2120 = vmatpush.msra.mxu0 %v1300
        %2121 = vmatmul.f32.gmra.mxu0 %v775
        %v2122 = vpop.f32.mrf.mxu0
        %v2123 = vadd.f32 %v2100, %v2122
        %2124 = vmatmul.f32.gmra.mxu0 %v783
        %v2125 = vpop.f32.mrf.mxu0
        %v2126 = vadd.f32 %v2103, %v2125
        %2127 = vdwg.mxu0
        %2128 = vmatpush.msra.mxu0 %v1548
        %2129 = vmatpush.msra.mxu0 %v1540
        %2130 = vmatpush.msra.mxu0 %v1532
        %2131 = vmatpush.msra.mxu0 %v1524
        %2132 = vmatpush.msra.mxu0 %v1516
        %2133 = vmatpush.msra.mxu0 %v1508
        %2134 = vmatpush.msra.mxu0 %v1500
        %2135 = vmatpush.msra.mxu0 %v1492
        %2136 = vmatpush.msra.mxu0 %v1484
        %2137 = vmatpush.msra.mxu0 %v1476
        %2138 = vmatpush.msra.mxu0 %v1468
        %2139 = vmatpush.msra.mxu0 %v1460
        %2140 = vmatpush.msra.mxu0 %v1452
        %2141 = vmatpush.msra.mxu0 %v1444
        %2142 = vmatpush.msra.mxu0 %v1436
        %2143 = vmatpush.msra.mxu0 %v1428
        %2144 = vmatmul.f32.gmra.mxu0 %v776
        %v2145 = vpop.f32.mrf.mxu0
        %v2146 = vadd.f32 %v2123, %v2145
        %2147 = vmatmul.f32.gmra.mxu0 %v784
        %v2148 = vpop.f32.mrf.mxu0
        %v2149 = vadd.f32 %v2126, %v2148
        %2150 = vdwg.mxu0
        %2151 = vmatpush.msra.mxu0 %v1676
        %2152 = vmatpush.msra.mxu0 %v1668
        %2153 = vmatpush.msra.mxu0 %v1660
        %2154 = vmatpush.msra.mxu0 %v1652
        %2155 = vmatpush.msra.mxu0 %v1644
        %2156 = vmatpush.msra.mxu0 %v1636
        %2157 = vmatpush.msra.mxu0 %v1628
        %2158 = vmatpush.msra.mxu0 %v1620
        %2159 = vmatpush.msra.mxu0 %v1612
        %2160 = vmatpush.msra.mxu0 %v1604
        %2161 = vmatpush.msra.mxu0 %v1596
        %2162 = vmatpush.msra.mxu0 %v1588
        %2163 = vmatpush.msra.mxu0 %v1580
        %2164 = vmatpush.msra.mxu0 %v1572
        %2165 = vmatpush.msra.mxu0 %v1564
        %2166 = vmatpush.msra.mxu0 %v1556
        %2167 = vmatmul.f32.gmra.mxu0 %v777
        %v2168 = vpop.f32.mrf.mxu0
        %v2169 = vadd.f32 %v2146, %v2168
        %2170 = vmatmul.f32.gmra.mxu0 %v785
        %v2171 = vpop.f32.mrf.mxu0
        %v2172 = vadd.f32 %v2149, %v2171
        %2173 = vdwg.mxu0
        %2174 = vmatpush.msra.mxu0 %v1804
        %2175 = vmatpush.msra.mxu0 %v1796
        %2176 = vmatpush.msra.mxu0 %v1788
        %2177 = vmatpush.msra.mxu0 %v1780
        %2178 = vmatpush.msra.mxu0 %v1772
        %2179 = vmatpush.msra.mxu0 %v1764
        %2180 = vmatpush.msra.mxu0 %v1756
        %2181 = vmatpush.msra.mxu0 %v1748
        %2182 = vmatpush.msra.mxu0 %v1740
        %2183 = vmatpush.msra.mxu0 %v1732
        %2184 = vmatpush.msra.mxu0 %v1724
        %2185 = vmatpush.msra.mxu0 %v1716
        %2186 = vmatpush.msra.mxu0 %v1708
        %2187 = vmatpush.msra.mxu0 %v1700
        %2188 = vmatpush.msra.mxu0 %v1692
        %2189 = vmatpush.msra.mxu0 %v1684
        %2190 = vmatmul.f32.gmra.mxu0 %v778
        %v2191 = vpop.f32.mrf.mxu0
        %v2192 = vadd.f32 %v2169, %v2191
        %2193 = vmatmul.f32.gmra.mxu0 %v786
        %v2194 = vpop.f32.mrf.mxu0
        %v2195 = vadd.f32 %v2172, %v2194
        %2196 = vdwg.mxu0
        %2197 = vmatpush.msra.mxu0 %v909
        %2198 = vmatpush.msra.mxu0 %v901
        %2199 = vmatpush.msra.mxu0 %v893
        %2200 = vmatpush.msra.mxu0 %v885
        %2201 = vmatpush.msra.mxu0 %v877
        %2202 = vmatpush.msra.mxu0 %v869
        %2203 = vmatpush.msra.mxu0 %v861
        %2204 = vmatpush.msra.mxu0 %v853
        %2205 = vmatpush.msra.mxu0 %v845
        %2206 = vmatpush.msra.mxu0 %v837
        %2207 = vmatpush.msra.mxu0 %v829
        %2208 = vmatpush.msra.mxu0 %v821
        %2209 = vmatpush.msra.mxu0 %v813
        %2210 = vmatpush.msra.mxu0 %v805
        %2211 = vmatpush.msra.mxu0 %v797
        %2212 = vmatpush.msra.mxu0 %v789
        %2213 = vmatmul.f32.gmra.mxu0 %v771
        %v2214 = vpop.f32.mrf.mxu0
        %v2215 = vadd.f32 %v1815, %v2214
        %2216 = vmatmul.f32.gmra.mxu0 %v779
        %v2217 = vpop.f32.mrf.mxu0
        %v2218 = vadd.f32 %v1815, %v2217
        %2219 = vdwg.mxu0
        %2220 = vmatpush.msra.mxu0 %v1037
        %2221 = vmatpush.msra.mxu0 %v1029
        %2222 = vmatpush.msra.mxu0 %v1021
        %2223 = vmatpush.msra.mxu0 %v1013
        %2224 = vmatpush.msra.mxu0 %v1005
        %2225 = vmatpush.msra.mxu0 %v997
        %2226 = vmatpush.msra.mxu0 %v989
        %2227 = vmatpush.msra.mxu0 %v981
        %2228 = vmatpush.msra.mxu0 %v973
        %2229 = vmatpush.msra.mxu0 %v965
        %2230 = vmatpush.msra.mxu0 %v957
        %2231 = vmatpush.msra.mxu0 %v949
        %2232 = vmatpush.msra.mxu0 %v941
        %2233 = vmatpush.msra.mxu0 %v933
        %2234 = vmatpush.msra.mxu0 %v925
        %2235 = vmatpush.msra.mxu0 %v917
        %2236 = vmatmul.f32.gmra.mxu0 %v772
        %v2237 = vpop.f32.mrf.mxu0
        %v2238 = vadd.f32 %v2215, %v2237
        %2239 = vmatmul.f32.gmra.mxu0 %v780
        %v2240 = vpop.f32.mrf.mxu0
        %v2241 = vadd.f32 %v2218, %v2240
        %2242 = vdwg.mxu0
        %2243 = vmatpush.msra.mxu0 %v1165
        %2244 = vmatpush.msra.mxu0 %v1157
        %2245 = vmatpush.msra.mxu0 %v1149
        %2246 = vmatpush.msra.mxu0 %v1141
        %2247 = vmatpush.msra.mxu0 %v1133
        %2248 = vmatpush.msra.mxu0 %v1125
        %2249 = vmatpush.msra.mxu0 %v1117
        %2250 = vmatpush.msra.mxu0 %v1109
        %2251 = vmatpush.msra.mxu0 %v1101
        %2252 = vmatpush.msra.mxu0 %v1093
        %2253 = vmatpush.msra.mxu0 %v1085
        %2254 = vmatpush.msra.mxu0 %v1077
        %2255 = vmatpush.msra.mxu0 %v1069
        %2256 = vmatpush.msra.mxu0 %v1061
        %2257 = vmatpush.msra.mxu0 %v1053
        %2258 = vmatpush.msra.mxu0 %v1045
        %2259 = vmatmul.f32.gmra.mxu0 %v773
        %v2260 = vpop.f32.mrf.mxu0
        %v2261 = vadd.f32 %v2238, %v2260
        %2262 = vmatmul.f32.gmra.mxu0 %v781
        %v2263 = vpop.f32.mrf.mxu0
        %v2264 = vadd.f32 %v2241, %v2263
        %2265 = vdwg.mxu0
        %2266 = vmatpush.msra.mxu0 %v1293
        %2267 = vmatpush.msra.mxu0 %v1285
        %2268 = vmatpush.msra.mxu0 %v1277
        %2269 = vmatpush.msra.mxu0 %v1269
        %2270 = vmatpush.msra.mxu0 %v1261
        %2271 = vmatpush.msra.mxu0 %v1253
        %2272 = vmatpush.msra.mxu0 %v1245
        %2273 = vmatpush.msra.mxu0 %v1237
        %2274 = vmatpush.msra.mxu0 %v1229
        %2275 = vmatpush.msra.mxu0 %v1221
        %2276 = vmatpush.msra.mxu0 %v1213
        %2277 = vmatpush.msra.mxu0 %v1205
        %2278 = vmatpush.msra.mxu0 %v1197
        %2279 = vmatpush.msra.mxu0 %v1189
        %2280 = vmatpush.msra.mxu0 %v1181
        %2281 = vmatpush.msra.mxu0 %v1173
        %2282 = vmatmul.f32.gmra.mxu0 %v774
        %v2283 = vpop.f32.mrf.mxu0
        %v2284 = vadd.f32 %v2261, %v2283
        %2285 = vmatmul.f32.gmra.mxu0 %v782
        %v2286 = vpop.f32.mrf.mxu0
        %v2287 = vadd.f32 %v2264, %v2286
        %2288 = vdwg.mxu0
        %2289 = vmatpush.msra.mxu0 %v1421
        %2290 = vmatpush.msra.mxu0 %v1413
        %2291 = vmatpush.msra.mxu0 %v1405
        %2292 = vmatpush.msra.mxu0 %v1397
        %2293 = vmatpush.msra.mxu0 %v1389
        %2294 = vmatpush.msra.mxu0 %v1381
        %2295 = vmatpush.msra.mxu0 %v1373
        %2296 = vmatpush.msra.mxu0 %v1365
        %2297 = vmatpush.msra.mxu0 %v1357
        %2298 = vmatpush.msra.mxu0 %v1349
        %2299 = vmatpush.msra.mxu0 %v1341
        %2300 = vmatpush.msra.mxu0 %v1333
        %2301 = vmatpush.msra.mxu0 %v1325
        %2302 = vmatpush.msra.mxu0 %v1317
        %2303 = vmatpush.msra.mxu0 %v1309
        %2304 = vmatpush.msra.mxu0 %v1301
        %2305 = vmatmul.f32.gmra.mxu0 %v775
        %v2306 = vpop.f32.mrf.mxu0
        %v2307 = vadd.f32 %v2284, %v2306
        %2308 = vmatmul.f32.gmra.mxu0 %v783
        %v2309 = vpop.f32.mrf.mxu0
        %v2310 = vadd.f32 %v2287, %v2309
        %2311 = vdwg.mxu0
        %2312 = vmatpush.msra.mxu0 %v1549
        %2313 = vmatpush.msra.mxu0 %v1541
        %2314 = vmatpush.msra.mxu0 %v1533
        %2315 = vmatpush.msra.mxu0 %v1525
        %2316 = vmatpush.msra.mxu0 %v1517
        %2317 = vmatpush.msra.mxu0 %v1509
        %2318 = vmatpush.msra.mxu0 %v1501
        %2319 = vmatpush.msra.mxu0 %v1493
        %2320 = vmatpush.msra.mxu0 %v1485
        %2321 = vmatpush.msra.mxu0 %v1477
        %2322 = vmatpush.msra.mxu0 %v1469
        %2323 = vmatpush.msra.mxu0 %v1461
        %2324 = vmatpush.msra.mxu0 %v1453
        %2325 = vmatpush.msra.mxu0 %v1445
        %2326 = vmatpush.msra.mxu0 %v1437
        %2327 = vmatpush.msra.mxu0 %v1429
        %2328 = vmatmul.f32.gmra.mxu0 %v776
        %v2329 = vpop.f32.mrf.mxu0
        %v2330 = vadd.f32 %v2307, %v2329
        %2331 = vmatmul.f32.gmra.mxu0 %v784
        %v2332 = vpop.f32.mrf.mxu0
        %v2333 = vadd.f32 %v2310, %v2332
        %2334 = vdwg.mxu0
        %2335 = vmatpush.msra.mxu0 %v1677
        %2336 = vmatpush.msra.mxu0 %v1669
        %2337 = vmatpush.msra.mxu0 %v1661
        %2338 = vmatpush.msra.mxu0 %v1653
        %2339 = vmatpush.msra.mxu0 %v1645
        %2340 = vmatpush.msra.mxu0 %v1637
        %2341 = vmatpush.msra.mxu0 %v1629
        %2342 = vmatpush.msra.mxu0 %v1621
        %2343 = vmatpush.msra.mxu0 %v1613
        %2344 = vmatpush.msra.mxu0 %v1605
        %2345 = vmatpush.msra.mxu0 %v1597
        %2346 = vmatpush.msra.mxu0 %v1589
        %2347 = vmatpush.msra.mxu0 %v1581
        %2348 = vmatpush.msra.mxu0 %v1573
        %2349 = vmatpush.msra.mxu0 %v1565
        %2350 = vmatpush.msra.mxu0 %v1557
        %2351 = vmatmul.f32.gmra.mxu0 %v777
        %v2352 = vpop.f32.mrf.mxu0
        %v2353 = vadd.f32 %v2330, %v2352
        %2354 = vmatmul.f32.gmra.mxu0 %v785
        %v2355 = vpop.f32.mrf.mxu0
        %v2356 = vadd.f32 %v2333, %v2355
        %2357 = vdwg.mxu0
        %2358 = vmatpush.msra.mxu0 %v1805
        %2359 = vmatpush.msra.mxu0 %v1797
        %2360 = vmatpush.msra.mxu0 %v1789
        %2361 = vmatpush.msra.mxu0 %v1781
        %2362 = vmatpush.msra.mxu0 %v1773
        %2363 = vmatpush.msra.mxu0 %v1765
        %2364 = vmatpush.msra.mxu0 %v1757
        %2365 = vmatpush.msra.mxu0 %v1749
        %2366 = vmatpush.msra.mxu0 %v1741
        %2367 = vmatpush.msra.mxu0 %v1733
        %2368 = vmatpush.msra.mxu0 %v1725
        %2369 = vmatpush.msra.mxu0 %v1717
        %2370 = vmatpush.msra.mxu0 %v1709
        %2371 = vmatpush.msra.mxu0 %v1701
        %2372 = vmatpush.msra.mxu0 %v1693
        %2373 = vmatpush.msra.mxu0 %v1685
        %2374 = vmatmul.f32.gmra.mxu0 %v778
        %v2375 = vpop.f32.mrf.mxu0
        %v2376 = vadd.f32 %v2353, %v2375
        %2377 = vmatmul.f32.gmra.mxu0 %v786
        %v2378 = vpop.f32.mrf.mxu0
        %v2379 = vadd.f32 %v2356, %v2378
        %2380 = vdwg.mxu0
        %2381 = vmatpush.msra.mxu0 %v910
        %2382 = vmatpush.msra.mxu0 %v902
        %2383 = vmatpush.msra.mxu0 %v894
        %2384 = vmatpush.msra.mxu0 %v886
        %2385 = vmatpush.msra.mxu0 %v878
        %2386 = vmatpush.msra.mxu0 %v870
        %2387 = vmatpush.msra.mxu0 %v862
        %2388 = vmatpush.msra.mxu0 %v854
        %2389 = vmatpush.msra.mxu0 %v846
        %2390 = vmatpush.msra.mxu0 %v838
        %2391 = vmatpush.msra.mxu0 %v830
        %2392 = vmatpush.msra.mxu0 %v822
        %2393 = vmatpush.msra.mxu0 %v814
        %2394 = vmatpush.msra.mxu0 %v806
        %2395 = vmatpush.msra.mxu0 %v798
        %2396 = vmatpush.msra.mxu0 %v790
        %2397 = vmatmul.f32.gmra.mxu0 %v771
        %v2398 = vpop.f32.mrf.mxu0
        %v2399 = vadd.f32 %v1816, %v2398
        %2400 = vmatmul.f32.gmra.mxu0 %v779
        %v2401 = vpop.f32.mrf.mxu0
        %v2402 = vadd.f32 %v1816, %v2401
        %2403 = vdwg.mxu0
        %2404 = vmatpush.msra.mxu0 %v1038
        %2405 = vmatpush.msra.mxu0 %v1030
        %2406 = vmatpush.msra.mxu0 %v1022
        %2407 = vmatpush.msra.mxu0 %v1014
        %2408 = vmatpush.msra.mxu0 %v1006
        %2409 = vmatpush.msra.mxu0 %v998
        %2410 = vmatpush.msra.mxu0 %v990
        %2411 = vmatpush.msra.mxu0 %v982
        %2412 = vmatpush.msra.mxu0 %v974
        %2413 = vmatpush.msra.mxu0 %v966
        %2414 = vmatpush.msra.mxu0 %v958
        %2415 = vmatpush.msra.mxu0 %v950
        %2416 = vmatpush.msra.mxu0 %v942
        %2417 = vmatpush.msra.mxu0 %v934
        %2418 = vmatpush.msra.mxu0 %v926
        %2419 = vmatpush.msra.mxu0 %v918
        %2420 = vmatmul.f32.gmra.mxu0 %v772
        %v2421 = vpop.f32.mrf.mxu0
        %v2422 = vadd.f32 %v2399, %v2421
        %2423 = vmatmul.f32.gmra.mxu0 %v780
        %v2424 = vpop.f32.mrf.mxu0
        %v2425 = vadd.f32 %v2402, %v2424
        %2426 = vdwg.mxu0
        %2427 = vmatpush.msra.mxu0 %v1166
        %2428 = vmatpush.msra.mxu0 %v1158
        %2429 = vmatpush.msra.mxu0 %v1150
        %2430 = vmatpush.msra.mxu0 %v1142
        %2431 = vmatpush.msra.mxu0 %v1134
        %2432 = vmatpush.msra.mxu0 %v1126
        %2433 = vmatpush.msra.mxu0 %v1118
        %2434 = vmatpush.msra.mxu0 %v1110
        %2435 = vmatpush.msra.mxu0 %v1102
        %2436 = vmatpush.msra.mxu0 %v1094
        %2437 = vmatpush.msra.mxu0 %v1086
        %2438 = vmatpush.msra.mxu0 %v1078
        %2439 = vmatpush.msra.mxu0 %v1070
        %2440 = vmatpush.msra.mxu0 %v1062
        %2441 = vmatpush.msra.mxu0 %v1054
        %2442 = vmatpush.msra.mxu0 %v1046
        %2443 = vmatmul.f32.gmra.mxu0 %v773
        %v2444 = vpop.f32.mrf.mxu0
        %v2445 = vadd.f32 %v2422, %v2444
        %2446 = vmatmul.f32.gmra.mxu0 %v781
        %v2447 = vpop.f32.mrf.mxu0
        %v2448 = vadd.f32 %v2425, %v2447
        %2449 = vdwg.mxu0
        %2450 = vmatpush.msra.mxu0 %v1294
        %2451 = vmatpush.msra.mxu0 %v1286
        %2452 = vmatpush.msra.mxu0 %v1278
        %2453 = vmatpush.msra.mxu0 %v1270
        %2454 = vmatpush.msra.mxu0 %v1262
        %2455 = vmatpush.msra.mxu0 %v1254
        %2456 = vmatpush.msra.mxu0 %v1246
        %2457 = vmatpush.msra.mxu0 %v1238
        %2458 = vmatpush.msra.mxu0 %v1230
        %2459 = vmatpush.msra.mxu0 %v1222
        %2460 = vmatpush.msra.mxu0 %v1214
        %2461 = vmatpush.msra.mxu0 %v1206
        %2462 = vmatpush.msra.mxu0 %v1198
        %2463 = vmatpush.msra.mxu0 %v1190
        %2464 = vmatpush.msra.mxu0 %v1182
        %2465 = vmatpush.msra.mxu0 %v1174
        %2466 = vmatmul.f32.gmra.mxu0 %v774
        %v2467 = vpop.f32.mrf.mxu0
        %v2468 = vadd.f32 %v2445, %v2467
        %2469 = vmatmul.f32.gmra.mxu0 %v782
        %v2470 = vpop.f32.mrf.mxu0
        %v2471 = vadd.f32 %v2448, %v2470
        %2472 = vdwg.mxu0
        %2473 = vmatpush.msra.mxu0 %v1422
        %2474 = vmatpush.msra.mxu0 %v1414
        %2475 = vmatpush.msra.mxu0 %v1406
        %2476 = vmatpush.msra.mxu0 %v1398
        %2477 = vmatpush.msra.mxu0 %v1390
        %2478 = vmatpush.msra.mxu0 %v1382
        %2479 = vmatpush.msra.mxu0 %v1374
        %2480 = vmatpush.msra.mxu0 %v1366
        %2481 = vmatpush.msra.mxu0 %v1358
        %2482 = vmatpush.msra.mxu0 %v1350
        %2483 = vmatpush.msra.mxu0 %v1342
        %2484 = vmatpush.msra.mxu0 %v1334
        %2485 = vmatpush.msra.mxu0 %v1326
        %2486 = vmatpush.msra.mxu0 %v1318
        %2487 = vmatpush.msra.mxu0 %v1310
        %2488 = vmatpush.msra.mxu0 %v1302
        %2489 = vmatmul.f32.gmra.mxu0 %v775
        %v2490 = vpop.f32.mrf.mxu0
        %v2491 = vadd.f32 %v2468, %v2490
        %2492 = vmatmul.f32.gmra.mxu0 %v783
        %v2493 = vpop.f32.mrf.mxu0
        %v2494 = vadd.f32 %v2471, %v2493
        %2495 = vdwg.mxu0
        %2496 = vmatpush.msra.mxu0 %v1550
        %2497 = vmatpush.msra.mxu0 %v1542
        %2498 = vmatpush.msra.mxu0 %v1534
        %2499 = vmatpush.msra.mxu0 %v1526
        %2500 = vmatpush.msra.mxu0 %v1518
        %2501 = vmatpush.msra.mxu0 %v1510
        %2502 = vmatpush.msra.mxu0 %v1502
        %2503 = vmatpush.msra.mxu0 %v1494
        %2504 = vmatpush.msra.mxu0 %v1486
        %2505 = vmatpush.msra.mxu0 %v1478
        %2506 = vmatpush.msra.mxu0 %v1470
        %2507 = vmatpush.msra.mxu0 %v1462
        %2508 = vmatpush.msra.mxu0 %v1454
        %2509 = vmatpush.msra.mxu0 %v1446
        %2510 = vmatpush.msra.mxu0 %v1438
        %2511 = vmatpush.msra.mxu0 %v1430
        %2512 = vmatmul.f32.gmra.mxu0 %v776
        %v2513 = vpop.f32.mrf.mxu0
        %v2514 = vadd.f32 %v2491, %v2513
        %2515 = vmatmul.f32.gmra.mxu0 %v784
        %v2516 = vpop.f32.mrf.mxu0
        %v2517 = vadd.f32 %v2494, %v2516
        %2518 = vdwg.mxu0
        %2519 = vmatpush.msra.mxu0 %v1678
        %2520 = vmatpush.msra.mxu0 %v1670
        %2521 = vmatpush.msra.mxu0 %v1662
        %2522 = vmatpush.msra.mxu0 %v1654
        %2523 = vmatpush.msra.mxu0 %v1646
        %2524 = vmatpush.msra.mxu0 %v1638
        %2525 = vmatpush.msra.mxu0 %v1630
        %2526 = vmatpush.msra.mxu0 %v1622
        %2527 = vmatpush.msra.mxu0 %v1614
        %2528 = vmatpush.msra.mxu0 %v1606
        %2529 = vmatpush.msra.mxu0 %v1598
        %2530 = vmatpush.msra.mxu0 %v1590
        %2531 = vmatpush.msra.mxu0 %v1582
        %2532 = vmatpush.msra.mxu0 %v1574
        %2533 = vmatpush.msra.mxu0 %v1566
        %2534 = vmatpush.msra.mxu0 %v1558
        %2535 = vmatmul.f32.gmra.mxu0 %v777
        %v2536 = vpop.f32.mrf.mxu0
        %v2537 = vadd.f32 %v2514, %v2536
        %2538 = vmatmul.f32.gmra.mxu0 %v785
        %v2539 = vpop.f32.mrf.mxu0
        %v2540 = vadd.f32 %v2517, %v2539
        %2541 = vdwg.mxu0
        %2542 = vmatpush.msra.mxu0 %v1806
        %2543 = vmatpush.msra.mxu0 %v1798
        %2544 = vmatpush.msra.mxu0 %v1790
        %2545 = vmatpush.msra.mxu0 %v1782
        %2546 = vmatpush.msra.mxu0 %v1774
        %2547 = vmatpush.msra.mxu0 %v1766
        %2548 = vmatpush.msra.mxu0 %v1758
        %2549 = vmatpush.msra.mxu0 %v1750
        %2550 = vmatpush.msra.mxu0 %v1742
        %2551 = vmatpush.msra.mxu0 %v1734
        %2552 = vmatpush.msra.mxu0 %v1726
        %2553 = vmatpush.msra.mxu0 %v1718
        %2554 = vmatpush.msra.mxu0 %v1710
        %2555 = vmatpush.msra.mxu0 %v1702
        %2556 = vmatpush.msra.mxu0 %v1694
        %2557 = vmatpush.msra.mxu0 %v1686
        %2558 = vmatmul.f32.gmra.mxu0 %v778
        %v2559 = vpop.f32.mrf.mxu0
        %v2560 = vadd.f32 %v2537, %v2559
        %2561 = vmatmul.f32.gmra.mxu0 %v786
        %v2562 = vpop.f32.mrf.mxu0
        %v2563 = vadd.f32 %v2540, %v2562
        %2564 = vdwg.mxu0
        %2565 = vmatpush.msra.mxu0 %v911
        %2566 = vmatpush.msra.mxu0 %v903
        %2567 = vmatpush.msra.mxu0 %v895
        %2568 = vmatpush.msra.mxu0 %v887
        %2569 = vmatpush.msra.mxu0 %v879
        %2570 = vmatpush.msra.mxu0 %v871
        %2571 = vmatpush.msra.mxu0 %v863
        %2572 = vmatpush.msra.mxu0 %v855
        %2573 = vmatpush.msra.mxu0 %v847
        %2574 = vmatpush.msra.mxu0 %v839
        %2575 = vmatpush.msra.mxu0 %v831
        %2576 = vmatpush.msra.mxu0 %v823
        %2577 = vmatpush.msra.mxu0 %v815
        %2578 = vmatpush.msra.mxu0 %v807
        %2579 = vmatpush.msra.mxu0 %v799
        %2580 = vmatpush.msra.mxu0 %v791
        %2581 = vmatmul.f32.gmra.mxu0 %v771
        %v2582 = vpop.f32.mrf.mxu0
        %v2583 = vadd.f32 %v1817, %v2582
        %2584 = vmatmul.f32.gmra.mxu0 %v779
        %v2585 = vpop.f32.mrf.mxu0
        %v2586 = vadd.f32 %v1817, %v2585
        %2587 = vdwg.mxu0
        %2588 = vmatpush.msra.mxu0 %v1039
        %2589 = vmatpush.msra.mxu0 %v1031
        %2590 = vmatpush.msra.mxu0 %v1023
        %2591 = vmatpush.msra.mxu0 %v1015
        %2592 = vmatpush.msra.mxu0 %v1007
        %2593 = vmatpush.msra.mxu0 %v999
        %2594 = vmatpush.msra.mxu0 %v991
        %2595 = vmatpush.msra.mxu0 %v983
        %2596 = vmatpush.msra.mxu0 %v975
        %2597 = vmatpush.msra.mxu0 %v967
        %2598 = vmatpush.msra.mxu0 %v959
        %2599 = vmatpush.msra.mxu0 %v951
        %2600 = vmatpush.msra.mxu0 %v943
        %2601 = vmatpush.msra.mxu0 %v935
        %2602 = vmatpush.msra.mxu0 %v927
        %2603 = vmatpush.msra.mxu0 %v919
        %2604 = vmatmul.f32.gmra.mxu0 %v772
        %v2605 = vpop.f32.mrf.mxu0
        %v2606 = vadd.f32 %v2583, %v2605
        %2607 = vmatmul.f32.gmra.mxu0 %v780
        %v2608 = vpop.f32.mrf.mxu0
        %v2609 = vadd.f32 %v2586, %v2608
        %2610 = vdwg.mxu0
        %2611 = vmatpush.msra.mxu0 %v1167
        %2612 = vmatpush.msra.mxu0 %v1159
        %2613 = vmatpush.msra.mxu0 %v1151
        %2614 = vmatpush.msra.mxu0 %v1143
        %2615 = vmatpush.msra.mxu0 %v1135
        %2616 = vmatpush.msra.mxu0 %v1127
        %2617 = vmatpush.msra.mxu0 %v1119
        %2618 = vmatpush.msra.mxu0 %v1111
        %2619 = vmatpush.msra.mxu0 %v1103
        %2620 = vmatpush.msra.mxu0 %v1095
        %2621 = vmatpush.msra.mxu0 %v1087
        %2622 = vmatpush.msra.mxu0 %v1079
        %2623 = vmatpush.msra.mxu0 %v1071
        %2624 = vmatpush.msra.mxu0 %v1063
        %2625 = vmatpush.msra.mxu0 %v1055
        %2626 = vmatpush.msra.mxu0 %v1047
        %2627 = vmatmul.f32.gmra.mxu0 %v773
        %v2628 = vpop.f32.mrf.mxu0
        %v2629 = vadd.f32 %v2606, %v2628
        %2630 = vmatmul.f32.gmra.mxu0 %v781
        %v2631 = vpop.f32.mrf.mxu0
        %v2632 = vadd.f32 %v2609, %v2631
        %2633 = vdwg.mxu0
        %2634 = vmatpush.msra.mxu0 %v1295
        %2635 = vmatpush.msra.mxu0 %v1287
        %2636 = vmatpush.msra.mxu0 %v1279
        %2637 = vmatpush.msra.mxu0 %v1271
        %2638 = vmatpush.msra.mxu0 %v1263
        %2639 = vmatpush.msra.mxu0 %v1255
        %2640 = vmatpush.msra.mxu0 %v1247
        %2641 = vmatpush.msra.mxu0 %v1239
        %2642 = vmatpush.msra.mxu0 %v1231
        %2643 = vmatpush.msra.mxu0 %v1223
        %2644 = vmatpush.msra.mxu0 %v1215
        %2645 = vmatpush.msra.mxu0 %v1207
        %2646 = vmatpush.msra.mxu0 %v1199
        %2647 = vmatpush.msra.mxu0 %v1191
        %2648 = vmatpush.msra.mxu0 %v1183
        %2649 = vmatpush.msra.mxu0 %v1175
        %2650 = vmatmul.f32.gmra.mxu0 %v774
        %v2651 = vpop.f32.mrf.mxu0
        %v2652 = vadd.f32 %v2629, %v2651
        %2653 = vmatmul.f32.gmra.mxu0 %v782
        %v2654 = vpop.f32.mrf.mxu0
        %v2655 = vadd.f32 %v2632, %v2654
        %2656 = vdwg.mxu0
        %2657 = vmatpush.msra.mxu0 %v1423
        %2658 = vmatpush.msra.mxu0 %v1415
        %2659 = vmatpush.msra.mxu0 %v1407
        %2660 = vmatpush.msra.mxu0 %v1399
        %2661 = vmatpush.msra.mxu0 %v1391
        %2662 = vmatpush.msra.mxu0 %v1383
        %2663 = vmatpush.msra.mxu0 %v1375
        %2664 = vmatpush.msra.mxu0 %v1367
        %2665 = vmatpush.msra.mxu0 %v1359
        %2666 = vmatpush.msra.mxu0 %v1351
        %2667 = vmatpush.msra.mxu0 %v1343
        %2668 = vmatpush.msra.mxu0 %v1335
        %2669 = vmatpush.msra.mxu0 %v1327
        %2670 = vmatpush.msra.mxu0 %v1319
        %2671 = vmatpush.msra.mxu0 %v1311
        %2672 = vmatpush.msra.mxu0 %v1303
        %2673 = vmatmul.f32.gmra.mxu0 %v775
        %v2674 = vpop.f32.mrf.mxu0
        %v2675 = vadd.f32 %v2652, %v2674
        %2676 = vmatmul.f32.gmra.mxu0 %v783
        %v2677 = vpop.f32.mrf.mxu0
        %v2678 = vadd.f32 %v2655, %v2677
        %2679 = vdwg.mxu0
        %2680 = vmatpush.msra.mxu0 %v1551
        %2681 = vmatpush.msra.mxu0 %v1543
        %2682 = vmatpush.msra.mxu0 %v1535
        %2683 = vmatpush.msra.mxu0 %v1527
        %2684 = vmatpush.msra.mxu0 %v1519
        %2685 = vmatpush.msra.mxu0 %v1511
        %2686 = vmatpush.msra.mxu0 %v1503
        %2687 = vmatpush.msra.mxu0 %v1495
        %2688 = vmatpush.msra.mxu0 %v1487
        %2689 = vmatpush.msra.mxu0 %v1479
        %2690 = vmatpush.msra.mxu0 %v1471
        %2691 = vmatpush.msra.mxu0 %v1463
        %2692 = vmatpush.msra.mxu0 %v1455
        %2693 = vmatpush.msra.mxu0 %v1447
        %2694 = vmatpush.msra.mxu0 %v1439
        %2695 = vmatpush.msra.mxu0 %v1431
        %2696 = vmatmul.f32.gmra.mxu0 %v776
        %v2697 = vpop.f32.mrf.mxu0
        %v2698 = vadd.f32 %v2675, %v2697
        %2699 = vmatmul.f32.gmra.mxu0 %v784
        %v2700 = vpop.f32.mrf.mxu0
        %v2701 = vadd.f32 %v2678, %v2700
        %2702 = vdwg.mxu0
        %2703 = vmatpush.msra.mxu0 %v1679
        %2704 = vmatpush.msra.mxu0 %v1671
        %2705 = vmatpush.msra.mxu0 %v1663
        %2706 = vmatpush.msra.mxu0 %v1655
        %2707 = vmatpush.msra.mxu0 %v1647
        %2708 = vmatpush.msra.mxu0 %v1639
        %2709 = vmatpush.msra.mxu0 %v1631
        %2710 = vmatpush.msra.mxu0 %v1623
        %2711 = vmatpush.msra.mxu0 %v1615
        %2712 = vmatpush.msra.mxu0 %v1607
        %2713 = vmatpush.msra.mxu0 %v1599
        %2714 = vmatpush.msra.mxu0 %v1591
        %2715 = vmatpush.msra.mxu0 %v1583
        %2716 = vmatpush.msra.mxu0 %v1575
        %2717 = vmatpush.msra.mxu0 %v1567
        %2718 = vmatpush.msra.mxu0 %v1559
        %2719 = vmatmul.f32.gmra.mxu0 %v777
        %v2720 = vpop.f32.mrf.mxu0
        %v2721 = vadd.f32 %v2698, %v2720
        %2722 = vmatmul.f32.gmra.mxu0 %v785
        %v2723 = vpop.f32.mrf.mxu0
        %v2724 = vadd.f32 %v2701, %v2723
        %2725 = vdwg.mxu0
        %2726 = vmatpush.msra.mxu0 %v1807
        %2727 = vmatpush.msra.mxu0 %v1799
        %2728 = vmatpush.msra.mxu0 %v1791
        %2729 = vmatpush.msra.mxu0 %v1783
        %2730 = vmatpush.msra.mxu0 %v1775
        %2731 = vmatpush.msra.mxu0 %v1767
        %2732 = vmatpush.msra.mxu0 %v1759
        %2733 = vmatpush.msra.mxu0 %v1751
        %2734 = vmatpush.msra.mxu0 %v1743
        %2735 = vmatpush.msra.mxu0 %v1735
        %2736 = vmatpush.msra.mxu0 %v1727
        %2737 = vmatpush.msra.mxu0 %v1719
        %2738 = vmatpush.msra.mxu0 %v1711
        %2739 = vmatpush.msra.mxu0 %v1703
        %2740 = vmatpush.msra.mxu0 %v1695
        %2741 = vmatpush.msra.mxu0 %v1687
        %2742 = vmatmul.f32.gmra.mxu0 %v778
        %v2743 = vpop.f32.mrf.mxu0
        %v2744 = vadd.f32 %v2721, %v2743
        %2745 = vmatmul.f32.gmra.mxu0 %v786
        %v2746 = vpop.f32.mrf.mxu0
        %v2747 = vadd.f32 %v2724, %v2746
        %2748 = vdwg.mxu0
        %2749 = vmatpush.msra.mxu0 %v912
        %2750 = vmatpush.msra.mxu0 %v904
        %2751 = vmatpush.msra.mxu0 %v896
        %2752 = vmatpush.msra.mxu0 %v888
        %2753 = vmatpush.msra.mxu0 %v880
        %2754 = vmatpush.msra.mxu0 %v872
        %2755 = vmatpush.msra.mxu0 %v864
        %2756 = vmatpush.msra.mxu0 %v856
        %2757 = vmatpush.msra.mxu0 %v848
        %2758 = vmatpush.msra.mxu0 %v840
        %2759 = vmatpush.msra.mxu0 %v832
        %2760 = vmatpush.msra.mxu0 %v824
        %2761 = vmatpush.msra.mxu0 %v816
        %2762 = vmatpush.msra.mxu0 %v808
        %2763 = vmatpush.msra.mxu0 %v800
        %2764 = vmatpush.msra.mxu0 %v792
        %2765 = vmatmul.f32.gmra.mxu0 %v771
        %v2766 = vpop.f32.mrf.mxu0
        %v2767 = vadd.f32 %v1818, %v2766
        %2768 = vmatmul.f32.gmra.mxu0 %v779
        %v2769 = vpop.f32.mrf.mxu0
        %v2770 = vadd.f32 %v1818, %v2769
        %2771 = vdwg.mxu0
        %2772 = vmatpush.msra.mxu0 %v1040
        %2773 = vmatpush.msra.mxu0 %v1032
        %2774 = vmatpush.msra.mxu0 %v1024
        %2775 = vmatpush.msra.mxu0 %v1016
        %2776 = vmatpush.msra.mxu0 %v1008
        %2777 = vmatpush.msra.mxu0 %v1000
        %2778 = vmatpush.msra.mxu0 %v992
        %2779 = vmatpush.msra.mxu0 %v984
        %2780 = vmatpush.msra.mxu0 %v976
        %2781 = vmatpush.msra.mxu0 %v968
        %2782 = vmatpush.msra.mxu0 %v960
        %2783 = vmatpush.msra.mxu0 %v952
        %2784 = vmatpush.msra.mxu0 %v944
        %2785 = vmatpush.msra.mxu0 %v936
        %2786 = vmatpush.msra.mxu0 %v928
        %2787 = vmatpush.msra.mxu0 %v920
        %2788 = vmatmul.f32.gmra.mxu0 %v772
        %v2789 = vpop.f32.mrf.mxu0
        %v2790 = vadd.f32 %v2767, %v2789
        %2791 = vmatmul.f32.gmra.mxu0 %v780
        %v2792 = vpop.f32.mrf.mxu0
        %v2793 = vadd.f32 %v2770, %v2792
        %2794 = vdwg.mxu0
        %2795 = vmatpush.msra.mxu0 %v1168
        %2796 = vmatpush.msra.mxu0 %v1160
        %2797 = vmatpush.msra.mxu0 %v1152
        %2798 = vmatpush.msra.mxu0 %v1144
        %2799 = vmatpush.msra.mxu0 %v1136
        %2800 = vmatpush.msra.mxu0 %v1128
        %2801 = vmatpush.msra.mxu0 %v1120
        %2802 = vmatpush.msra.mxu0 %v1112
        %2803 = vmatpush.msra.mxu0 %v1104
        %2804 = vmatpush.msra.mxu0 %v1096
        %2805 = vmatpush.msra.mxu0 %v1088
        %2806 = vmatpush.msra.mxu0 %v1080
        %2807 = vmatpush.msra.mxu0 %v1072
        %2808 = vmatpush.msra.mxu0 %v1064
        %2809 = vmatpush.msra.mxu0 %v1056
        %2810 = vmatpush.msra.mxu0 %v1048
        %2811 = vmatmul.f32.gmra.mxu0 %v773
        %v2812 = vpop.f32.mrf.mxu0
        %v2813 = vadd.f32 %v2790, %v2812
        %2814 = vmatmul.f32.gmra.mxu0 %v781
        %v2815 = vpop.f32.mrf.mxu0
        %v2816 = vadd.f32 %v2793, %v2815
        %2817 = vdwg.mxu0
        %2818 = vmatpush.msra.mxu0 %v1296
        %2819 = vmatpush.msra.mxu0 %v1288
        %2820 = vmatpush.msra.mxu0 %v1280
        %2821 = vmatpush.msra.mxu0 %v1272
        %2822 = vmatpush.msra.mxu0 %v1264
        %2823 = vmatpush.msra.mxu0 %v1256
        %2824 = vmatpush.msra.mxu0 %v1248
        %2825 = vmatpush.msra.mxu0 %v1240
        %2826 = vmatpush.msra.mxu0 %v1232
        %2827 = vmatpush.msra.mxu0 %v1224
        %2828 = vmatpush.msra.mxu0 %v1216
        %2829 = vmatpush.msra.mxu0 %v1208
        %2830 = vmatpush.msra.mxu0 %v1200
        %2831 = vmatpush.msra.mxu0 %v1192
        %2832 = vmatpush.msra.mxu0 %v1184
        %2833 = vmatpush.msra.mxu0 %v1176
        %2834 = vmatmul.f32.gmra.mxu0 %v774
        %v2835 = vpop.f32.mrf.mxu0
        %v2836 = vadd.f32 %v2813, %v2835
        %2837 = vmatmul.f32.gmra.mxu0 %v782
        %v2838 = vpop.f32.mrf.mxu0
        %v2839 = vadd.f32 %v2816, %v2838
        %2840 = vdwg.mxu0
        %2841 = vmatpush.msra.mxu0 %v1424
        %2842 = vmatpush.msra.mxu0 %v1416
        %2843 = vmatpush.msra.mxu0 %v1408
        %2844 = vmatpush.msra.mxu0 %v1400
        %2845 = vmatpush.msra.mxu0 %v1392
        %2846 = vmatpush.msra.mxu0 %v1384
        %2847 = vmatpush.msra.mxu0 %v1376
        %2848 = vmatpush.msra.mxu0 %v1368
        %2849 = vmatpush.msra.mxu0 %v1360
        %2850 = vmatpush.msra.mxu0 %v1352
        %2851 = vmatpush.msra.mxu0 %v1344
        %2852 = vmatpush.msra.mxu0 %v1336
        %2853 = vmatpush.msra.mxu0 %v1328
        %2854 = vmatpush.msra.mxu0 %v1320
        %2855 = vmatpush.msra.mxu0 %v1312
        %2856 = vmatpush.msra.mxu0 %v1304
        %2857 = vmatmul.f32.gmra.mxu0 %v775
        %v2858 = vpop.f32.mrf.mxu0
        %v2859 = vadd.f32 %v2836, %v2858
        %2860 = vmatmul.f32.gmra.mxu0 %v783
        %v2861 = vpop.f32.mrf.mxu0
        %v2862 = vadd.f32 %v2839, %v2861
        %2863 = vdwg.mxu0
        %2864 = vmatpush.msra.mxu0 %v1552
        %2865 = vmatpush.msra.mxu0 %v1544
        %2866 = vmatpush.msra.mxu0 %v1536
        %2867 = vmatpush.msra.mxu0 %v1528
        %2868 = vmatpush.msra.mxu0 %v1520
        %2869 = vmatpush.msra.mxu0 %v1512
        %2870 = vmatpush.msra.mxu0 %v1504
        %2871 = vmatpush.msra.mxu0 %v1496
        %2872 = vmatpush.msra.mxu0 %v1488
        %2873 = vmatpush.msra.mxu0 %v1480
        %2874 = vmatpush.msra.mxu0 %v1472
        %2875 = vmatpush.msra.mxu0 %v1464
        %2876 = vmatpush.msra.mxu0 %v1456
        %2877 = vmatpush.msra.mxu0 %v1448
        %2878 = vmatpush.msra.mxu0 %v1440
        %2879 = vmatpush.msra.mxu0 %v1432
        %2880 = vmatmul.f32.gmra.mxu0 %v776
        %v2881 = vpop.f32.mrf.mxu0
        %v2882 = vadd.f32 %v2859, %v2881
        %2883 = vmatmul.f32.gmra.mxu0 %v784
        %v2884 = vpop.f32.mrf.mxu0
        %v2885 = vadd.f32 %v2862, %v2884
        %2886 = vdwg.mxu0
        %2887 = vmatpush.msra.mxu0 %v1680
        %2888 = vmatpush.msra.mxu0 %v1672
        %2889 = vmatpush.msra.mxu0 %v1664
        %2890 = vmatpush.msra.mxu0 %v1656
        %2891 = vmatpush.msra.mxu0 %v1648
        %2892 = vmatpush.msra.mxu0 %v1640
        %2893 = vmatpush.msra.mxu0 %v1632
        %2894 = vmatpush.msra.mxu0 %v1624
        %2895 = vmatpush.msra.mxu0 %v1616
        %2896 = vmatpush.msra.mxu0 %v1608
        %2897 = vmatpush.msra.mxu0 %v1600
        %2898 = vmatpush.msra.mxu0 %v1592
        %2899 = vmatpush.msra.mxu0 %v1584
        %2900 = vmatpush.msra.mxu0 %v1576
        %2901 = vmatpush.msra.mxu0 %v1568
        %2902 = vmatpush.msra.mxu0 %v1560
        %2903 = vmatmul.f32.gmra.mxu0 %v777
        %v2904 = vpop.f32.mrf.mxu0
        %v2905 = vadd.f32 %v2882, %v2904
        %2906 = vmatmul.f32.gmra.mxu0 %v785
        %v2907 = vpop.f32.mrf.mxu0
        %v2908 = vadd.f32 %v2885, %v2907
        %2909 = vdwg.mxu0
        %2910 = vmatpush.msra.mxu0 %v1808
        %2911 = vmatpush.msra.mxu0 %v1800
        %2912 = vmatpush.msra.mxu0 %v1792
        %2913 = vmatpush.msra.mxu0 %v1784
        %2914 = vmatpush.msra.mxu0 %v1776
        %2915 = vmatpush.msra.mxu0 %v1768
        %2916 = vmatpush.msra.mxu0 %v1760
        %2917 = vmatpush.msra.mxu0 %v1752
        %2918 = vmatpush.msra.mxu0 %v1744
        %2919 = vmatpush.msra.mxu0 %v1736
        %2920 = vmatpush.msra.mxu0 %v1728
        %2921 = vmatpush.msra.mxu0 %v1720
        %2922 = vmatpush.msra.mxu0 %v1712
        %2923 = vmatpush.msra.mxu0 %v1704
        %2924 = vmatpush.msra.mxu0 %v1696
        %2925 = vmatpush.msra.mxu0 %v1688
        %2926 = vmatmul.f32.gmra.mxu0 %v778
        %v2927 = vpop.f32.mrf.mxu0
        %v2928 = vadd.f32 %v2905, %v2927
        %2929 = vmatmul.f32.gmra.mxu0 %v786
        %v2930 = vpop.f32.mrf.mxu0
        %v2931 = vadd.f32 %v2908, %v2930
        %2932 = vdwg.mxu0
        %2933 = vmatpush.msra.mxu0 %v913
        %2934 = vmatpush.msra.mxu0 %v905
        %2935 = vmatpush.msra.mxu0 %v897
        %2936 = vmatpush.msra.mxu0 %v889
        %2937 = vmatpush.msra.mxu0 %v881
        %2938 = vmatpush.msra.mxu0 %v873
        %2939 = vmatpush.msra.mxu0 %v865
        %2940 = vmatpush.msra.mxu0 %v857
        %2941 = vmatpush.msra.mxu0 %v849
        %2942 = vmatpush.msra.mxu0 %v841
        %2943 = vmatpush.msra.mxu0 %v833
        %2944 = vmatpush.msra.mxu0 %v825
        %2945 = vmatpush.msra.mxu0 %v817
        %2946 = vmatpush.msra.mxu0 %v809
        %2947 = vmatpush.msra.mxu0 %v801
        %2948 = vmatpush.msra.mxu0 %v793
        %2949 = vmatmul.f32.gmra.mxu0 %v771
        %v2950 = vpop.f32.mrf.mxu0
        %v2951 = vadd.f32 %v1819, %v2950
        %2952 = vmatmul.f32.gmra.mxu0 %v779
        %v2953 = vpop.f32.mrf.mxu0
        %v2954 = vadd.f32 %v1819, %v2953
        %2955 = vdwg.mxu0
        %2956 = vmatpush.msra.mxu0 %v1041
        %2957 = vmatpush.msra.mxu0 %v1033
        %2958 = vmatpush.msra.mxu0 %v1025
        %2959 = vmatpush.msra.mxu0 %v1017
        %2960 = vmatpush.msra.mxu0 %v1009
        %2961 = vmatpush.msra.mxu0 %v1001
        %2962 = vmatpush.msra.mxu0 %v993
        %2963 = vmatpush.msra.mxu0 %v985
        %2964 = vmatpush.msra.mxu0 %v977
        %2965 = vmatpush.msra.mxu0 %v969
        %2966 = vmatpush.msra.mxu0 %v961
        %2967 = vmatpush.msra.mxu0 %v953
        %2968 = vmatpush.msra.mxu0 %v945
        %2969 = vmatpush.msra.mxu0 %v937
        %2970 = vmatpush.msra.mxu0 %v929
        %2971 = vmatpush.msra.mxu0 %v921
        %2972 = vmatmul.f32.gmra.mxu0 %v772
        %v2973 = vpop.f32.mrf.mxu0
        %v2974 = vadd.f32 %v2951, %v2973
        %2975 = vmatmul.f32.gmra.mxu0 %v780
        %v2976 = vpop.f32.mrf.mxu0
        %v2977 = vadd.f32 %v2954, %v2976
        %2978 = vdwg.mxu0
        %2979 = vmatpush.msra.mxu0 %v1169
        %2980 = vmatpush.msra.mxu0 %v1161
        %2981 = vmatpush.msra.mxu0 %v1153
        %2982 = vmatpush.msra.mxu0 %v1145
        %2983 = vmatpush.msra.mxu0 %v1137
        %2984 = vmatpush.msra.mxu0 %v1129
        %2985 = vmatpush.msra.mxu0 %v1121
        %2986 = vmatpush.msra.mxu0 %v1113
        %2987 = vmatpush.msra.mxu0 %v1105
        %2988 = vmatpush.msra.mxu0 %v1097
        %2989 = vmatpush.msra.mxu0 %v1089
        %2990 = vmatpush.msra.mxu0 %v1081
        %2991 = vmatpush.msra.mxu0 %v1073
        %2992 = vmatpush.msra.mxu0 %v1065
        %2993 = vmatpush.msra.mxu0 %v1057
        %2994 = vmatpush.msra.mxu0 %v1049
        %2995 = vmatmul.f32.gmra.mxu0 %v773
        %v2996 = vpop.f32.mrf.mxu0
        %v2997 = vadd.f32 %v2974, %v2996
        %2998 = vmatmul.f32.gmra.mxu0 %v781
        %v2999 = vpop.f32.mrf.mxu0
        %v3000 = vadd.f32 %v2977, %v2999
        %3001 = vdwg.mxu0
        %3002 = vmatpush.msra.mxu0 %v1297
        %3003 = vmatpush.msra.mxu0 %v1289
        %3004 = vmatpush.msra.mxu0 %v1281
        %3005 = vmatpush.msra.mxu0 %v1273
        %3006 = vmatpush.msra.mxu0 %v1265
        %3007 = vmatpush.msra.mxu0 %v1257
        %3008 = vmatpush.msra.mxu0 %v1249
        %3009 = vmatpush.msra.mxu0 %v1241
        %3010 = vmatpush.msra.mxu0 %v1233
        %3011 = vmatpush.msra.mxu0 %v1225
        %3012 = vmatpush.msra.mxu0 %v1217
        %3013 = vmatpush.msra.mxu0 %v1209
        %3014 = vmatpush.msra.mxu0 %v1201
        %3015 = vmatpush.msra.mxu0 %v1193
        %3016 = vmatpush.msra.mxu0 %v1185
        %3017 = vmatpush.msra.mxu0 %v1177
        %3018 = vmatmul.f32.gmra.mxu0 %v774
        %v3019 = vpop.f32.mrf.mxu0
        %v3020 = vadd.f32 %v2997, %v3019
        %3021 = vmatmul.f32.gmra.mxu0 %v782
        %v3022 = vpop.f32.mrf.mxu0
        %v3023 = vadd.f32 %v3000, %v3022
        %3024 = vdwg.mxu0
        %3025 = vmatpush.msra.mxu0 %v1425
        %3026 = vmatpush.msra.mxu0 %v1417
        %3027 = vmatpush.msra.mxu0 %v1409
        %3028 = vmatpush.msra.mxu0 %v1401
        %3029 = vmatpush.msra.mxu0 %v1393
        %3030 = vmatpush.msra.mxu0 %v1385
        %3031 = vmatpush.msra.mxu0 %v1377
        %3032 = vmatpush.msra.mxu0 %v1369
        %3033 = vmatpush.msra.mxu0 %v1361
        %3034 = vmatpush.msra.mxu0 %v1353
        %3035 = vmatpush.msra.mxu0 %v1345
        %3036 = vmatpush.msra.mxu0 %v1337
        %3037 = vmatpush.msra.mxu0 %v1329
        %3038 = vmatpush.msra.mxu0 %v1321
        %3039 = vmatpush.msra.mxu0 %v1313
        %3040 = vmatpush.msra.mxu0 %v1305
        %3041 = vmatmul.f32.gmra.mxu0 %v775
        %v3042 = vpop.f32.mrf.mxu0
        %v3043 = vadd.f32 %v3020, %v3042
        %3044 = vmatmul.f32.gmra.mxu0 %v783
        %v3045 = vpop.f32.mrf.mxu0
        %v3046 = vadd.f32 %v3023, %v3045
        %3047 = vdwg.mxu0
        %3048 = vmatpush.msra.mxu0 %v1553
        %3049 = vmatpush.msra.mxu0 %v1545
        %3050 = vmatpush.msra.mxu0 %v1537
        %3051 = vmatpush.msra.mxu0 %v1529
        %3052 = vmatpush.msra.mxu0 %v1521
        %3053 = vmatpush.msra.mxu0 %v1513
        %3054 = vmatpush.msra.mxu0 %v1505
        %3055 = vmatpush.msra.mxu0 %v1497
        %3056 = vmatpush.msra.mxu0 %v1489
        %3057 = vmatpush.msra.mxu0 %v1481
        %3058 = vmatpush.msra.mxu0 %v1473
        %3059 = vmatpush.msra.mxu0 %v1465
        %3060 = vmatpush.msra.mxu0 %v1457
        %3061 = vmatpush.msra.mxu0 %v1449
        %3062 = vmatpush.msra.mxu0 %v1441
        %3063 = vmatpush.msra.mxu0 %v1433
        %3064 = vmatmul.f32.gmra.mxu0 %v776
        %v3065 = vpop.f32.mrf.mxu0
        %v3066 = vadd.f32 %v3043, %v3065
        %3067 = vmatmul.f32.gmra.mxu0 %v784
        %v3068 = vpop.f32.mrf.mxu0
        %v3069 = vadd.f32 %v3046, %v3068
        %3070 = vdwg.mxu0
        %3071 = vmatpush.msra.mxu0 %v1681
        %3072 = vmatpush.msra.mxu0 %v1673
        %3073 = vmatpush.msra.mxu0 %v1665
        %3074 = vmatpush.msra.mxu0 %v1657
        %3075 = vmatpush.msra.mxu0 %v1649
        %3076 = vmatpush.msra.mxu0 %v1641
        %3077 = vmatpush.msra.mxu0 %v1633
        %3078 = vmatpush.msra.mxu0 %v1625
        %3079 = vmatpush.msra.mxu0 %v1617
        %3080 = vmatpush.msra.mxu0 %v1609
        %3081 = vmatpush.msra.mxu0 %v1601
        %3082 = vmatpush.msra.mxu0 %v1593
        %3083 = vmatpush.msra.mxu0 %v1585
        %3084 = vmatpush.msra.mxu0 %v1577
        %3085 = vmatpush.msra.mxu0 %v1569
        %3086 = vmatpush.msra.mxu0 %v1561
        %3087 = vmatmul.f32.gmra.mxu0 %v777
        %v3088 = vpop.f32.mrf.mxu0
        %v3089 = vadd.f32 %v3066, %v3088
        %3090 = vmatmul.f32.gmra.mxu0 %v785
        %v3091 = vpop.f32.mrf.mxu0
        %v3092 = vadd.f32 %v3069, %v3091
        %3093 = vdwg.mxu0
        %3094 = vmatpush.msra.mxu0 %v1809
        %3095 = vmatpush.msra.mxu0 %v1801
        %3096 = vmatpush.msra.mxu0 %v1793
        %3097 = vmatpush.msra.mxu0 %v1785
        %3098 = vmatpush.msra.mxu0 %v1777
        %3099 = vmatpush.msra.mxu0 %v1769
        %3100 = vmatpush.msra.mxu0 %v1761
        %3101 = vmatpush.msra.mxu0 %v1753
        %3102 = vmatpush.msra.mxu0 %v1745
        %3103 = vmatpush.msra.mxu0 %v1737
        %3104 = vmatpush.msra.mxu0 %v1729
        %3105 = vmatpush.msra.mxu0 %v1721
        %3106 = vmatpush.msra.mxu0 %v1713
        %3107 = vmatpush.msra.mxu0 %v1705
        %3108 = vmatpush.msra.mxu0 %v1697
        %3109 = vmatpush.msra.mxu0 %v1689
        %3110 = vmatmul.f32.gmra.mxu0 %v778
        %v3111 = vpop.f32.mrf.mxu0
        %v3112 = vadd.f32 %v3089, %v3111
        %3113 = vmatmul.f32.gmra.mxu0 %v786
        %v3114 = vpop.f32.mrf.mxu0
        %v3115 = vadd.f32 %v3092, %v3114
        %3116 = vdwg.mxu0
        %3117 = vmatpush.msra.mxu0 %v914
        %3118 = vmatpush.msra.mxu0 %v906
        %3119 = vmatpush.msra.mxu0 %v898
        %3120 = vmatpush.msra.mxu0 %v890
        %3121 = vmatpush.msra.mxu0 %v882
        %3122 = vmatpush.msra.mxu0 %v874
        %3123 = vmatpush.msra.mxu0 %v866
        %3124 = vmatpush.msra.mxu0 %v858
        %3125 = vmatpush.msra.mxu0 %v850
        %3126 = vmatpush.msra.mxu0 %v842
        %3127 = vmatpush.msra.mxu0 %v834
        %3128 = vmatpush.msra.mxu0 %v826
        %3129 = vmatpush.msra.mxu0 %v818
        %3130 = vmatpush.msra.mxu0 %v810
        %3131 = vmatpush.msra.mxu0 %v802
        %3132 = vmatpush.msra.mxu0 %v794
        %3133 = vmatmul.f32.gmra.mxu0 %v771
        %v3134 = vpop.f32.mrf.mxu0
        %v3135 = vadd.f32 %v1820, %v3134
        %3136 = vmatmul.f32.gmra.mxu0 %v779
        %v3137 = vpop.f32.mrf.mxu0
        %v3138 = vadd.f32 %v1820, %v3137
        %3139 = vdwg.mxu0
        %3140 = vmatpush.msra.mxu0 %v1042
        %3141 = vmatpush.msra.mxu0 %v1034
        %3142 = vmatpush.msra.mxu0 %v1026
        %3143 = vmatpush.msra.mxu0 %v1018
        %3144 = vmatpush.msra.mxu0 %v1010
        %3145 = vmatpush.msra.mxu0 %v1002
        %3146 = vmatpush.msra.mxu0 %v994
        %3147 = vmatpush.msra.mxu0 %v986
        %3148 = vmatpush.msra.mxu0 %v978
        %3149 = vmatpush.msra.mxu0 %v970
        %3150 = vmatpush.msra.mxu0 %v962
        %3151 = vmatpush.msra.mxu0 %v954
        %3152 = vmatpush.msra.mxu0 %v946
        %3153 = vmatpush.msra.mxu0 %v938
        %3154 = vmatpush.msra.mxu0 %v930
        %3155 = vmatpush.msra.mxu0 %v922
        %3156 = vmatmul.f32.gmra.mxu0 %v772
        %v3157 = vpop.f32.mrf.mxu0
        %v3158 = vadd.f32 %v3135, %v3157
        %3159 = vmatmul.f32.gmra.mxu0 %v780
        %v3160 = vpop.f32.mrf.mxu0
        %v3161 = vadd.f32 %v3138, %v3160
        %3162 = vdwg.mxu0
        %3163 = vmatpush.msra.mxu0 %v1170
        %3164 = vmatpush.msra.mxu0 %v1162
        %3165 = vmatpush.msra.mxu0 %v1154
        %3166 = vmatpush.msra.mxu0 %v1146
        %3167 = vmatpush.msra.mxu0 %v1138
        %3168 = vmatpush.msra.mxu0 %v1130
        %3169 = vmatpush.msra.mxu0 %v1122
        %3170 = vmatpush.msra.mxu0 %v1114
        %3171 = vmatpush.msra.mxu0 %v1106
        %3172 = vmatpush.msra.mxu0 %v1098
        %3173 = vmatpush.msra.mxu0 %v1090
        %3174 = vmatpush.msra.mxu0 %v1082
        %3175 = vmatpush.msra.mxu0 %v1074
        %3176 = vmatpush.msra.mxu0 %v1066
        %3177 = vmatpush.msra.mxu0 %v1058
        %3178 = vmatpush.msra.mxu0 %v1050
        %3179 = vmatmul.f32.gmra.mxu0 %v773
        %v3180 = vpop.f32.mrf.mxu0
        %v3181 = vadd.f32 %v3158, %v3180
        %3182 = vmatmul.f32.gmra.mxu0 %v781
        %v3183 = vpop.f32.mrf.mxu0
        %v3184 = vadd.f32 %v3161, %v3183
        %3185 = vdwg.mxu0
        %3186 = vmatpush.msra.mxu0 %v1298
        %3187 = vmatpush.msra.mxu0 %v1290
        %3188 = vmatpush.msra.mxu0 %v1282
        %3189 = vmatpush.msra.mxu0 %v1274
        %3190 = vmatpush.msra.mxu0 %v1266
        %3191 = vmatpush.msra.mxu0 %v1258
        %3192 = vmatpush.msra.mxu0 %v1250
        %3193 = vmatpush.msra.mxu0 %v1242
        %3194 = vmatpush.msra.mxu0 %v1234
        %3195 = vmatpush.msra.mxu0 %v1226
        %3196 = vmatpush.msra.mxu0 %v1218
        %3197 = vmatpush.msra.mxu0 %v1210
        %3198 = vmatpush.msra.mxu0 %v1202
        %3199 = vmatpush.msra.mxu0 %v1194
        %3200 = vmatpush.msra.mxu0 %v1186
        %3201 = vmatpush.msra.mxu0 %v1178
        %3202 = vmatmul.f32.gmra.mxu0 %v774
        %v3203 = vpop.f32.mrf.mxu0
        %v3204 = vadd.f32 %v3181, %v3203
        %3205 = vmatmul.f32.gmra.mxu0 %v782
        %v3206 = vpop.f32.mrf.mxu0
        %v3207 = vadd.f32 %v3184, %v3206
        %3208 = vdwg.mxu0
        %3209 = vmatpush.msra.mxu0 %v1426
        %3210 = vmatpush.msra.mxu0 %v1418
        %3211 = vmatpush.msra.mxu0 %v1410
        %3212 = vmatpush.msra.mxu0 %v1402
        %3213 = vmatpush.msra.mxu0 %v1394
        %3214 = vmatpush.msra.mxu0 %v1386
        %3215 = vmatpush.msra.mxu0 %v1378
        %3216 = vmatpush.msra.mxu0 %v1370
        %3217 = vmatpush.msra.mxu0 %v1362
        %3218 = vmatpush.msra.mxu0 %v1354
        %3219 = vmatpush.msra.mxu0 %v1346
        %3220 = vmatpush.msra.mxu0 %v1338
        %3221 = vmatpush.msra.mxu0 %v1330
        %3222 = vmatpush.msra.mxu0 %v1322
        %3223 = vmatpush.msra.mxu0 %v1314
        %3224 = vmatpush.msra.mxu0 %v1306
        %3225 = vmatmul.f32.gmra.mxu0 %v775
        %v3226 = vpop.f32.mrf.mxu0
        %v3227 = vadd.f32 %v3204, %v3226
        %3228 = vmatmul.f32.gmra.mxu0 %v783
        %v3229 = vpop.f32.mrf.mxu0
        %v3230 = vadd.f32 %v3207, %v3229
        %3231 = vdwg.mxu0
        %3232 = vmatpush.msra.mxu0 %v1554
        %3233 = vmatpush.msra.mxu0 %v1546
        %3234 = vmatpush.msra.mxu0 %v1538
        %3235 = vmatpush.msra.mxu0 %v1530
        %3236 = vmatpush.msra.mxu0 %v1522
        %3237 = vmatpush.msra.mxu0 %v1514
        %3238 = vmatpush.msra.mxu0 %v1506
        %3239 = vmatpush.msra.mxu0 %v1498
        %3240 = vmatpush.msra.mxu0 %v1490
        %3241 = vmatpush.msra.mxu0 %v1482
        %3242 = vmatpush.msra.mxu0 %v1474
        %3243 = vmatpush.msra.mxu0 %v1466
        %3244 = vmatpush.msra.mxu0 %v1458
        %3245 = vmatpush.msra.mxu0 %v1450
        %3246 = vmatpush.msra.mxu0 %v1442
        %3247 = vmatpush.msra.mxu0 %v1434
        %3248 = vmatmul.f32.gmra.mxu0 %v776
        %v3249 = vpop.f32.mrf.mxu0
        %v3250 = vadd.f32 %v3227, %v3249
        %3251 = vmatmul.f32.gmra.mxu0 %v784
        %v3252 = vpop.f32.mrf.mxu0
        %v3253 = vadd.f32 %v3230, %v3252
        %3254 = vdwg.mxu0
        %3255 = vmatpush.msra.mxu0 %v1682
        %3256 = vmatpush.msra.mxu0 %v1674
        %3257 = vmatpush.msra.mxu0 %v1666
        %3258 = vmatpush.msra.mxu0 %v1658
        %3259 = vmatpush.msra.mxu0 %v1650
        %3260 = vmatpush.msra.mxu0 %v1642
        %3261 = vmatpush.msra.mxu0 %v1634
        %3262 = vmatpush.msra.mxu0 %v1626
        %3263 = vmatpush.msra.mxu0 %v1618
        %3264 = vmatpush.msra.mxu0 %v1610
        %3265 = vmatpush.msra.mxu0 %v1602
        %3266 = vmatpush.msra.mxu0 %v1594
        %3267 = vmatpush.msra.mxu0 %v1586
        %3268 = vmatpush.msra.mxu0 %v1578
        %3269 = vmatpush.msra.mxu0 %v1570
        %3270 = vmatpush.msra.mxu0 %v1562
        %3271 = vmatmul.f32.gmra.mxu0 %v777
        %v3272 = vpop.f32.mrf.mxu0
        %v3273 = vadd.f32 %v3250, %v3272
        %3274 = vmatmul.f32.gmra.mxu0 %v785
        %v3275 = vpop.f32.mrf.mxu0
        %v3276 = vadd.f32 %v3253, %v3275
        %3277 = vdwg.mxu0
        %3278 = vmatpush.msra.mxu0 %v1810
        %3279 = vmatpush.msra.mxu0 %v1802
        %3280 = vmatpush.msra.mxu0 %v1794
        %3281 = vmatpush.msra.mxu0 %v1786
        %3282 = vmatpush.msra.mxu0 %v1778
        %3283 = vmatpush.msra.mxu0 %v1770
        %3284 = vmatpush.msra.mxu0 %v1762
        %3285 = vmatpush.msra.mxu0 %v1754
        %3286 = vmatpush.msra.mxu0 %v1746
        %3287 = vmatpush.msra.mxu0 %v1738
        %3288 = vmatpush.msra.mxu0 %v1730
        %3289 = vmatpush.msra.mxu0 %v1722
        %3290 = vmatpush.msra.mxu0 %v1714
        %3291 = vmatpush.msra.mxu0 %v1706
        %3292 = vmatpush.msra.mxu0 %v1698
        %3293 = vmatpush.msra.mxu0 %v1690
        %3294 = vmatmul.f32.gmra.mxu0 %v778
        %v3295 = vpop.f32.mrf.mxu0
        %v3296 = vadd.f32 %v3273, %v3295
        %3297 = vmatmul.f32.gmra.mxu0 %v786
        %v3298 = vpop.f32.mrf.mxu0
        %v3299 = vadd.f32 %v3276, %v3298
        %3300 = vdwg.mxu0
        %v3301 = vmul.f32 %v2008, 0.01
        %v3302 = vmul.f32 %v2192, 0.01
        %v3303 = vmul.f32 %v2376, 0.01
        %v3304 = vmul.f32 %v2560, 0.01
        %v3305 = vmul.f32 %v2744, 0.01
        %v3306 = vmul.f32 %v2928, 0.01
        %v3307 = vmul.f32 %v3112, 0.01
        %v3308 = vmul.f32 %v3296, 0.01
        %v3309 = vmul.f32 %v2011, 0.01
        %v3310 = vmul.f32 %v2195, 0.01
        %v3311 = vmul.f32 %v2379, 0.01
        %v3312 = vmul.f32 %v2563, 0.01
        %v3313 = vmul.f32 %v2747, 0.01
        %v3314 = vmul.f32 %v2931, 0.01
        %v3315 = vmul.f32 %v3115, 0.01
        %v3316 = vmul.f32 %v3299, 0.01
        %v3317 = vmax.f32 %v2008, %v3301
        %v3318 = vmax.f32 %v2192, %v3302
        %v3319 = vmax.f32 %v2376, %v3303
        %v3320 = vmax.f32 %v2560, %v3304
        %v3321 = vmax.f32 %v2744, %v3305
        %v3322 = vmax.f32 %v2928, %v3306
        %v3323 = vmax.f32 %v3112, %v3307
        %v3324 = vmax.f32 %v3296, %v3308
        %v3325 = vmax.f32 %v2011, %v3309
        %v3326 = vmax.f32 %v2195, %v3310
        %v3327 = vmax.f32 %v2379, %v3311
        %v3328 = vmax.f32 %v2563, %v3312
        %v3329 = vmax.f32 %v2747, %v3313
        %v3330 = vmax.f32 %v2931, %v3314
        %v3331 = vmax.f32 %v3115, %v3315
        %v3332 = vmax.f32 %v3299, %v3316
        %v3333 = vld [vmem:[#allocation12] sm:$0xff]
        %v3334 = vld [vmem:[#allocation12 + $0x8] sm:$0xff]
        %v3335 = vld [vmem:[#allocation12 + $0x10] sm:$0xff]
        %v3336 = vld [vmem:[#allocation12 + $0x18] sm:$0xff]
        %v3337 = vld [vmem:[#allocation12 + $0x20] sm:$0xff]
        %v3338 = vld [vmem:[#allocation12 + $0x28] sm:$0xff]
        %v3339 = vld [vmem:[#allocation12 + $0x30] sm:$0xff]
        %v3340 = vld [vmem:[#allocation12 + $0x38] sm:$0xff]
        %v3341 = vld [vmem:[#allocation12 + $0x40] sm:$0xff]
        %v3342 = vld [vmem:[#allocation12 + $0x48] sm:$0xff]
        %v3343 = vld [vmem:[#allocation12 + $0x50] sm:$0xff]
        %v3344 = vld [vmem:[#allocation12 + $0x58] sm:$0xff]
        %v3345 = vld [vmem:[#allocation12 + $0x60] sm:$0xff]
        %v3346 = vld [vmem:[#allocation12 + $0x68] sm:$0xff]
        %v3347 = vld [vmem:[#allocation12 + $0x70] sm:$0xff]
        %v3348 = vld [vmem:[#allocation12 + $0x78] sm:$0xff]
        %v3349 = vld [vmem:[#allocation12 + $0x80] sm:$0xff]
        %v3350 = vld [vmem:[#allocation12 + $0x88] sm:$0xff]
        %v3351 = vld [vmem:[#allocation12 + $0x90] sm:$0xff]
        %v3352 = vld [vmem:[#allocation12 + $0x98] sm:$0xff]
        %v3353 = vld [vmem:[#allocation12 + $0xa0] sm:$0xff]
        %v3354 = vld [vmem:[#allocation12 + $0xa8] sm:$0xff]
        %v3355 = vld [vmem:[#allocation12 + $0xb0] sm:$0xff]
        %v3356 = vld [vmem:[#allocation12 + $0xb8] sm:$0xff]
        %v3357 = vld [vmem:[#allocation12 + $0xc0] sm:$0xff]
        %v3358 = vld [vmem:[#allocation12 + $0xc8] sm:$0xff]
        %v3359 = vld [vmem:[#allocation12 + $0xd0] sm:$0xff]
        %v3360 = vld [vmem:[#allocation12 + $0xd8] sm:$0xff]
        %v3361 = vld [vmem:[#allocation12 + $0xe0] sm:$0xff]
        %v3362 = vld [vmem:[#allocation12 + $0xe8] sm:$0xff]
        %v3363 = vld [vmem:[#allocation12 + $0xf0] sm:$0xff]
        %v3364 = vld [vmem:[#allocation12 + $0xf8] sm:$0xff]
        %v3365 = vld [vmem:[#allocation12 + $0x100] sm:$0xff]
        %v3366 = vld [vmem:[#allocation12 + $0x108] sm:$0xff]
        %v3367 = vld [vmem:[#allocation12 + $0x110] sm:$0xff]
        %v3368 = vld [vmem:[#allocation12 + $0x118] sm:$0xff]
        %v3369 = vld [vmem:[#allocation12 + $0x120] sm:$0xff]
        %v3370 = vld [vmem:[#allocation12 + $0x128] sm:$0xff]
        %v3371 = vld [vmem:[#allocation12 + $0x130] sm:$0xff]
        %v3372 = vld [vmem:[#allocation12 + $0x138] sm:$0xff]
        %v3373 = vld [vmem:[#allocation12 + $0x140] sm:$0xff]
        %v3374 = vld [vmem:[#allocation12 + $0x148] sm:$0xff]
        %v3375 = vld [vmem:[#allocation12 + $0x150] sm:$0xff]
        %v3376 = vld [vmem:[#allocation12 + $0x158] sm:$0xff]
        %v3377 = vld [vmem:[#allocation12 + $0x160] sm:$0xff]
        %v3378 = vld [vmem:[#allocation12 + $0x168] sm:$0xff]
        %v3379 = vld [vmem:[#allocation12 + $0x170] sm:$0xff]
        %v3380 = vld [vmem:[#allocation12 + $0x178] sm:$0xff]
        %v3381 = vld [vmem:[#allocation12 + $0x180] sm:$0xff]
        %v3382 = vld [vmem:[#allocation12 + $0x188] sm:$0xff]
        %v3383 = vld [vmem:[#allocation12 + $0x190] sm:$0xff]
        %v3384 = vld [vmem:[#allocation12 + $0x198] sm:$0xff]
        %v3385 = vld [vmem:[#allocation12 + $0x1a0] sm:$0xff]
        %v3386 = vld [vmem:[#allocation12 + $0x1a8] sm:$0xff]
        %v3387 = vld [vmem:[#allocation12 + $0x1b0] sm:$0xff]
        %v3388 = vld [vmem:[#allocation12 + $0x1b8] sm:$0xff]
        %v3389 = vld [vmem:[#allocation12 + $0x1c0] sm:$0xff]
        %v3390 = vld [vmem:[#allocation12 + $0x1c8] sm:$0xff]
        %v3391 = vld [vmem:[#allocation12 + $0x1d0] sm:$0xff]
        %v3392 = vld [vmem:[#allocation12 + $0x1d8] sm:$0xff]
        %v3393 = vld [vmem:[#allocation12 + $0x1e0] sm:$0xff]
        %v3394 = vld [vmem:[#allocation12 + $0x1e8] sm:$0xff]
        %v3395 = vld [vmem:[#allocation12 + $0x1f0] sm:$0xff]
        %v3396 = vld [vmem:[#allocation12 + $0x1f8] sm:$0xff]
        %v3397 = vld [vmem:[#allocation12 + $0x200] sm:$0xff]
        %v3398 = vld [vmem:[#allocation12 + $0x208] sm:$0xff]
        %v3399 = vld [vmem:[#allocation12 + $0x210] sm:$0xff]
        %v3400 = vld [vmem:[#allocation12 + $0x218] sm:$0xff]
        %v3401 = vld [vmem:[#allocation12 + $0x220] sm:$0xff]
        %v3402 = vld [vmem:[#allocation12 + $0x228] sm:$0xff]
        %v3403 = vld [vmem:[#allocation12 + $0x230] sm:$0xff]
        %v3404 = vld [vmem:[#allocation12 + $0x238] sm:$0xff]
        %v3405 = vld [vmem:[#allocation12 + $0x240] sm:$0xff]
        %v3406 = vld [vmem:[#allocation12 + $0x248] sm:$0xff]
        %v3407 = vld [vmem:[#allocation12 + $0x250] sm:$0xff]
        %v3408 = vld [vmem:[#allocation12 + $0x258] sm:$0xff]
        %v3409 = vld [vmem:[#allocation12 + $0x260] sm:$0xff]
        %v3410 = vld [vmem:[#allocation12 + $0x268] sm:$0xff]
        %v3411 = vld [vmem:[#allocation12 + $0x270] sm:$0xff]
        %v3412 = vld [vmem:[#allocation12 + $0x278] sm:$0xff]
        %v3413 = vld [vmem:[#allocation12 + $0x280] sm:$0xff]
        %v3414 = vld [vmem:[#allocation12 + $0x288] sm:$0xff]
        %v3415 = vld [vmem:[#allocation12 + $0x290] sm:$0xff]
        %v3416 = vld [vmem:[#allocation12 + $0x298] sm:$0xff]
        %v3417 = vld [vmem:[#allocation12 + $0x2a0] sm:$0xff]
        %v3418 = vld [vmem:[#allocation12 + $0x2a8] sm:$0xff]
        %v3419 = vld [vmem:[#allocation12 + $0x2b0] sm:$0xff]
        %v3420 = vld [vmem:[#allocation12 + $0x2b8] sm:$0xff]
        %v3421 = vld [vmem:[#allocation12 + $0x2c0] sm:$0xff]
        %v3422 = vld [vmem:[#allocation12 + $0x2c8] sm:$0xff]
        %v3423 = vld [vmem:[#allocation12 + $0x2d0] sm:$0xff]
        %v3424 = vld [vmem:[#allocation12 + $0x2d8] sm:$0xff]
        %v3425 = vld [vmem:[#allocation12 + $0x2e0] sm:$0xff]
        %v3426 = vld [vmem:[#allocation12 + $0x2e8] sm:$0xff]
        %v3427 = vld [vmem:[#allocation12 + $0x2f0] sm:$0xff]
        %v3428 = vld [vmem:[#allocation12 + $0x2f8] sm:$0xff]
        %v3429 = vld [vmem:[#allocation12 + $0x300] sm:$0xff]
        %v3430 = vld [vmem:[#allocation12 + $0x308] sm:$0xff]
        %v3431 = vld [vmem:[#allocation12 + $0x310] sm:$0xff]
        %v3432 = vld [vmem:[#allocation12 + $0x318] sm:$0xff]
        %v3433 = vld [vmem:[#allocation12 + $0x320] sm:$0xff]
        %v3434 = vld [vmem:[#allocation12 + $0x328] sm:$0xff]
        %v3435 = vld [vmem:[#allocation12 + $0x330] sm:$0xff]
        %v3436 = vld [vmem:[#allocation12 + $0x338] sm:$0xff]
        %v3437 = vld [vmem:[#allocation12 + $0x340] sm:$0xff]
        %v3438 = vld [vmem:[#allocation12 + $0x348] sm:$0xff]
        %v3439 = vld [vmem:[#allocation12 + $0x350] sm:$0xff]
        %v3440 = vld [vmem:[#allocation12 + $0x358] sm:$0xff]
        %v3441 = vld [vmem:[#allocation12 + $0x360] sm:$0xff]
        %v3442 = vld [vmem:[#allocation12 + $0x368] sm:$0xff]
        %v3443 = vld [vmem:[#allocation12 + $0x370] sm:$0xff]
        %v3444 = vld [vmem:[#allocation12 + $0x378] sm:$0xff]
        %v3445 = vld [vmem:[#allocation12 + $0x380] sm:$0xff]
        %v3446 = vld [vmem:[#allocation12 + $0x388] sm:$0xff]
        %v3447 = vld [vmem:[#allocation12 + $0x390] sm:$0xff]
        %v3448 = vld [vmem:[#allocation12 + $0x398] sm:$0xff]
        %v3449 = vld [vmem:[#allocation12 + $0x3a0] sm:$0xff]
        %v3450 = vld [vmem:[#allocation12 + $0x3a8] sm:$0xff]
        %v3451 = vld [vmem:[#allocation12 + $0x3b0] sm:$0xff]
        %v3452 = vld [vmem:[#allocation12 + $0x3b8] sm:$0xff]
        %v3453 = vld [vmem:[#allocation12 + $0x3c0] sm:$0xff]
        %v3454 = vld [vmem:[#allocation12 + $0x3c8] sm:$0xff]
        %v3455 = vld [vmem:[#allocation12 + $0x3d0] sm:$0xff]
        %v3456 = vld [vmem:[#allocation12 + $0x3d8] sm:$0xff]
        %v3457 = vld [vmem:[#allocation12 + $0x3e0] sm:$0xff]
        %v3458 = vld [vmem:[#allocation12 + $0x3e8] sm:$0xff]
        %v3459 = vld [vmem:[#allocation12 + $0x3f0] sm:$0xff]
        %v3460 = vld [vmem:[#allocation12 + $0x3f8] sm:$0xff]
        %v3461 = vld [vmem:[#allocation14] sm:$0x1]
        %v3463 = vperm.slane %v3461, 0
        %3465 = vmatpush.msra.mxu0 %v3348
        %3466 = vmatpush.msra.mxu0 %v3347
        %3467 = vmatpush.msra.mxu0 %v3346
        %3468 = vmatpush.msra.mxu0 %v3345
        %3469 = vmatpush.msra.mxu0 %v3344
        %3470 = vmatpush.msra.mxu0 %v3343
        %3471 = vmatpush.msra.mxu0 %v3342
        %3472 = vmatpush.msra.mxu0 %v3341
        %3473 = vmatpush.msra.mxu0 %v3340
        %3474 = vmatpush.msra.mxu0 %v3339
        %3475 = vmatpush.msra.mxu0 %v3338
        %3476 = vmatpush.msra.mxu0 %v3337
        %3477 = vmatpush.msra.mxu0 %v3336
        %3478 = vmatpush.msra.mxu0 %v3335
        %3479 = vmatpush.msra.mxu0 %v3334
        %3480 = vmatpush.msra.mxu0 %v3333
        %3481 = vmatmul.f32.gmra.mxu0 %v3317
        %v3482 = vpop.f32.mrf.mxu0
        %v3483 = vadd.f32 %v3463, %v3482
        %3484 = vmatmul.f32.gmra.mxu0 %v3325
        %v3485 = vpop.f32.mrf.mxu0
        %v3486 = vadd.f32 %v3463, %v3485
        %3487 = vdwg.mxu0
        %3488 = vmatpush.msra.mxu0 %v3364
        %3489 = vmatpush.msra.mxu0 %v3363
        %3490 = vmatpush.msra.mxu0 %v3362
        %3491 = vmatpush.msra.mxu0 %v3361
        %3492 = vmatpush.msra.mxu0 %v3360
        %3493 = vmatpush.msra.mxu0 %v3359
        %3494 = vmatpush.msra.mxu0 %v3358
        %3495 = vmatpush.msra.mxu0 %v3357
        %3496 = vmatpush.msra.mxu0 %v3356
        %3497 = vmatpush.msra.mxu0 %v3355
        %3498 = vmatpush.msra.mxu0 %v3354
        %3499 = vmatpush.msra.mxu0 %v3353
        %3500 = vmatpush.msra.mxu0 %v3352
        %3501 = vmatpush.msra.mxu0 %v3351
        %3502 = vmatpush.msra.mxu0 %v3350
        %3503 = vmatpush.msra.mxu0 %v3349
        %3504 = vmatmul.f32.gmra.mxu0 %v3318
        %v3505 = vpop.f32.mrf.mxu0
        %v3506 = vadd.f32 %v3483, %v3505
        %3507 = vmatmul.f32.gmra.mxu0 %v3326
        %v3508 = vpop.f32.mrf.mxu0
        %v3509 = vadd.f32 %v3486, %v3508
        %3510 = vdwg.mxu0
        %3511 = vmatpush.msra.mxu0 %v3380
        %3512 = vmatpush.msra.mxu0 %v3379
        %3513 = vmatpush.msra.mxu0 %v3378
        %3514 = vmatpush.msra.mxu0 %v3377
        %3515 = vmatpush.msra.mxu0 %v3376
        %3516 = vmatpush.msra.mxu0 %v3375
        %3517 = vmatpush.msra.mxu0 %v3374
        %3518 = vmatpush.msra.mxu0 %v3373
        %3519 = vmatpush.msra.mxu0 %v3372
        %3520 = vmatpush.msra.mxu0 %v3371
        %3521 = vmatpush.msra.mxu0 %v3370
        %3522 = vmatpush.msra.mxu0 %v3369
        %3523 = vmatpush.msra.mxu0 %v3368
        %3524 = vmatpush.msra.mxu0 %v3367
        %3525 = vmatpush.msra.mxu0 %v3366
        %3526 = vmatpush.msra.mxu0 %v3365
        %3527 = vmatmul.f32.gmra.mxu0 %v3319
        %v3528 = vpop.f32.mrf.mxu0
        %v3529 = vadd.f32 %v3506, %v3528
        %3530 = vmatmul.f32.gmra.mxu0 %v3327
        %v3531 = vpop.f32.mrf.mxu0
        %v3532 = vadd.f32 %v3509, %v3531
        %3533 = vdwg.mxu0
        %3534 = vmatpush.msra.mxu0 %v3396
        %3535 = vmatpush.msra.mxu0 %v3395
        %3536 = vmatpush.msra.mxu0 %v3394
        %3537 = vmatpush.msra.mxu0 %v3393
        %3538 = vmatpush.msra.mxu0 %v3392
        %3539 = vmatpush.msra.mxu0 %v3391
        %3540 = vmatpush.msra.mxu0 %v3390
        %3541 = vmatpush.msra.mxu0 %v3389
        %3542 = vmatpush.msra.mxu0 %v3388
        %3543 = vmatpush.msra.mxu0 %v3387
        %3544 = vmatpush.msra.mxu0 %v3386
        %3545 = vmatpush.msra.mxu0 %v3385
        %3546 = vmatpush.msra.mxu0 %v3384
        %3547 = vmatpush.msra.mxu0 %v3383
        %3548 = vmatpush.msra.mxu0 %v3382
        %3549 = vmatpush.msra.mxu0 %v3381
        %3550 = vmatmul.f32.gmra.mxu0 %v3320
        %v3551 = vpop.f32.mrf.mxu0
        %v3552 = vadd.f32 %v3529, %v3551
        %3553 = vmatmul.f32.gmra.mxu0 %v3328
        %v3554 = vpop.f32.mrf.mxu0
        %v3555 = vadd.f32 %v3532, %v3554
        %3556 = vdwg.mxu0
        %3557 = vmatpush.msra.mxu0 %v3412
        %3558 = vmatpush.msra.mxu0 %v3411
        %3559 = vmatpush.msra.mxu0 %v3410
        %3560 = vmatpush.msra.mxu0 %v3409
        %3561 = vmatpush.msra.mxu0 %v3408
        %3562 = vmatpush.msra.mxu0 %v3407
        %3563 = vmatpush.msra.mxu0 %v3406
        %3564 = vmatpush.msra.mxu0 %v3405
        %3565 = vmatpush.msra.mxu0 %v3404
        %3566 = vmatpush.msra.mxu0 %v3403
        %3567 = vmatpush.msra.mxu0 %v3402
        %3568 = vmatpush.msra.mxu0 %v3401
        %3569 = vmatpush.msra.mxu0 %v3400
        %3570 = vmatpush.msra.mxu0 %v3399
        %3571 = vmatpush.msra.mxu0 %v3398
        %3572 = vmatpush.msra.mxu0 %v3397
        %3573 = vmatmul.f32.gmra.mxu0 %v3321
        %v3574 = vpop.f32.mrf.mxu0
        %v3575 = vadd.f32 %v3552, %v3574
        %3576 = vmatmul.f32.gmra.mxu0 %v3329
        %v3577 = vpop.f32.mrf.mxu0
        %v3578 = vadd.f32 %v3555, %v3577
        %3579 = vdwg.mxu0
        %3580 = vmatpush.msra.mxu0 %v3428
        %3581 = vmatpush.msra.mxu0 %v3427
        %3582 = vmatpush.msra.mxu0 %v3426
        %3583 = vmatpush.msra.mxu0 %v3425
        %3584 = vmatpush.msra.mxu0 %v3424
        %3585 = vmatpush.msra.mxu0 %v3423
        %3586 = vmatpush.msra.mxu0 %v3422
        %3587 = vmatpush.msra.mxu0 %v3421
        %3588 = vmatpush.msra.mxu0 %v3420
        %3589 = vmatpush.msra.mxu0 %v3419
        %3590 = vmatpush.msra.mxu0 %v3418
        %3591 = vmatpush.msra.mxu0 %v3417
        %3592 = vmatpush.msra.mxu0 %v3416
        %3593 = vmatpush.msra.mxu0 %v3415
        %3594 = vmatpush.msra.mxu0 %v3414
        %3595 = vmatpush.msra.mxu0 %v3413
        %3596 = vmatmul.f32.gmra.mxu0 %v3322
        %v3597 = vpop.f32.mrf.mxu0
        %v3598 = vadd.f32 %v3575, %v3597
        %3599 = vmatmul.f32.gmra.mxu0 %v3330
        %v3600 = vpop.f32.mrf.mxu0
        %v3601 = vadd.f32 %v3578, %v3600
        %3602 = vdwg.mxu0
        %3603 = vmatpush.msra.mxu0 %v3444
        %3604 = vmatpush.msra.mxu0 %v3443
        %3605 = vmatpush.msra.mxu0 %v3442
        %3606 = vmatpush.msra.mxu0 %v3441
        %3607 = vmatpush.msra.mxu0 %v3440
        %3608 = vmatpush.msra.mxu0 %v3439
        %3609 = vmatpush.msra.mxu0 %v3438
        %3610 = vmatpush.msra.mxu0 %v3437
        %3611 = vmatpush.msra.mxu0 %v3436
        %3612 = vmatpush.msra.mxu0 %v3435
        %3613 = vmatpush.msra.mxu0 %v3434
        %3614 = vmatpush.msra.mxu0 %v3433
        %3615 = vmatpush.msra.mxu0 %v3432
        %3616 = vmatpush.msra.mxu0 %v3431
        %3617 = vmatpush.msra.mxu0 %v3430
        %3618 = vmatpush.msra.mxu0 %v3429
        %3619 = vmatmul.f32.gmra.mxu0 %v3323
        %v3620 = vpop.f32.mrf.mxu0
        %v3621 = vadd.f32 %v3598, %v3620
        %3622 = vmatmul.f32.gmra.mxu0 %v3331
        %v3623 = vpop.f32.mrf.mxu0
        %v3624 = vadd.f32 %v3601, %v3623
        %3625 = vdwg.mxu0
        %3626 = vmatpush.msra.mxu0 %v3460
        %3627 = vmatpush.msra.mxu0 %v3459
        %3628 = vmatpush.msra.mxu0 %v3458
        %3629 = vmatpush.msra.mxu0 %v3457
        %3630 = vmatpush.msra.mxu0 %v3456
        %3631 = vmatpush.msra.mxu0 %v3455
        %3632 = vmatpush.msra.mxu0 %v3454
        %3633 = vmatpush.msra.mxu0 %v3453
        %3634 = vmatpush.msra.mxu0 %v3452
        %3635 = vmatpush.msra.mxu0 %v3451
        %3636 = vmatpush.msra.mxu0 %v3450
        %3637 = vmatpush.msra.mxu0 %v3449
        %3638 = vmatpush.msra.mxu0 %v3448
        %3639 = vmatpush.msra.mxu0 %v3447
        %3640 = vmatpush.msra.mxu0 %v3446
        %3641 = vmatpush.msra.mxu0 %v3445
        %3642 = vmatmul.f32.gmra.mxu0 %v3324
        %v3643 = vpop.f32.mrf.mxu0
        %v3644 = vadd.f32 %v3621, %v3643
        %3645 = vmatmul.f32.gmra.mxu0 %v3332
        %v3646 = vpop.f32.mrf.mxu0
        %v3647 = vadd.f32 %v3624, %v3646
        %3648 = vdwg.mxu0
        %v3649 = vmul.f32 %v3644, 0.01
        %v3650 = vmul.f32 %v3647, 0.01
        %v3651 = vmax.f32 %v3644, %v3649
        %v3652 = vmax.f32 %v3647, %v3650
        %v3653 = vstv %s422
        %v3654 = vmul.f32 %v3653, %v3651
        %v3655 = vmul.f32 %v3653, %v3652
        %v3656 = vadd.f32 %v423, %v3654
        %v3657 = vadd.f32 %v424, %v3655
        %3658 = vst [vmem:[%s419] sm:$0xff] %v3656
        %3659 = vst [vmem:[%s419 + $0x8] sm:$0xff] %v3657
        %s3660 = sand.u32 %s210, 1
        %s3661 = scalar_lea.sflag [#allocation5], %s3660
        %s3662 = sand.u32 %s210, 1
        %s3663 = smul.addr %s3662, 16
        %s3664 = scalar_lea.vmem [#allocation15], %s3663
        // Predicated region
        $region81: #{tpu_custom_call.1} parent=51 // pred_check
          %p3665 = pneg %p220
        $region82: #{tpu_custom_call.1} parent=51 // pred_check_branch
          %3667 = sbr.rel (%p3665) target = $region84
        $region83: #{tpu_custom_call.1} parent=51 // pred_region
          %s3668 = smul.u32 2, %s29
          %3670 = vsyncadd %s3661, 0
          %s3671 = smul.addr %s3668, 8
          %s3672 = scalar_lea.hbm %s8, %s3671
          %s3673 = sshll.u32 %s3664, 4
          %s3674 = int_to_ptr.vmem [resolvable:$true] %s3673
          %s3675 = sshll.u32 %s3672, 4
          %s3676 = int_to_ptr.hbm [resolvable:$true] %s3675
          %3681 = dma.vmem_to_hbm [thread:$0]  %s3674, 256, %s3676, %s3661, 128, 128, 8
        $region84: #{tpu_custom_call.1} parent=51 // pred_fallthru
          _
      $region52: #{tpu_custom_call.1} parent=5 // pred_fallthru
        _
      %p3682 = scmp.le.s32.totalorder 2, %s24
      // Predicated region
      $region85: #{tpu_custom_call.1} parent=5 // pred_check
        %p3683 = pneg %p3682
      $region86: #{tpu_custom_call.1} parent=5 // pred_check_branch
        %3685 = sbr.rel (%p3683) target = $region88
      $region87: #{tpu_custom_call.1} parent=5 // pred_region
        %s3686 = ssub.s32 %s24, 2
        // Predicated region
        $region89: #{tpu_custom_call.1} parent=87 // pred_check
          %p3687 = pneg %p226
        $region90: #{tpu_custom_call.1} parent=87 // pred_check_branch
          %3689 = sbr.rel (%p3687) target = $region92
        $region91: #{tpu_custom_call.1} parent=87 // pred_region
          %s3690 = sand.u32 %s211, 1
          %s3691 = scalar_lea.sflag [#allocation5], %s3690
          %s3692 = sand.u32 %s211, 1
          %s3693 = smul.addr %s3692, 16
          %s3694 = scalar_lea.vmem [#allocation15], %s3693
          %3696 = dma.done %s3691, 256
        $region92: #{tpu_custom_call.1} parent=87 // pred_fallthru
          _
      $region88: #{tpu_custom_call.1} parent=5 // pred_fallthru
        _
    $region6: #{tpu_custom_call.1} parent=1 // loop_footer
      %s28 = sadd.s32 1, %s24
    $region7: #{tpu_custom_call.1} parent=1 // loop_footer_branch
      %23 = sbr.rel target = $region3
    $region8: #{tpu_custom_call.1} parent=1 // loop_exit
      _
    %3697 = vsyncpa [#allocation4], 1
    %s3698 = scalar_lea.sflag [#allocation4], 1
    %3699 = vsyncpa %s3698, 1
    %3700 = vsyncpa [#allocation7], 1
    %3701 = vsyncpa [#allocation10], 1
    %3702 = vsyncpa [#allocation13], 1
    %3703 = vsyncpa [#allocation5], 1
    %s3704 = scalar_lea.sflag [#allocation5], 1
    %3705 = vsyncpa %s3704, 1

</llo_original>
